<compile_context>
chip_gen: v7x
topology: tpu7x:2x2x1
jax: 0.10.0
libtpu: 0.0.40
codegen_flags: <defaults>
</compile_context>

<pallas_src>
import functools

import jax
import jax.numpy as jnp
from jax import lax
from jax.experimental import pallas as pl
from jax.experimental.pallas import tpu as pltpu

_BN_EPS = 1e-5


# ----------------------------- fused block kernel ---------------------------

def _bottleneck_kernel(x_ref, w1_ref, b1_ref, w2_ref, b2_ref, w3_ref, b3_ref,
                       o_ref, *, has_proj, ws_true, group_kw):
    """One BottleneckD block for one batch element (all BN folded).

    x_ref : (1, Hs, Wp, Cin)        Wp = W padded to a multiple of 8; only the
                                    first ws_true columns are meaningful.
    w1_ref: (Cin, Cmid)             or (Cin, Cmid+Cout) when fused with the
                                    projection shortcut (has_proj).
    b1_ref: (1, Cmid[+Cout])
    w2_ref: (9*Cmid, Cmid)          3x3 conv taps, row block t = kh*3+kw.
    b2_ref: (1, Cmid)
    w3_ref: (Cmid, Cout)            final 1x1 conv (padding=1), BN folded.
    b3_ref: (1, Cout)
    o_ref : (1, Hs, Wp, Cout)
    """
    _, hs, wp, cin = x_ref.shape
    cmid = w2_ref.shape[1]
    cout = w3_ref.shape[1]
    hi, wi = hs - 2, ws_true - 2          # valid-conv interior of the TRUE image

    cdt = w1_ref.dtype                    # MXU operand dtype (bf16/f32); acc is f32

    x2d = x_ref[0].reshape(hs * wp, cin)

    # ---- layer 1: 1x1 conv (+folded BN) [+ fused projection shortcut]: ONE matmul
    y = jnp.dot(x2d.astype(cdt), w1_ref[...],
                preferred_element_type=jnp.float32) + b1_ref[...]
    if has_proj:
        y1 = jnp.maximum(y[:, :cmid], 0.0)                 # path A gets the ReLU
        sc = y[:, cmid:].reshape(hs, wp, cout)             # path B: conv+BN only
    else:
        y1 = jnp.maximum(y, 0.0)
        sc = x_ref[0].astype(jnp.float32)                  # identity (Cin == Cout)
    y1 = y1.astype(cdt).reshape(hs, wp, cmid)

    # ---- layer 2: 3x3 VALID conv as accumulating dots (no materialized im2col)
    acc = jnp.zeros((hi * wi, cmid), jnp.float32)
    if group_kw:
        # 3 dots with K = 3*Cmid (fills the 256-deep v6e/v7x MXU better).
        for kh in range(3):
            cols = jnp.concatenate(
                [y1[kh:kh + hi, kw:kw + wi, :] for kw in range(3)],
                axis=-1).reshape(hi * wi, 3 * cmid)
            acc = acc + jnp.dot(cols, w2_ref[kh * 3 * cmid:(kh + 1) * 3 * cmid, :],
                                preferred_element_type=jnp.float32)
    else:
        # 9 single-tap dots with K = Cmid (v5e: 128-deep MXU, minimal copy traffic).
        for kh in range(3):
            for kw in range(3):
                t = kh * 3 + kw
                tap = y1[kh:kh + hi, kw:kw + wi, :].reshape(hi * wi, cmid)
                acc = acc + jnp.dot(tap, w2_ref[t * cmid:(t + 1) * cmid, :],
                                    preferred_element_type=jnp.float32)
    y2 = jnp.maximum(acc + b2_ref[...], 0.0).astype(cdt)

    # ---- layer 3: 1x1 conv WITHOUT its bias (bias is added to the full tile below)
    y3 = jnp.dot(y2, w3_ref[...], preferred_element_type=jnp.float32)
    y3 = y3.reshape(hi, wi, cout)

    # Zero-embed the interior into the full (Hs, Wp) tile.  The padding=1 border
    # of the last 1x1 conv is exactly the folded bias b3 (zero embed + broadcast
    # bias reproduces it); pad columns >= ws_true are garbage and sliced off by
    # the wrapper.
    zc_l = jnp.zeros((hi, 1, cout), jnp.float32)
    zc_r = jnp.zeros((hi, wp - 1 - wi, cout), jnp.float32)
    zrow = jnp.zeros((1, wp, cout), jnp.float32)
    y3_emb = jnp.concatenate([zc_l, y3, zc_r], axis=1)     # (hi, wp, cout)
    y3_emb = jnp.concatenate([zrow, y3_emb, zrow], axis=0)  # (hs, wp, cout)

    # ---- single aligned full-tile store: relu(path_A + path_B)
    o_ref[0] = jnp.maximum(y3_emb + b3_ref[...] + sc, 0.0).astype(o_ref.dtype)


# ----------------------------- block wrapper --------------------------------

@functools.lru_cache(maxsize=None)
def _compiler_params():
    kwargs = dict(dimension_semantics=("parallel",))
    try:
        cap = getattr(pltpu.get_tpu_info(), "vmem_capacity_bytes", 0)
        if cap:
            # ~7/8 of physical VMEM: ~112 MiB on v5e/v6e, ~56 MiB on v7x.
            kwargs["vmem_limit_bytes"] = min(int(cap * 7 // 8), 112 * 1024 * 1024)
    except Exception:
        pass  # leave the compiler default if the query is unavailable
    return pltpu.CompilerParams(**kwargs)


def bottleneck_pallas(x_nhwc, folded, *, has_proj, ws_true, group_kw=False):
    """One BottleneckD block. x_nhwc: (N, Hs, Wp, Cin), Wp a multiple of 8."""
    N, Hs, Wp, Cin = x_nhwc.shape
    cmid = folded["w2"].shape[1]
    Cout = folded["w3"].shape[1]
    c1 = folded["w1"].shape[1]           # Cmid (+ Cout when projection is fused)
    assert Hs >= 3 and 3 <= ws_true <= Wp
    if not has_proj:
        # Identity shortcut silently assumed Cin == Cout before; now checked.
        assert Cin == Cout, (Cin, Cout)

    kernel = functools.partial(_bottleneck_kernel, has_proj=has_proj,
                               ws_true=ws_true, group_kw=group_kw)

    in_specs = [
        pl.BlockSpec((1, Hs, Wp, Cin), lambda n: (n, 0, 0, 0)),
        pl.BlockSpec((Cin, c1), lambda n: (0, 0)),
        pl.BlockSpec((1, c1), lambda n: (0, 0)),
        pl.BlockSpec((9 * cmid, cmid), lambda n: (0, 0)),
        pl.BlockSpec((1, cmid), lambda n: (0, 0)),
        pl.BlockSpec((cmid, Cout), lambda n: (0, 0)),
        pl.BlockSpec((1, Cout), lambda n: (0, 0)),
    ]

    return pl.pallas_call(
        kernel,
        out_shape=jax.ShapeDtypeStruct((N, Hs, Wp, Cout), x_nhwc.dtype),
        grid=(N,),
        in_specs=in_specs,
        out_specs=pl.BlockSpec((1, Hs, Wp, Cout), lambda n: (n, 0, 0, 0)),
        compiler_params=_compiler_params(),
    )(x_nhwc, folded["w1"], folded["b1"], folded["w2"], folded["b2"],
      folded["w3"], folded["b3"])


def stage_d_pallas(x_nchw, stage_folded, *, group_kw=False):
    """StageD forward. x_nchw: (N, Cin_eff, H, W)."""
    x = jnp.transpose(x_nchw, (0, 2, 3, 1))                 # NCHW -> NHWC
    _, stride0, ds0 = stage_folded[0]
    if ds0 and stride0 > 1:
        # stride of the first 1x1 conv == AvgPool2d(1, stride) of the shortcut:
        # one shared subsample, so the kernel never issues strided Ref reads.
        # TODO(synk): fold into the input BlockSpec index_map once a spatial
        #             row-block grid axis exists (saves one HBM round trip of x).
        x = x[:, ::stride0, ::stride0, :]
    ws_true = x.shape[2]
    wp = -(-ws_true // 8) * 8                               # pad W (sublanes) to 8
    if wp != ws_true:
        x = jnp.pad(x, ((0, 0), (0, 0), (0, wp - ws_true), (0, 0)))
    for i, (folded, _stride, ds) in enumerate(stage_folded):
        assert i == 0 or not ds, "only the first StageD block down-samples"
        x = bottleneck_pallas(x, folded, has_proj=ds, ws_true=ws_true,
                              group_kw=group_kw)
    x = x[:, :, :ws_true, :]                                # drop sublane pad
    return jnp.transpose(x, (0, 3, 1, 2))                   # NHWC -> NCHW


# ----------------------------- BN folding ------------------------------------

def _fold_conv_bn(w_oihw, b, bn, eps=_BN_EPS):
    gamma, beta, mean, var = bn
    s = gamma / jnp.sqrt(var + eps)
    return w_oihw * s[:, None, None, None], (b - mean) * s + beta


def fold_block(p, down_sampling, *, compute_dtype=jnp.bfloat16):
    """Fold BN into convs and convert to the kernel's matmul layouts.

    Weights are stored in `compute_dtype` (bf16 feeds the MXU at peak rate);
    biases stay f32 because they are added to the f32 accumulators.
    """
    # Guards for the "padding=1 border == folded bias" trick and the layouts.
    assert p["w1"].shape[2:] == (1, 1) and p["w3"].shape[2:] == (1, 1)
    assert p["w2"].shape[2:] == (3, 3)

    w1, b1 = _fold_conv_bn(p["w1"], p["b1"], p["bn1"])
    w2, b2 = _fold_conv_bn(p["w2"], p["b2"], p["bn2"])
    w3, b3 = _fold_conv_bn(p["w3"], p["b3"], p["bn3"])
    cmid = w2.shape[0]

    w1m = w1[:, :, 0, 0].T                                   # (Cin, Cmid)
    # OIHW -> (kh, kw, cin, cout) -> rows ordered (kh*3+kw)*Cmid + cin.
    w2m = jnp.transpose(w2, (2, 3, 1, 0)).reshape(9 * cmid, cmid)
    w3m = w3[:, :, 0, 0].T                                   # (Cmid, Cout)

    folded = {
        "w2": w2m.astype(compute_dtype),
        "b2": b2.reshape(1, -1).astype(jnp.float32),
        "w3": w3m.astype(compute_dtype),
        "b3": b3.reshape(1, -1).astype(jnp.float32),
    }
    if down_sampling:
        assert p["wb"].shape[2:] == (1, 1)
        wb, bb = _fold_conv_bn(p["wb"], p["bb"], p["bnb"])
        wbm = wb[:, :, 0, 0].T                               # (Cin, Cout)
        # Fuse conv1 and the projection shortcut: one matmul with a shared LHS.
        folded["w1"] = jnp.concatenate([w1m, wbm], axis=1).astype(compute_dtype)
        folded["b1"] = jnp.concatenate([b1, bb]).reshape(1, -1).astype(jnp.float32)
    else:
        folded["w1"] = w1m.astype(compute_dtype)
        folded["b1"] = b1.reshape(1, -1).astype(jnp.float32)
    return folded


# ----------------------------- pure-JAX reference ----------------------------

def _bn_ref(x, bn, eps=_BN_EPS):
    gamma, beta, mean, var = bn
    inv = gamma / jnp.sqrt(var + eps)
    return (x - mean[None, :, None, None]) * inv[None, :, None, None] \
        + beta[None, :, None, None]


def _conv_ref(x, w_oihw, b, stride, padding):
    y = lax.conv_general_dilated(
        x, w_oihw, window_strides=(stride, stride), padding=padding,
        dimension_numbers=("NCHW", "OIHW", "NCHW"))
    return y + b[None, :, None, None]


def bottleneck_ref(x, p, stride, down_sampling):
    a = _conv_ref(x, p["w1"], p["b1"], stride, ((0, 0), (0, 0)))
    a = jax.nn.relu(_bn_ref(a, p["bn1"]))
    a = _conv_ref(a, p["w2"], p["b2"], 1, ((0, 0), (0, 0)))      # 3x3, no pad
    a = jax.nn.relu(_bn_ref(a, p["bn2"]))
    a = _conv_ref(a, p["w3"], p["b3"], 1, ((1, 1), (1, 1)))      # 1x1, pad=1
    a = _bn_ref(a, p["bn3"])
    if down_sampling:
        yb = x[:, :, ::stride, ::stride]                         # AvgPool2d(1, stride)
        yb = _conv_ref(yb, p["wb"], p["bb"], 1, ((0, 0), (0, 0)))
        yb = _bn_ref(yb, p["bnb"])
    else:
        yb = x
    return jax.nn.relu(a + yb)


def stage_d_ref(x, raw_blocks):
    for p, stride, ds in raw_blocks:
        x = bottleneck_ref(x, p, stride, ds)
    return x


# ----------------------------- parameter generation --------------------------

def make_block_params(key, cin, cmid, cout, has_proj):
    ks = jax.random.split(key, 16)

    def conv_w(k, co, ci, kh, kw):
        return 0.1 * jax.random.normal(k, (co, ci, kh, kw), jnp.float32)

    def bn(k, c):
        k1, k2, k3, k4 = jax.random.split(k, 4)
        gamma = 0.5 + jax.random.uniform(k1, (c,), jnp.float32)
        beta = 0.1 * jax.random.normal(k2, (c,), jnp.float32)
        mean = 0.1 * jax.random.normal(k3, (c,), jnp.float32)
        var = 0.5 + jax.random.uniform(k4, (c,), jnp.float32)
        return (gamma, beta, mean, var)

    p = {
        "w1": conv_w(ks[0], cmid, cin, 1, 1),
        "b1": 0.1 * jax.random.normal(ks[1], (cmid,), jnp.float32),
        "bn1": bn(ks[2], cmid),
        "w2": conv_w(ks[3], cmid, cmid, 3, 3),
        "b2": 0.1 * jax.random.normal(ks[4], (cmid,), jnp.float32),
        "bn2": bn(ks[5], cmid),
        "w3": conv_w(ks[6], cout, cmid, 1, 1),
        "b3": 0.1 * jax.random.normal(ks[7], (cout,), jnp.float32),
        "bn3": bn(ks[8], cout),
    }
    if has_proj:
        p["wb"] = conv_w(ks[9], cout, cin, 1, 1)
        p["bb"] = 0.1 * jax.random.normal(ks[10], (cout,), jnp.float32)
        p["bnb"] = bn(ks[11], cout)
    return p


# ----------------------------- main ------------------------------------------

if __name__ == "__main__":
    key = jax.random.PRNGKey(0)

    # StageD(nrof_blocks=2, in_channels=8, out_channels=8, stride=2).
    # H = W = 14 so the post-stride width is 7, exercising the W->8 sublane-pad path.
    nrof_blocks, in_ch, out_ch, stride, expansion = 2, 8, 8, 2, 4
    N, H, W = 2, 14, 14

    keys = jax.random.split(key, nrof_blocks + 1)
    # First (down-sampling) block sees in_channels * stride input channels.
    x = jax.random.normal(keys[0], (N, in_ch * stride, H, W), jnp.float32)

    raw_blocks = [(make_block_params(keys[1], in_ch * stride, out_ch,
                                     out_ch * expansion, True), stride, True)]
    for i in range(1, nrof_blocks):
        raw_blocks.append((make_block_params(keys[1 + i], out_ch * expansion, out_ch,
                                             out_ch * expansion, False), 1, False))

    ref = jax.block_until_ready(stage_d_ref(x, raw_blocks))
    expected_shape = (N, out_ch * expansion, H // stride, W // stride)
    assert ref.shape == expected_shape, ref.shape

    # 1) f32 MXU operands (exact semantics), 9 single-tap conv dots (v5e path).
    folded_f32 = [(fold_block(p, ds, compute_dtype=jnp.float32), s, ds)
                  for (p, s, ds) in raw_blocks]
    out_f32 = jax.block_until_ready(stage_d_pallas(x, folded_f32, group_kw=False))
    assert out_f32.shape == expected_shape, out_f32.shape
    assert jnp.allclose(out_f32, ref, atol=2e-3, rtol=2e-3), \
        float(jnp.max(jnp.abs(out_f32 - ref)))

    # 2) bf16 MXU operands with f32 accumulation, per-kh grouped conv dots
    #    (v6e/v7x fast path); tolerance relaxed for bf16 operand rounding.
    folded_bf16 = [(fold_block(p, ds, compute_dtype=jnp.bfloat16), s, ds)
                   for (p, s, ds) in raw_blocks]
    out_bf16 = jax.block_until_ready(stage_d_pallas(x, folded_bf16, group_kw=True))
    assert out_bf16.shape == expected_shape, out_bf16.shape
    assert jnp.allclose(out_bf16, ref, atol=5e-2, rtol=5e-2), \
        float(jnp.max(jnp.abs(out_bf16 - ref)))

    print("KERNEL_OK")
</pallas_src>

<mosaic_0001>
module attributes {stable_mosaic.version = 11 : i64} {
  func.func @_bottleneck_kernel(%arg0: i32, %arg1: memref<1x7x8x16xf32, #tpu.memory_space<vmem>>, %arg2: memref<16x40xf32, #tpu.memory_space<vmem>>, %arg3: memref<1x40xf32, #tpu.memory_space<vmem>>, %arg4: memref<72x8xf32, #tpu.memory_space<vmem>>, %arg5: memref<1x8xf32, #tpu.memory_space<vmem>>, %arg6: memref<8x32xf32, #tpu.memory_space<vmem>>, %arg7: memref<1x32xf32, #tpu.memory_space<vmem>>, %arg8: memref<1x7x8x32xf32, #tpu.memory_space<vmem>>) attributes {dimension_semantics = [#tpu.dimension_semantics<parallel>], iteration_bounds = array<i64: 2>, scalar_prefetch = 0 : i64, scratch_operands = 0 : i64, tpu.core_type = #tpu.core_type<tc>, window_params = [{transform_indices = @transform_0, window_bounds = array<i64: 1, 7, 8, 16>}, {pipeline_mode = #tpu.pipeline_mode<synchronous>, transform_indices = @transform_1, window_bounds = array<i64: 16, 40>}, {pipeline_mode = #tpu.pipeline_mode<synchronous>, transform_indices = @transform_2, window_bounds = array<i64: 1, 40>}, {pipeline_mode = #tpu.pipeline_mode<synchronous>, transform_indices = @transform_3, window_bounds = array<i64: 72, 8>}, {pipeline_mode = #tpu.pipeline_mode<synchronous>, transform_indices = @transform_4, window_bounds = array<i64: 1, 8>}, {pipeline_mode = #tpu.pipeline_mode<synchronous>, transform_indices = @transform_5, window_bounds = array<i64: 8, 32>}, {pipeline_mode = #tpu.pipeline_mode<synchronous>, transform_indices = @transform_6, window_bounds = array<i64: 1, 32>}, {transform_indices = @transform_7, window_bounds = array<i64: 1, 7, 8, 32>}]} {
    %c0 = arith.constant 0 : index
    %c0_0 = arith.constant 0 : index
    %c0_1 = arith.constant 0 : index
    %c0_2 = arith.constant 0 : index
    %0 = vector.load %arg1[%c0, %c0_0, %c0_1, %c0_2] : memref<1x7x8x16xf32, #tpu.memory_space<vmem>>, vector<1x7x8x16xf32>
    %1 = vector.shape_cast %0 : vector<1x7x8x16xf32> to vector<7x8x16xf32>
    %2 = vector.shape_cast %1 : vector<7x8x16xf32> to vector<56x16xf32>
    %c0_3 = arith.constant 0 : index
    %c0_4 = arith.constant 0 : index
    %3 = vector.load %arg2[%c0_3, %c0_4] : memref<16x40xf32, #tpu.memory_space<vmem>>, vector<16x40xf32>
    %cst = arith.constant dense<0.000000e+00> : vector<56x40xf32>
    %4 = tpu.matmul %2, %3, %cst {dimension_numbers = #tpu.dot_dimension_numbers<[1], [0], [0], [1], [0, 0, 1, 1], [], []>} : vector<56x16xf32>, vector<16x40xf32>, vector<56x40xf32> -> vector<56x40xf32>
    %c0_5 = arith.constant 0 : index
    %c0_6 = arith.constant 0 : index
    %5 = vector.load %arg3[%c0_5, %c0_6] : memref<1x40xf32, #tpu.memory_space<vmem>>, vector<1x40xf32>
    %6 = vector.broadcast %5 : vector<1x40xf32> to vector<56x40xf32>
    %7 = arith.addf %4, %6 : vector<56x40xf32>
    %8 = vector.extract_strided_slice %7 {offsets = [0, 0], sizes = [56, 8], strides = [1, 1]} : vector<56x40xf32> to vector<56x8xf32>
    %cst_7 = arith.constant 0.000000e+00 : f32
    %9 = vector.broadcast %cst_7 : f32 to vector<56x8xf32>
    %10 = arith.maximumf %8, %9 : vector<56x8xf32>
    %11 = vector.extract_strided_slice %7 {offsets = [0, 8], sizes = [56, 32], strides = [1, 1]} : vector<56x40xf32> to vector<56x32xf32>
    %12 = vector.shape_cast %11 : vector<56x32xf32> to vector<7x8x32xf32>
    %13 = vector.shape_cast %10 : vector<56x8xf32> to vector<7x8x8xf32>
    %cst_8 = arith.constant 0.000000e+00 : f32
    %14 = vector.broadcast %cst_8 : f32 to vector<25x8xf32>
    %15 = vector.extract_strided_slice %13 {offsets = [0, 0, 0], sizes = [5, 5, 8], strides = [1, 1, 1]} : vector<7x8x8xf32> to vector<5x5x8xf32>
    %16 = vector.shape_cast %15 : vector<5x5x8xf32> to vector<25x8xf32>
    %c0_9 = arith.constant 0 : index
    %c0_10 = arith.constant 0 : index
    %17 = vector.load %arg4[%c0_9, %c0_10] : memref<72x8xf32, #tpu.memory_space<vmem>>, vector<8x8xf32>
    %cst_11 = arith.constant dense<0.000000e+00> : vector<25x8xf32>
    %18 = tpu.matmul %16, %17, %cst_11 {dimension_numbers = #tpu.dot_dimension_numbers<[1], [0], [0], [1], [0, 0, 1, 1], [], []>} : vector<25x8xf32>, vector<8x8xf32>, vector<25x8xf32> -> vector<25x8xf32>
    %19 = arith.addf %14, %18 : vector<25x8xf32>
    %20 = vector.extract_strided_slice %13 {offsets = [0, 1, 0], sizes = [5, 5, 8], strides = [1, 1, 1]} : vector<7x8x8xf32> to vector<5x5x8xf32>
    %21 = vector.shape_cast %20 : vector<5x5x8xf32> to vector<25x8xf32>
    %c8 = arith.constant 8 : index
    %c0_12 = arith.constant 0 : index
    %22 = vector.load %arg4[%c8, %c0_12] : memref<72x8xf32, #tpu.memory_space<vmem>>, vector<8x8xf32>
    %cst_13 = arith.constant dense<0.000000e+00> : vector<25x8xf32>
    %23 = tpu.matmul %21, %22, %cst_13 {dimension_numbers = #tpu.dot_dimension_numbers<[1], [0], [0], [1], [0, 0, 1, 1], [], []>} : vector<25x8xf32>, vector<8x8xf32>, vector<25x8xf32> -> vector<25x8xf32>
    %24 = arith.addf %19, %23 : vector<25x8xf32>
    %25 = vector.extract_strided_slice %13 {offsets = [0, 2, 0], sizes = [5, 5, 8], strides = [1, 1, 1]} : vector<7x8x8xf32> to vector<5x5x8xf32>
    %26 = vector.shape_cast %25 : vector<5x5x8xf32> to vector<25x8xf32>
    %c16 = arith.constant 16 : index
    %c0_14 = arith.constant 0 : index
    %27 = vector.load %arg4[%c16, %c0_14] : memref<72x8xf32, #tpu.memory_space<vmem>>, vector<8x8xf32>
    %cst_15 = arith.constant dense<0.000000e+00> : vector<25x8xf32>
    %28 = tpu.matmul %26, %27, %cst_15 {dimension_numbers = #tpu.dot_dimension_numbers<[1], [0], [0], [1], [0, 0, 1, 1], [], []>} : vector<25x8xf32>, vector<8x8xf32>, vector<25x8xf32> -> vector<25x8xf32>
    %29 = arith.addf %24, %28 : vector<25x8xf32>
    %30 = vector.extract_strided_slice %13 {offsets = [1, 0, 0], sizes = [5, 5, 8], strides = [1, 1, 1]} : vector<7x8x8xf32> to vector<5x5x8xf32>
    %31 = vector.shape_cast %30 : vector<5x5x8xf32> to vector<25x8xf32>
    %c24 = arith.constant 24 : index
    %c0_16 = arith.constant 0 : index
    %32 = vector.load %arg4[%c24, %c0_16] : memref<72x8xf32, #tpu.memory_space<vmem>>, vector<8x8xf32>
    %cst_17 = arith.constant dense<0.000000e+00> : vector<25x8xf32>
    %33 = tpu.matmul %31, %32, %cst_17 {dimension_numbers = #tpu.dot_dimension_numbers<[1], [0], [0], [1], [0, 0, 1, 1], [], []>} : vector<25x8xf32>, vector<8x8xf32>, vector<25x8xf32> -> vector<25x8xf32>
    %34 = arith.addf %29, %33 : vector<25x8xf32>
    %35 = vector.extract_strided_slice %13 {offsets = [1, 1, 0], sizes = [5, 5, 8], strides = [1, 1, 1]} : vector<7x8x8xf32> to vector<5x5x8xf32>
    %36 = vector.shape_cast %35 : vector<5x5x8xf32> to vector<25x8xf32>
    %c32 = arith.constant 32 : index
    %c0_18 = arith.constant 0 : index
    %37 = vector.load %arg4[%c32, %c0_18] : memref<72x8xf32, #tpu.memory_space<vmem>>, vector<8x8xf32>
    %cst_19 = arith.constant dense<0.000000e+00> : vector<25x8xf32>
    %38 = tpu.matmul %36, %37, %cst_19 {dimension_numbers = #tpu.dot_dimension_numbers<[1], [0], [0], [1], [0, 0, 1, 1], [], []>} : vector<25x8xf32>, vector<8x8xf32>, vector<25x8xf32> -> vector<25x8xf32>
    %39 = arith.addf %34, %38 : vector<25x8xf32>
    %40 = vector.extract_strided_slice %13 {offsets = [1, 2, 0], sizes = [5, 5, 8], strides = [1, 1, 1]} : vector<7x8x8xf32> to vector<5x5x8xf32>
    %41 = vector.shape_cast %40 : vector<5x5x8xf32> to vector<25x8xf32>
    %c40 = arith.constant 40 : index
    %c0_20 = arith.constant 0 : index
    %42 = vector.load %arg4[%c40, %c0_20] : memref<72x8xf32, #tpu.memory_space<vmem>>, vector<8x8xf32>
    %cst_21 = arith.constant dense<0.000000e+00> : vector<25x8xf32>
    %43 = tpu.matmul %41, %42, %cst_21 {dimension_numbers = #tpu.dot_dimension_numbers<[1], [0], [0], [1], [0, 0, 1, 1], [], []>} : vector<25x8xf32>, vector<8x8xf32>, vector<25x8xf32> -> vector<25x8xf32>
    %44 = arith.addf %39, %43 : vector<25x8xf32>
    %45 = vector.extract_strided_slice %13 {offsets = [2, 0, 0], sizes = [5, 5, 8], strides = [1, 1, 1]} : vector<7x8x8xf32> to vector<5x5x8xf32>
    %46 = vector.shape_cast %45 : vector<5x5x8xf32> to vector<25x8xf32>
    %c48 = arith.constant 48 : index
    %c0_22 = arith.constant 0 : index
    %47 = vector.load %arg4[%c48, %c0_22] : memref<72x8xf32, #tpu.memory_space<vmem>>, vector<8x8xf32>
    %cst_23 = arith.constant dense<0.000000e+00> : vector<25x8xf32>
    %48 = tpu.matmul %46, %47, %cst_23 {dimension_numbers = #tpu.dot_dimension_numbers<[1], [0], [0], [1], [0, 0, 1, 1], [], []>} : vector<25x8xf32>, vector<8x8xf32>, vector<25x8xf32> -> vector<25x8xf32>
    %49 = arith.addf %44, %48 : vector<25x8xf32>
    %50 = vector.extract_strided_slice %13 {offsets = [2, 1, 0], sizes = [5, 5, 8], strides = [1, 1, 1]} : vector<7x8x8xf32> to vector<5x5x8xf32>
    %51 = vector.shape_cast %50 : vector<5x5x8xf32> to vector<25x8xf32>
    %c56 = arith.constant 56 : index
    %c0_24 = arith.constant 0 : index
    %52 = vector.load %arg4[%c56, %c0_24] : memref<72x8xf32, #tpu.memory_space<vmem>>, vector<8x8xf32>
    %cst_25 = arith.constant dense<0.000000e+00> : vector<25x8xf32>
    %53 = tpu.matmul %51, %52, %cst_25 {dimension_numbers = #tpu.dot_dimension_numbers<[1], [0], [0], [1], [0, 0, 1, 1], [], []>} : vector<25x8xf32>, vector<8x8xf32>, vector<25x8xf32> -> vector<25x8xf32>
    %54 = arith.addf %49, %53 : vector<25x8xf32>
    %55 = vector.extract_strided_slice %13 {offsets = [2, 2, 0], sizes = [5, 5, 8], strides = [1, 1, 1]} : vector<7x8x8xf32> to vector<5x5x8xf32>
    %56 = vector.shape_cast %55 : vector<5x5x8xf32> to vector<25x8xf32>
    %c64 = arith.constant 64 : index
    %c0_26 = arith.constant 0 : index
    %57 = vector.load %arg4[%c64, %c0_26] : memref<72x8xf32, #tpu.memory_space<vmem>>, vector<8x8xf32>
    %cst_27 = arith.constant dense<0.000000e+00> : vector<25x8xf32>
    %58 = tpu.matmul %56, %57, %cst_27 {dimension_numbers = #tpu.dot_dimension_numbers<[1], [0], [0], [1], [0, 0, 1, 1], [], []>} : vector<25x8xf32>, vector<8x8xf32>, vector<25x8xf32> -> vector<25x8xf32>
    %59 = arith.addf %54, %58 : vector<25x8xf32>
    %c0_28 = arith.constant 0 : index
    %c0_29 = arith.constant 0 : index
    %60 = vector.load %arg5[%c0_28, %c0_29] : memref<1x8xf32, #tpu.memory_space<vmem>>, vector<1x8xf32>
    %61 = vector.broadcast %60 : vector<1x8xf32> to vector<25x8xf32>
    %62 = arith.addf %59, %61 : vector<25x8xf32>
    %cst_30 = arith.constant 0.000000e+00 : f32
    %63 = vector.broadcast %cst_30 : f32 to vector<25x8xf32>
    %64 = arith.maximumf %62, %63 : vector<25x8xf32>
    %c0_31 = arith.constant 0 : index
    %c0_32 = arith.constant 0 : index
    %65 = vector.load %arg6[%c0_31, %c0_32] : memref<8x32xf32, #tpu.memory_space<vmem>>, vector<8x32xf32>
    %cst_33 = arith.constant dense<0.000000e+00> : vector<25x32xf32>
    %66 = tpu.matmul %64, %65, %cst_33 {dimension_numbers = #tpu.dot_dimension_numbers<[1], [0], [0], [1], [0, 0, 1, 1], [], []>} : vector<25x8xf32>, vector<8x32xf32>, vector<25x32xf32> -> vector<25x32xf32>
    %67 = vector.shape_cast %66 : vector<25x32xf32> to vector<5x5x32xf32>
    %cst_34 = arith.constant 0.000000e+00 : f32
    %68 = vector.broadcast %cst_34 : f32 to vector<5x1x32xf32>
    %cst_35 = arith.constant 0.000000e+00 : f32
    %69 = vector.broadcast %cst_35 : f32 to vector<5x2x32xf32>
    %cst_36 = arith.constant 0.000000e+00 : f32
    %70 = vector.broadcast %cst_36 : f32 to vector<1x8x32xf32>
    %71 = tpu.concatenate %68, %67, %69 in 1 : vector<5x1x32xf32>, vector<5x5x32xf32>, vector<5x2x32xf32> -> vector<5x8x32xf32>
    %72 = tpu.concatenate %70, %71, %70 in 0 : vector<1x8x32xf32>, vector<5x8x32xf32>, vector<1x8x32xf32> -> vector<7x8x32xf32>
    %c0_37 = arith.constant 0 : index
    %c0_38 = arith.constant 0 : index
    %73 = vector.load %arg7[%c0_37, %c0_38] : memref<1x32xf32, #tpu.memory_space<vmem>>, vector<1x32xf32>
    %74 = vector.shape_cast %73 : vector<1x32xf32> to vector<1x1x32xf32>
    %75 = vector.broadcast %74 : vector<1x1x32xf32> to vector<7x8x32xf32>
    %76 = arith.addf %72, %75 : vector<7x8x32xf32>
    %77 = arith.addf %76, %12 : vector<7x8x32xf32>
    %cst_39 = arith.constant 0.000000e+00 : f32
    %78 = vector.broadcast %cst_39 : f32 to vector<7x8x32xf32>
    %79 = arith.maximumf %77, %78 : vector<7x8x32xf32>
    %c0_40 = arith.constant 0 : index
    %c0_41 = arith.constant 0 : index
    %c0_42 = arith.constant 0 : index
    %c0_43 = arith.constant 0 : index
    %80 = vector.load %arg8[%c0_40, %c0_41, %c0_42, %c0_43] : memref<1x7x8x32xf32, #tpu.memory_space<vmem>>, vector<1x7x8x32xf32>
    %81 = vector.shape_cast %80 : vector<1x7x8x32xf32> to vector<7x8x32xf32>
    %82 = vector.shape_cast %79 : vector<7x8x32xf32> to vector<1x7x8x32xf32>
    tpu.vector_store %arg8[%c0_40, %c0_41, %c0_42, %c0_43], %82 {strides = array<i32>} : memref<1x7x8x32xf32, #tpu.memory_space<vmem>>, vector<1x7x8x32xf32>,
    return
  }
  func.func @transform_0(%arg0: i32) -> (i32, i32, i32, i32) {
    %c0_i32 = arith.constant 0 : i32
    %c0_i32_0 = arith.constant 0 : i32
    %c0_i32_1 = arith.constant 0 : i32
    %c0_i32_2 = arith.constant 0 : i32
    return %arg0, %c0_i32, %c0_i32_0, %c0_i32_1 : i32, i32, i32, i32
  }
  func.func @transform_1(%arg0: i32) -> (i32, i32) {
    %c0_i32 = arith.constant 0 : i32
    %c0_i32_0 = arith.constant 0 : i32
    %c0_i32_1 = arith.constant 0 : i32
    return %c0_i32, %c0_i32_0 : i32, i32
  }
  func.func @transform_2(%arg0: i32) -> (i32, i32) {
    %c0_i32 = arith.constant 0 : i32
    %c0_i32_0 = arith.constant 0 : i32
    %c0_i32_1 = arith.constant 0 : i32
    return %c0_i32, %c0_i32_0 : i32, i32
  }
  func.func @transform_3(%arg0: i32) -> (i32, i32) {
    %c0_i32 = arith.constant 0 : i32
    %c0_i32_0 = arith.constant 0 : i32
    %c0_i32_1 = arith.constant 0 : i32
    return %c0_i32, %c0_i32_0 : i32, i32
  }
  func.func @transform_4(%arg0: i32) -> (i32, i32) {
    %c0_i32 = arith.constant 0 : i32
    %c0_i32_0 = arith.constant 0 : i32
    %c0_i32_1 = arith.constant 0 : i32
    return %c0_i32, %c0_i32_0 : i32, i32
  }
  func.func @transform_5(%arg0: i32) -> (i32, i32) {
    %c0_i32 = arith.constant 0 : i32
    %c0_i32_0 = arith.constant 0 : i32
    %c0_i32_1 = arith.constant 0 : i32
    return %c0_i32, %c0_i32_0 : i32, i32
  }
  func.func @transform_6(%arg0: i32) -> (i32, i32) {
    %c0_i32 = arith.constant 0 : i32
    %c0_i32_0 = arith.constant 0 : i32
    %c0_i32_1 = arith.constant 0 : i32
    return %c0_i32, %c0_i32_0 : i32, i32
  }
  func.func @transform_7(%arg0: i32) -> (i32, i32, i32, i32) {
    %c0_i32 = arith.constant 0 : i32
    %c0_i32_0 = arith.constant 0 : i32
    %c0_i32_1 = arith.constant 0 : i32
    %c0_i32_2 = arith.constant 0 : i32
    return %arg0, %c0_i32, %c0_i32_0, %c0_i32_1 : i32, i32, i32, i32
  }
}

</mosaic_0001>

<llo_original>
// kernel: tpu_custom_call.1
$region0: #{tpu_custom_call.1}
  #allocation0 [shape = 'u32[]', space=smem, size = 0x4, offset = 0x4, fixed_abs, tag = 'smem constant byte address 0x4 - core index']
  #allocation1 [shape = 'u32[144,128]{1,0:T(1,128)}', space=vmem, size = 0x12000, scoped, tag = 'internal scratch']
  %s0 = inlined_call_operand.hbm [shape: f32[2,7,8,16], index: 0, kind: input, shape index: {}]
  %s1 = inlined_call_operand.vmem [shape: f32[16,40], index: 1, kind: input, shape index: {}]
  %s2 = inlined_call_operand.vmem [shape: f32[1,40], index: 2, kind: input, shape index: {}]
  %s3 = inlined_call_operand.vmem [shape: f32[72,8], index: 3, kind: input, shape index: {}]
  %s4 = inlined_call_operand.vmem [shape: f32[1,8], index: 4, kind: input, shape index: {}]
  %s5 = inlined_call_operand.vmem [shape: f32[8,32], index: 5, kind: input, shape index: {}]
  %s6 = inlined_call_operand.vmem [shape: f32[1,32], index: 6, kind: input, shape index: {}]
  %s7 = inlined_call_operand.hbm [shape: f32[2,7,8,32], index: 7, kind: output, shape index: {}]
  %s8 = sld [smem:[#allocation0]]
  $region65: #{tpu_custom_call.1} parent=0
    _
  %s10 = ssub.s32 1, %s8
  %s11 = scalar_select 0, %s10, %s8
  $region1: #{tpu_custom_call.1} parent=0
    #allocation2 [shape = 'u8[57344]{0}', space=vmem, size = 0xe000, scoped, tag = 'input window, operand 0']
    #allocation3 [shape = 's32[2]{0}', space=sflag, size = 0x8, scoped, tag = 'scoped memory for tpu_custom_call.1']
    #allocation4 [shape = 's32[2]{0}', space=sflag, size = 0x8, scoped, tag = 'scoped memory for tpu_custom_call.1']
    #allocation5 [shape = 'u8[57344]{0}', space=vmem, size = 0xe000, scoped, tag = 'output window, operand 0']
    %12 = vsyncpa [#allocation3], 0
    %s13 = scalar_lea.sflag [#allocation3], 1
    %14 = vsyncpa %s13, 0
    %15 = vsyncpa [#allocation4], 0
    %s16 = scalar_lea.sflag [#allocation4], 1
    %17 = vsyncpa %s16, 0
    loop: start=0, step=1, limit=4
    $region2: #{tpu_custom_call.1} parent=1 // loop_pre_header
      _
    $region3: #{tpu_custom_call.1} parent=1 // loop_header
      %s19 = sphi 0, %s23
      %p20 = scmp.ge.s32.totalorder %s19, 4
      %s29 = sphi 0, %s31
      %s32 = sphi 0, %s29
      %s33 = sphi 0, %s32
      %s49 = sphi 0, %s33
      %s53 = sphi 0, %s53
      %s55 = sphi 0, %s53
      %s56 = sphi 0, %s55
      %s70 = sphi 0, %s56
      %s74 = sphi 0, %s74
      %s76 = sphi 0, %s74
      %s77 = sphi 0, %s76
      %s91 = sphi 0, %s77
      %s95 = sphi 0, %s95
      %s97 = sphi 0, %s95
      %s98 = sphi 0, %s97
      %s112 = sphi 0, %s98
      %s116 = sphi 0, %s116
      %s118 = sphi 0, %s116
      %s119 = sphi 0, %s118
      %s133 = sphi 0, %s119
      %s137 = sphi 0, %s137
      %s139 = sphi 0, %s137
      %s140 = sphi 0, %s139
      %s154 = sphi 0, %s140
      %s158 = sphi 0, %s158
      %s160 = sphi 0, %s158
      %s161 = sphi 0, %s160
      %s175 = sphi 0, %s161
      %s181 = sphi 0, %s183
      %s184 = sphi 0, %s181
      %s185 = sphi 0, %s184
      %s201 = sphi 0, %s185
    $region4: #{tpu_custom_call.1} parent=1 // loop_header_branch
      %22 = sbr.rel (%p20) target = $region8
    $region5: #{tpu_custom_call.1} parent=1 // loop_body
      %s24 = ssub.s32 %s19, 1
      %s25 = ssub.s32 %s19, 2
      %s26 = sadd.s32 %s19, 1
      %s27 = ssub.s32 %s19, %s26
      %p28 = scmp.eq.s32.totalorder %s27, 0
      %s30 = sadd.s32 %s29, 1
      %s31 = scalar_select %p28, %s29, %s30
      %p34 = pneg %p28
      %p35 = scmp.eq.s32.totalorder %s19, 1
      %p36 = por %p34, %p35
      %p37 = scmp.ne.s32.totalorder %s29, %s32
      %p38 = scmp.eq.s32.totalorder %s19, 0
      %p39 = por %p37, %p38
      %p40 = scmp.ne.s32.totalorder %s29, %s32
      %p41 = scmp.eq.s32.totalorder %s24, 1
      %p42 = por %p40, %p41
      %p43 = scmp.ne.s32.totalorder %s32, %s33
      %p44 = scmp.eq.s32.totalorder %s24, 0
      %p45 = por %p43, %p44
      %p46 = scmp.ne.s32.totalorder %s32, %s33
      %p47 = scmp.eq.s32.totalorder %s25, 1
      %p48 = por %p46, %p47
      %p50 = scmp.ne.s32.totalorder %s33, %s49
      %p51 = scmp.eq.s32.totalorder %s25, 0
      %p52 = por %p50, %p51
      %s54 = sadd.s32 %s53, 1
      %p57 = scmp.eq.s32.totalorder %s19, 1
      %p58 = scmp.ne.s32.totalorder %s53, %s55
      %p59 = scmp.eq.s32.totalorder %s19, 0
      %p60 = por %p58, %p59
      %p61 = scmp.ne.s32.totalorder %s53, %s55
      %p62 = scmp.eq.s32.totalorder %s24, 1
      %p63 = por %p61, %p62
      %p64 = scmp.ne.s32.totalorder %s55, %s56
      %p65 = scmp.eq.s32.totalorder %s24, 0
      %p66 = por %p64, %p65
      %p67 = scmp.ne.s32.totalorder %s55, %s56
      %p68 = scmp.eq.s32.totalorder %s25, 1
      %p69 = por %p67, %p68
      %p71 = scmp.ne.s32.totalorder %s56, %s70
      %p72 = scmp.eq.s32.totalorder %s25, 0
      %p73 = por %p71, %p72
      %s75 = sadd.s32 %s74, 1
      %p78 = scmp.eq.s32.totalorder %s19, 1
      %p79 = scmp.ne.s32.totalorder %s74, %s76
      %p80 = scmp.eq.s32.totalorder %s19, 0
      %p81 = por %p79, %p80
      %p82 = scmp.ne.s32.totalorder %s74, %s76
      %p83 = scmp.eq.s32.totalorder %s24, 1
      %p84 = por %p82, %p83
      %p85 = scmp.ne.s32.totalorder %s76, %s77
      %p86 = scmp.eq.s32.totalorder %s24, 0
      %p87 = por %p85, %p86
      %p88 = scmp.ne.s32.totalorder %s76, %s77
      %p89 = scmp.eq.s32.totalorder %s25, 1
      %p90 = por %p88, %p89
      %p92 = scmp.ne.s32.totalorder %s77, %s91
      %p93 = scmp.eq.s32.totalorder %s25, 0
      %p94 = por %p92, %p93
      %s96 = sadd.s32 %s95, 1
      %p99 = scmp.eq.s32.totalorder %s19, 1
      %p100 = scmp.ne.s32.totalorder %s95, %s97
      %p101 = scmp.eq.s32.totalorder %s19, 0
      %p102 = por %p100, %p101
      %p103 = scmp.ne.s32.totalorder %s95, %s97
      %p104 = scmp.eq.s32.totalorder %s24, 1
      %p105 = por %p103, %p104
      %p106 = scmp.ne.s32.totalorder %s97, %s98
      %p107 = scmp.eq.s32.totalorder %s24, 0
      %p108 = por %p106, %p107
      %p109 = scmp.ne.s32.totalorder %s97, %s98
      %p110 = scmp.eq.s32.totalorder %s25, 1
      %p111 = por %p109, %p110
      %p113 = scmp.ne.s32.totalorder %s98, %s112
      %p114 = scmp.eq.s32.totalorder %s25, 0
      %p115 = por %p113, %p114
      %s117 = sadd.s32 %s116, 1
      %p120 = scmp.eq.s32.totalorder %s19, 1
      %p121 = scmp.ne.s32.totalorder %s116, %s118
      %p122 = scmp.eq.s32.totalorder %s19, 0
      %p123 = por %p121, %p122
      %p124 = scmp.ne.s32.totalorder %s116, %s118
      %p125 = scmp.eq.s32.totalorder %s24, 1
      %p126 = por %p124, %p125
      %p127 = scmp.ne.s32.totalorder %s118, %s119
      %p128 = scmp.eq.s32.totalorder %s24, 0
      %p129 = por %p127, %p128
      %p130 = scmp.ne.s32.totalorder %s118, %s119
      %p131 = scmp.eq.s32.totalorder %s25, 1
      %p132 = por %p130, %p131
      %p134 = scmp.ne.s32.totalorder %s119, %s133
      %p135 = scmp.eq.s32.totalorder %s25, 0
      %p136 = por %p134, %p135
      %s138 = sadd.s32 %s137, 1
      %p141 = scmp.eq.s32.totalorder %s19, 1
      %p142 = scmp.ne.s32.totalorder %s137, %s139
      %p143 = scmp.eq.s32.totalorder %s19, 0
      %p144 = por %p142, %p143
      %p145 = scmp.ne.s32.totalorder %s137, %s139
      %p146 = scmp.eq.s32.totalorder %s24, 1
      %p147 = por %p145, %p146
      %p148 = scmp.ne.s32.totalorder %s139, %s140
      %p149 = scmp.eq.s32.totalorder %s24, 0
      %p150 = por %p148, %p149
      %p151 = scmp.ne.s32.totalorder %s139, %s140
      %p152 = scmp.eq.s32.totalorder %s25, 1
      %p153 = por %p151, %p152
      %p155 = scmp.ne.s32.totalorder %s140, %s154
      %p156 = scmp.eq.s32.totalorder %s25, 0
      %p157 = por %p155, %p156
      %s159 = sadd.s32 %s158, 1
      %p162 = scmp.eq.s32.totalorder %s19, 1
      %p163 = scmp.ne.s32.totalorder %s158, %s160
      %p164 = scmp.eq.s32.totalorder %s19, 0
      %p165 = por %p163, %p164
      %p166 = scmp.ne.s32.totalorder %s158, %s160
      %p167 = scmp.eq.s32.totalorder %s24, 1
      %p168 = por %p166, %p167
      %p169 = scmp.ne.s32.totalorder %s160, %s161
      %p170 = scmp.eq.s32.totalorder %s24, 0
      %p171 = por %p169, %p170
      %p172 = scmp.ne.s32.totalorder %s160, %s161
      %p173 = scmp.eq.s32.totalorder %s25, 1
      %p174 = por %p172, %p173
      %p176 = scmp.ne.s32.totalorder %s161, %s175
      %p177 = scmp.eq.s32.totalorder %s25, 0
      %p178 = por %p176, %p177
      %s179 = ssub.s32 %s19, %s26
      %p180 = scmp.eq.s32.totalorder %s179, 0
      %s182 = sadd.s32 %s181, 1
      %s183 = scalar_select %p180, %s181, %s182
      %p186 = pneg %p180
      %p187 = scmp.eq.s32.totalorder %s19, 1
      %p188 = por %p186, %p187
      %p189 = scmp.ne.s32.totalorder %s181, %s184
      %p190 = scmp.eq.s32.totalorder %s19, 0
      %p191 = por %p189, %p190
      %p192 = scmp.ne.s32.totalorder %s181, %s184
      %p193 = scmp.eq.s32.totalorder %s24, 1
      %p194 = por %p192, %p193
      %p195 = scmp.ne.s32.totalorder %s184, %s185
      %p196 = scmp.eq.s32.totalorder %s24, 0
      %p197 = por %p195, %p196
      %p198 = scmp.ne.s32.totalorder %s184, %s185
      %p199 = scmp.eq.s32.totalorder %s25, 1
      %p200 = por %p198, %p199
      %p202 = scmp.ne.s32.totalorder %s185, %s201
      %p203 = scmp.eq.s32.totalorder %s25, 0
      %p204 = por %p202, %p203
      %p205 = scmp.le.s32.totalorder 1, %s19
      %p206 = scmp.lt.s32.totalorder %s19, 3
      %p207 = pnand %p205, %p206
      %p208 = pneg %p207
      // Predicated region
      $region9: #{tpu_custom_call.1} parent=5 // pred_check
        _
      $region10: #{tpu_custom_call.1} parent=5 // pred_check_branch
        %210 = sbr.rel (%p207) target = $region12
      $region11: #{tpu_custom_call.1} parent=5 // pred_region
        %s211 = ssub.s32 %s19, 1
        // Predicated region
        $region13: #{tpu_custom_call.1} parent=11 // pred_check
          %p212 = pneg %p66
        $region14: #{tpu_custom_call.1} parent=11 // pred_check_branch
          %214 = sbr.rel (%p212) target = $region16
        $region15: #{tpu_custom_call.1} parent=11 // pred_region
          _
        $region16: #{tpu_custom_call.1} parent=11 // pred_fallthru
          _
        // Predicated region
        $region17: #{tpu_custom_call.1} parent=11 // pred_check
          %p215 = pneg %p87
        $region18: #{tpu_custom_call.1} parent=11 // pred_check_branch
          %217 = sbr.rel (%p215) target = $region20
        $region19: #{tpu_custom_call.1} parent=11 // pred_region
          _
        $region20: #{tpu_custom_call.1} parent=11 // pred_fallthru
          _
        // Predicated region
        $region21: #{tpu_custom_call.1} parent=11 // pred_check
          %p218 = pneg %p108
        $region22: #{tpu_custom_call.1} parent=11 // pred_check_branch
          %220 = sbr.rel (%p218) target = $region24
        $region23: #{tpu_custom_call.1} parent=11 // pred_region
          _
        $region24: #{tpu_custom_call.1} parent=11 // pred_fallthru
          _
        // Predicated region
        $region25: #{tpu_custom_call.1} parent=11 // pred_check
          %p221 = pneg %p129
        $region26: #{tpu_custom_call.1} parent=11 // pred_check_branch
          %223 = sbr.rel (%p221) target = $region28
        $region27: #{tpu_custom_call.1} parent=11 // pred_region
          _
        $region28: #{tpu_custom_call.1} parent=11 // pred_fallthru
          _
        // Predicated region
        $region29: #{tpu_custom_call.1} parent=11 // pred_check
          %p224 = pneg %p150
        $region30: #{tpu_custom_call.1} parent=11 // pred_check_branch
          %226 = sbr.rel (%p224) target = $region32
        $region31: #{tpu_custom_call.1} parent=11 // pred_region
          _
        $region32: #{tpu_custom_call.1} parent=11 // pred_fallthru
          _
        // Predicated region
        $region33: #{tpu_custom_call.1} parent=11 // pred_check
          %p227 = pneg %p171
        $region34: #{tpu_custom_call.1} parent=11 // pred_check_branch
          %229 = sbr.rel (%p227) target = $region36
        $region35: #{tpu_custom_call.1} parent=11 // pred_region
          _
        $region36: #{tpu_custom_call.1} parent=11 // pred_fallthru
          _
      $region12: #{tpu_custom_call.1} parent=5 // pred_fallthru
        _
      %p230 = scmp.lt.s32.totalorder %s19, 2
      // Predicated region
      $region37: #{tpu_custom_call.1} parent=5 // pred_check
        %p231 = pneg %p230
      $region38: #{tpu_custom_call.1} parent=5 // pred_check_branch
        %233 = sbr.rel (%p231) target = $region40
      $region39: #{tpu_custom_call.1} parent=5 // pred_region
        // Predicated region
        $region41: #{tpu_custom_call.1} parent=39 // pred_check
          %p234 = pneg %p39
        $region42: #{tpu_custom_call.1} parent=39 // pred_check_branch
          %236 = sbr.rel (%p234) target = $region44
        $region43: #{tpu_custom_call.1} parent=39 // pred_region
          %s237 = sand.u32 %s29, 1
          %s238 = scalar_lea.sflag [#allocation3], %s237
          %s239 = sand.u32 %s29, 1
          %s240 = smul.addr %s239, 56
          %s241 = scalar_lea.vmem [#allocation2], %s240
          %s243 = ssub.s32 896, 896
          %244 = vsyncadd %s238, %s243
          %s245 = smul.addr %s19, 7
          %s246 = smul.addr %s245, 128
          %s247 = scalar_lea.hbm %s0, %s246
          %s248 = sshll.u32 %s241, 4
          %s249 = int_to_ptr.vmem [resolvable:$true] %s248
          %254 = dma.hbm_to_vmem [thread:$0]  %s247, 896, %s249, %s238, 128, 128, 8
        $region44: #{tpu_custom_call.1} parent=39 // pred_fallthru
          _
      $region40: #{tpu_custom_call.1} parent=5 // pred_fallthru
        _
      %p255 = scmp.le.s32.totalorder 1, %s19
      %p256 = scmp.lt.s32.totalorder %s19, 3
      %p257 = pnand %p255, %p256
      %p258 = pneg %p257
      // Predicated region
      $region45: #{tpu_custom_call.1} parent=5 // pred_check
        _
      $region46: #{tpu_custom_call.1} parent=5 // pred_check_branch
        %260 = sbr.rel (%p257) target = $region48
      $region47: #{tpu_custom_call.1} parent=5 // pred_region
        %s261 = ssub.s32 %s19, 1
        %s262 = sand.u32 %s32, 1
        %s263 = scalar_lea.sflag [#allocation3], %s262
        %s264 = sand.u32 %s32, 1
        %s265 = smul.addr %s264, 56
        %s266 = scalar_lea.vmem [#allocation2], %s265
        // Predicated region
        $region49: #{tpu_custom_call.1} parent=47 // pred_check
          %p267 = pneg %p45
        $region50: #{tpu_custom_call.1} parent=47 // pred_check_branch
          %269 = sbr.rel (%p267) target = $region52
        $region51: #{tpu_custom_call.1} parent=47 // pred_region
          %270 = dma.done %s263, 896
        $region52: #{tpu_custom_call.1} parent=47 // pred_fallthru
          _
        %s271 = sand.u32 %s32, 1
        %s272 = scalar_lea.sflag [#allocation3], %s271
        %s273 = sand.u32 %s32, 1
        %s274 = smul.addr %s273, 56
        %s275 = scalar_lea.vmem [#allocation2], %s274
        %p276 = pneg %p45
        %p277 = pneg %p42
        %p278 = pneg %p66
        %p279 = pneg %p63
        %p280 = pneg %p87
        %p281 = pneg %p84
        %p282 = pneg %p108
        %p283 = pneg %p105
        %p284 = pneg %p129
        %p285 = pneg %p126
        %p286 = pneg %p150
        %p287 = pneg %p147
        %p288 = pneg %p171
        %p289 = pneg %p168
        %p290 = pneg %p197
        %p291 = pneg %p194
        %s292 = sand.u32 %s184, 1
        %s293 = scalar_lea.sflag [#allocation4], %s292
        %s294 = sand.u32 %s184, 1
        %s295 = smul.addr %s294, 56
        %s296 = scalar_lea.vmem [#allocation5], %s295
        %v297 = vld [vmem:[%s266] sm:$0xff]
        %v298 = vld [vmem:[%s266 + $0x8] sm:$0xff]
        %v299 = vld [vmem:[%s266 + $0x10] sm:$0xff]
        %v300 = vld [vmem:[%s266 + $0x18] sm:$0xff]
        %v301 = vld [vmem:[%s266 + $0x20] sm:$0xff]
        %v302 = vld [vmem:[%s266 + $0x28] sm:$0xff]
        %v303 = vld [vmem:[%s266 + $0x30] sm:$0xff]
        %v304 = vld [vmem:[%s1] sm:$0xff]
        %v305 = vld [vmem:[%s1 + $0x8] sm:$0xff]
        %v306 = vld [vmem:[%s2] sm:$0x1]
        %v308 = vlaneseq
        %v309 = vshrl.u32 %v308, 7
        %v310 = vsub.s32 0, %v309
        %v311 = vrot.slane %v306, %v310
        %vm313 = vcmask 130048
        %v315 = vsel %vm313, %v297, 0
        %v318 = vsel %vm313, %v298, 0
        %v321 = vsel %vm313, %v299, 0
        %v324 = vsel %vm313, %v300, 0
        %v327 = vsel %vm313, %v301, 0
        %v330 = vsel %vm313, %v302, 0
        %v333 = vsel %vm313, %v303, 0
        %335 = vmatprep.subr.mxu0 0.0
        %336 = vmatpush1.msra.mxu0 %v304
        %337 = vmatprep.subr.mxu0 0.0
        %338 = vmatpush1.msra.mxu0 %v305
        %339 = vmatprep.subr.mxu0 0.0
        %340 = vmatpush1.msra.mxu0 0.0
        %341 = vmatprep.subr.mxu0 0.0
        %342 = vmatpush1.msra.mxu0 0.0
        %343 = vmatprep.subr.mxu0 0.0
        %344 = vmatpush1.msra.mxu0 0.0
        %345 = vmatprep.subr.mxu0 0.0
        %346 = vmatpush1.msra.mxu0 0.0
        %347 = vmatprep.subr.mxu0 0.0
        %348 = vmatpush1.msra.mxu0 0.0
        %349 = vmatprep.subr.mxu0 0.0
        %350 = vmatpush1.msra.mxu0 0.0
        %351 = vmatprep.subr.mxu0 0.0
        %352 = vmatpush1.msra.mxu0 0.0
        %353 = vmatprep.subr.mxu0 0.0
        %354 = vmatpush1.msra.mxu0 0.0
        %355 = vmatprep.subr.mxu0 0.0
        %356 = vmatpush1.msra.mxu0 0.0
        %357 = vmatprep.subr.mxu0 0.0
        %358 = vmatpush1.msra.mxu0 0.0
        %359 = vmatprep.subr.mxu0 0.0
        %360 = vmatpush1.msra.mxu0 0.0
        %361 = vmatprep.subr.mxu0 0.0
        %362 = vmatpush1.msra.mxu0 0.0
        %363 = vmatprep.subr.mxu0 0.0
        %364 = vmatpush1.msra.mxu0 0.0
        %365 = vmatprep.subr.mxu0 0.0
        %366 = vmatpush1.msra.mxu0 0.0
        %367 = vmatprep.subr.mxu0 0.0
        %368 = vmatpush1.msra.mxu0 0.0
        %369 = vmatprep.subr.mxu0 0.0
        %370 = vmatpush1.msra.mxu0 0.0
        %371 = vmatprep.subr.mxu0 0.0
        %372 = vmatpush1.msra.mxu0 0.0
        %373 = vmatprep.subr.mxu0 0.0
        %374 = vmatpush1.msra.mxu0 0.0
        %375 = vmatprep.subr.mxu0 0.0
        %376 = vmatpush1.msra.mxu0 0.0
        %377 = vmatprep.subr.mxu0 0.0
        %378 = vmatpush1.msra.mxu0 0.0
        %379 = vmatprep.subr.mxu0 0.0
        %380 = vmatpush1.msra.mxu0 0.0
        %381 = vmatprep.subr.mxu0 0.0
        %382 = vmatpush1.msra.mxu0 0.0
        %383 = vmatprep.subr.mxu0 0.0
        %384 = vmatpush1.msra.mxu0 0.0
        %385 = vmatprep.subr.mxu0 0.0
        %386 = vmatpush1.msra.mxu0 0.0
        %387 = vmatprep.subr.mxu0 0.0
        %388 = vmatpush1.msra.mxu0 0.0
        %389 = vmatprep.subr.mxu0 0.0
        %390 = vmatpush1.msra.mxu0 0.0
        %391 = vmatprep.subr.mxu0 0.0
        %392 = vmatpush1.msra.mxu0 0.0
        %393 = vmatprep.subr.mxu0 0.0
        %394 = vmatpush1.msra.mxu0 0.0
        %395 = vmatprep.subr.mxu0 0.0
        %396 = vmatpush1.msra.mxu0 0.0
        %397 = vmatprep.subr.mxu0 0.0
        %398 = vmatpush1.msra.mxu0 0.0
        %399 = vmatprep.mubr.f32.mxu0 0.0
        %400 = vmatmul.mubr.f32.gmra.mrb[0].mxu0 %v315
        %v401 = vpop.f32.mrb[0].mxu0
        %v402 = vadd.f32 %v311, %v401
        %v403 = vpop.f32.mrb[0].mxu0
        %404 = vmatprep.mubr.f32.mxu0 0.0
        %405 = vmatmul.mubr.f32.gmra.mrb[0].mxu0 %v318
        %v406 = vpop.f32.mrb[0].mxu0
        %v407 = vadd.f32 %v311, %v406
        %v408 = vpop.f32.mrb[0].mxu0
        %409 = vmatprep.mubr.f32.mxu0 0.0
        %410 = vmatmul.mubr.f32.gmra.mrb[0].mxu0 %v321
        %v411 = vpop.f32.mrb[0].mxu0
        %v412 = vadd.f32 %v311, %v411
        %v413 = vpop.f32.mrb[0].mxu0
        %414 = vmatprep.mubr.f32.mxu0 0.0
        %415 = vmatmul.mubr.f32.gmra.mrb[0].mxu0 %v324
        %v416 = vpop.f32.mrb[0].mxu0
        %v417 = vadd.f32 %v311, %v416
        %v418 = vpop.f32.mrb[0].mxu0
        %419 = vmatprep.mubr.f32.mxu0 0.0
        %420 = vmatmul.mubr.f32.gmra.mrb[0].mxu0 %v327
        %v421 = vpop.f32.mrb[0].mxu0
        %v422 = vadd.f32 %v311, %v421
        %v423 = vpop.f32.mrb[0].mxu0
        %424 = vmatprep.mubr.f32.mxu0 0.0
        %425 = vmatmul.mubr.f32.gmra.mrb[0].mxu0 %v330
        %v426 = vpop.f32.mrb[0].mxu0
        %v427 = vadd.f32 %v311, %v426
        %v428 = vpop.f32.mrb[0].mxu0
        %429 = vmatprep.mubr.f32.mxu0 0.0
        %430 = vmatmul.mubr.f32.gmra.mrb[0].mxu0 %v333
        %v431 = vpop.f32.mrb[0].mxu0
        %v432 = vadd.f32 %v311, %v431
        %v433 = vpop.f32.mrb[0].mxu0
        %434 = vdwg.mxu0
        %v435 = vmax.f32 %v402, 0.0
        %v436 = vmax.f32 %v407, 0.0
        %v437 = vmax.f32 %v412, 0.0
        %v438 = vmax.f32 %v417, 0.0
        %v439 = vmax.f32 %v422, 0.0
        %v440 = vmax.f32 %v427, 0.0
        %v441 = vmax.f32 %v432, 0.0
        %v447 = vcombine.high %v435, %v435
        %v449 = vunpack.c.l.s4 1966171168
        %v450 = vunpack.c.0.s8 %v449
        %v451 = vlaneseq
        %v452 = vshrl.u32 %v451, 7
        %v453 = vsub.s32 %v450, %v452
        %v454 = vrot.slane %v435, %v453
        %v456 = vunpack.c.l.s4 1966171168
        %v457 = vunpack.c.0.s8 %v456
        %v458 = vlaneseq
        %v459 = vshrl.u32 %v458, 7
        %v460 = vsub.s32 %v457, %v459
        %v461 = vrot.slane %v447, %v460
        %v462 = vcombine.high %v454, %v454
        %v464 = vunpack.c.l.s4 1966171168
        %v465 = vunpack.c.0.s8 %v464
        %v466 = vlaneseq
        %v467 = vshrl.u32 %v466, 7
        %v468 = vsub.s32 %v465, %v467
        %v469 = vrot.slane %v454, %v468
        %v471 = vunpack.c.l.s4 1966171168
        %v472 = vunpack.c.0.s8 %v471
        %v473 = vlaneseq
        %v474 = vshrl.u32 %v473, 7
        %v475 = vsub.s32 %v472, %v474
        %v476 = vrot.slane %v461, %v475
        %v478 = vunpack.c.l.s4 1966171168
        %v479 = vunpack.c.0.s8 %v478
        %v480 = vlaneseq
        %v481 = vshrl.u32 %v480, 7
        %v482 = vsub.s32 %v479, %v481
        %v483 = vrot.slane %v462, %v482
        %v484 = vcombine.high %v469, %v469
        %v485 = vcombine.high %v483, %v483
        %v486 = vcombine.high %v436, %v436
        %v488 = vunpack.c.l.s4 1966171168
        %v489 = vunpack.c.0.s8 %v488
        %v490 = vlaneseq
        %v491 = vshrl.u32 %v490, 7
        %v492 = vsub.s32 %v489, %v491
        %v493 = vrot.slane %v436, %v492
        %v495 = vunpack.c.l.s4 1966171168
        %v496 = vunpack.c.0.s8 %v495
        %v497 = vlaneseq
        %v498 = vshrl.u32 %v497, 7
        %v499 = vsub.s32 %v496, %v498
        %v500 = vrot.slane %v486, %v499
        %v501 = vcombine.high %v493, %v493
        %v503 = vunpack.c.l.s4 1966171168
        %v504 = vunpack.c.0.s8 %v503
        %v505 = vlaneseq
        %v506 = vshrl.u32 %v505, 7
        %v507 = vsub.s32 %v504, %v506
        %v508 = vrot.slane %v493, %v507
        %v510 = vunpack.c.l.s4 1966171168
        %v511 = vunpack.c.0.s8 %v510
        %v512 = vlaneseq
        %v513 = vshrl.u32 %v512, 7
        %v514 = vsub.s32 %v511, %v513
        %v515 = vrot.slane %v500, %v514
        %v517 = vunpack.c.l.s4 1966171168
        %v518 = vunpack.c.0.s8 %v517
        %v519 = vlaneseq
        %v520 = vshrl.u32 %v519, 7
        %v521 = vsub.s32 %v518, %v520
        %v522 = vrot.slane %v501, %v521
        %v523 = vcombine.high %v508, %v508
        %v524 = vcombine.high %v522, %v522
        %v525 = vcombine.high %v437, %v437
        %v527 = vunpack.c.l.s4 1966171168
        %v528 = vunpack.c.0.s8 %v527
        %v529 = vlaneseq
        %v530 = vshrl.u32 %v529, 7
        %v531 = vsub.s32 %v528, %v530
        %v532 = vrot.slane %v437, %v531
        %v534 = vunpack.c.l.s4 1966171168
        %v535 = vunpack.c.0.s8 %v534
        %v536 = vlaneseq
        %v537 = vshrl.u32 %v536, 7
        %v538 = vsub.s32 %v535, %v537
        %v539 = vrot.slane %v525, %v538
        %v540 = vcombine.high %v532, %v532
        %v542 = vunpack.c.l.s4 1966171168
        %v543 = vunpack.c.0.s8 %v542
        %v544 = vlaneseq
        %v545 = vshrl.u32 %v544, 7
        %v546 = vsub.s32 %v543, %v545
        %v547 = vrot.slane %v532, %v546
        %v549 = vunpack.c.l.s4 1966171168
        %v550 = vunpack.c.0.s8 %v549
        %v551 = vlaneseq
        %v552 = vshrl.u32 %v551, 7
        %v553 = vsub.s32 %v550, %v552
        %v554 = vrot.slane %v539, %v553
        %v556 = vunpack.c.l.s4 1966171168
        %v557 = vunpack.c.0.s8 %v556
        %v558 = vlaneseq
        %v559 = vshrl.u32 %v558, 7
        %v560 = vsub.s32 %v557, %v559
        %v561 = vrot.slane %v540, %v560
        %v562 = vcombine.high %v547, %v547
        %v563 = vcombine.high %v561, %v561
        %v564 = vcombine.high %v438, %v438
        %v566 = vunpack.c.l.s4 1966171168
        %v567 = vunpack.c.0.s8 %v566
        %v568 = vlaneseq
        %v569 = vshrl.u32 %v568, 7
        %v570 = vsub.s32 %v567, %v569
        %v571 = vrot.slane %v438, %v570
        %v573 = vunpack.c.l.s4 1966171168
        %v574 = vunpack.c.0.s8 %v573
        %v575 = vlaneseq
        %v576 = vshrl.u32 %v575, 7
        %v577 = vsub.s32 %v574, %v576
        %v578 = vrot.slane %v564, %v577
        %v579 = vcombine.high %v571, %v571
        %v581 = vunpack.c.l.s4 1966171168
        %v582 = vunpack.c.0.s8 %v581
        %v583 = vlaneseq
        %v584 = vshrl.u32 %v583, 7
        %v585 = vsub.s32 %v582, %v584
        %v586 = vrot.slane %v571, %v585
        %v588 = vunpack.c.l.s4 1966171168
        %v589 = vunpack.c.0.s8 %v588
        %v590 = vlaneseq
        %v591 = vshrl.u32 %v590, 7
        %v592 = vsub.s32 %v589, %v591
        %v593 = vrot.slane %v578, %v592
        %v595 = vunpack.c.l.s4 1966171168
        %v596 = vunpack.c.0.s8 %v595
        %v597 = vlaneseq
        %v598 = vshrl.u32 %v597, 7
        %v599 = vsub.s32 %v596, %v598
        %v600 = vrot.slane %v579, %v599
        %v601 = vcombine.high %v586, %v586
        %v602 = vcombine.high %v600, %v600
        %v603 = vcombine.high %v439, %v439
        %v605 = vunpack.c.l.s4 1966171168
        %v606 = vunpack.c.0.s8 %v605
        %v607 = vlaneseq
        %v608 = vshrl.u32 %v607, 7
        %v609 = vsub.s32 %v606, %v608
        %v610 = vrot.slane %v439, %v609
        %v612 = vunpack.c.l.s4 1966171168
        %v613 = vunpack.c.0.s8 %v612
        %v614 = vlaneseq
        %v615 = vshrl.u32 %v614, 7
        %v616 = vsub.s32 %v613, %v615
        %v617 = vrot.slane %v603, %v616
        %v618 = vcombine.high %v610, %v610
        %v620 = vunpack.c.l.s4 1966171168
        %v621 = vunpack.c.0.s8 %v620
        %v622 = vlaneseq
        %v623 = vshrl.u32 %v622, 7
        %v624 = vsub.s32 %v621, %v623
        %v625 = vrot.slane %v610, %v624
        %v627 = vunpack.c.l.s4 1966171168
        %v628 = vunpack.c.0.s8 %v627
        %v629 = vlaneseq
        %v630 = vshrl.u32 %v629, 7
        %v631 = vsub.s32 %v628, %v630
        %v632 = vrot.slane %v617, %v631
        %v634 = vunpack.c.l.s4 1966171168
        %v635 = vunpack.c.0.s8 %v634
        %v636 = vlaneseq
        %v637 = vshrl.u32 %v636, 7
        %v638 = vsub.s32 %v635, %v637
        %v639 = vrot.slane %v618, %v638
        %v640 = vcombine.high %v625, %v625
        %v641 = vcombine.high %v639, %v639
        %v642 = vld [vmem:[%s3] sm:$0xff]
        %v643 = vcombine.high %v461, %v461
        %v645 = vunpack.c.l.s4 1966171168
        %v646 = vunpack.c.0.s8 %v645
        %v647 = vlaneseq
        %v648 = vshrl.u32 %v647, 7
        %v649 = vsub.s32 %v646, %v648
        %v650 = vrot.slane %v643, %v649
        %v651 = vcombine.high %v500, %v500
        %v653 = vunpack.c.l.s4 1966171168
        %v654 = vunpack.c.0.s8 %v653
        %v655 = vlaneseq
        %v656 = vshrl.u32 %v655, 7
        %v657 = vsub.s32 %v654, %v656
        %v658 = vrot.slane %v651, %v657
        %v659 = vcombine.high %v539, %v539
        %v661 = vunpack.c.l.s4 1966171168
        %v662 = vunpack.c.0.s8 %v661
        %v663 = vlaneseq
        %v664 = vshrl.u32 %v663, 7
        %v665 = vsub.s32 %v662, %v664
        %v666 = vrot.slane %v659, %v665
        %v667 = vcombine.high %v578, %v578
        %v669 = vunpack.c.l.s4 1966171168
        %v670 = vunpack.c.0.s8 %v669
        %v671 = vlaneseq
        %v672 = vshrl.u32 %v671, 7
        %v673 = vsub.s32 %v670, %v672
        %v674 = vrot.slane %v667, %v673
        %v675 = vcombine.high %v617, %v617
        %v677 = vunpack.c.l.s4 1966171168
        %v678 = vunpack.c.0.s8 %v677
        %v679 = vlaneseq
        %v680 = vshrl.u32 %v679, 7
        %v681 = vsub.s32 %v678, %v680
        %v682 = vrot.slane %v675, %v681
        %v683 = vld [vmem:[%s3 + $0x8] sm:$0xff]
        %v684 = vcombine.low %v483, %v484
        %v685 = vcombine.low %v485, %v476
        %v686 = vcombine.low %v650, %v522
        %v687 = vcombine.low %v523, %v524
        %v689 = vunpack.c.l.s4 1966171168
        %v690 = vunpack.c.0.s8 %v689
        %v691 = vlaneseq
        %v692 = vshrl.u32 %v691, 7
        %v693 = vsub.s32 %v690, %v692
        %v694 = vrot.slane %v684, %v693
        %v696 = vunpack.c.l.s4 1966171168
        %v697 = vunpack.c.0.s8 %v696
        %v698 = vlaneseq
        %v699 = vshrl.u32 %v698, 7
        %v700 = vsub.s32 %v697, %v699
        %v701 = vrot.slane %v685, %v700
        %v703 = vunpack.c.l.s4 1966171168
        %v704 = vunpack.c.0.s8 %v703
        %v705 = vlaneseq
        %v706 = vshrl.u32 %v705, 7
        %v707 = vsub.s32 %v704, %v706
        %v708 = vrot.slane %v686, %v707
        %v710 = vunpack.c.l.s4 1966171168
        %v711 = vunpack.c.0.s8 %v710
        %v712 = vlaneseq
        %v713 = vshrl.u32 %v712, 7
        %v714 = vsub.s32 %v711, %v713
        %v715 = vrot.slane %v687, %v714
        %v716 = vcombine.low %v694, %v701
        %v717 = vcombine.low %v708, %v715
        %v719 = vunpack.c.l.s4 1966171168
        %v720 = vunpack.c.0.s8 %v719
        %v721 = vlaneseq
        %v722 = vshrl.u32 %v721, 7
        %v723 = vsub.s32 %v720, %v722
        %v724 = vrot.slane %v716, %v723
        %v726 = vunpack.c.l.s4 1966171168
        %v727 = vunpack.c.0.s8 %v726
        %v728 = vlaneseq
        %v729 = vshrl.u32 %v728, 7
        %v730 = vsub.s32 %v727, %v729
        %v731 = vrot.slane %v717, %v730
        %v732 = vcombine.low %v724, %v731
        %v733 = vcombine.low %v515, %v658
        %v734 = vcombine.low %v561, %v562
        %v735 = vcombine.low %v563, %v554
        %v736 = vcombine.low %v666, %v600
        %v738 = vunpack.c.l.s4 1966171168
        %v739 = vunpack.c.0.s8 %v738
        %v740 = vlaneseq
        %v741 = vshrl.u32 %v740, 7
        %v742 = vsub.s32 %v739, %v741
        %v743 = vrot.slane %v733, %v742
        %v745 = vunpack.c.l.s4 1966171168
        %v746 = vunpack.c.0.s8 %v745
        %v747 = vlaneseq
        %v748 = vshrl.u32 %v747, 7
        %v749 = vsub.s32 %v746, %v748
        %v750 = vrot.slane %v734, %v749
        %v752 = vunpack.c.l.s4 1966171168
        %v753 = vunpack.c.0.s8 %v752
        %v754 = vlaneseq
        %v755 = vshrl.u32 %v754, 7
        %v756 = vsub.s32 %v753, %v755
        %v757 = vrot.slane %v735, %v756
        %v759 = vunpack.c.l.s4 1966171168
        %v760 = vunpack.c.0.s8 %v759
        %v761 = vlaneseq
        %v762 = vshrl.u32 %v761, 7
        %v763 = vsub.s32 %v760, %v762
        %v764 = vrot.slane %v736, %v763
        %v765 = vcombine.low %v743, %v750
        %v766 = vcombine.low %v757, %v764
        %v768 = vunpack.c.l.s4 1966171168
        %v769 = vunpack.c.0.s8 %v768
        %v770 = vlaneseq
        %v771 = vshrl.u32 %v770, 7
        %v772 = vsub.s32 %v769, %v771
        %v773 = vrot.slane %v765, %v772
        %v775 = vunpack.c.l.s4 1966171168
        %v776 = vunpack.c.0.s8 %v775
        %v777 = vlaneseq
        %v778 = vshrl.u32 %v777, 7
        %v779 = vsub.s32 %v776, %v778
        %v780 = vrot.slane %v766, %v779
        %v781 = vcombine.low %v773, %v780
        %v782 = vcombine.low %v601, %v602
        %v783 = vcombine.low %v593, %v674
        %v784 = vcombine.low %v639, %v640
        %v785 = vcombine.low %v641, %v632
        %v787 = vunpack.c.l.s4 1966171168
        %v788 = vunpack.c.0.s8 %v787
        %v789 = vlaneseq
        %v790 = vshrl.u32 %v789, 7
        %v791 = vsub.s32 %v788, %v790
        %v792 = vrot.slane %v782, %v791
        %v794 = vunpack.c.l.s4 1966171168
        %v795 = vunpack.c.0.s8 %v794
        %v796 = vlaneseq
        %v797 = vshrl.u32 %v796, 7
        %v798 = vsub.s32 %v795, %v797
        %v799 = vrot.slane %v783, %v798
        %v801 = vunpack.c.l.s4 1966171168
        %v802 = vunpack.c.0.s8 %v801
        %v803 = vlaneseq
        %v804 = vshrl.u32 %v803, 7
        %v805 = vsub.s32 %v802, %v804
        %v806 = vrot.slane %v784, %v805
        %v808 = vunpack.c.l.s4 1966171168
        %v809 = vunpack.c.0.s8 %v808
        %v810 = vlaneseq
        %v811 = vshrl.u32 %v810, 7
        %v812 = vsub.s32 %v809, %v811
        %v813 = vrot.slane %v785, %v812
        %v814 = vcombine.low %v792, %v799
        %v815 = vcombine.low %v806, %v813
        %v817 = vunpack.c.l.s4 1966171168
        %v818 = vunpack.c.0.s8 %v817
        %v819 = vlaneseq
        %v820 = vshrl.u32 %v819, 7
        %v821 = vsub.s32 %v818, %v820
        %v822 = vrot.slane %v814, %v821
        %v824 = vunpack.c.l.s4 1966171168
        %v825 = vunpack.c.0.s8 %v824
        %v826 = vlaneseq
        %v827 = vshrl.u32 %v826, 7
        %v828 = vsub.s32 %v825, %v827
        %v829 = vrot.slane %v815, %v828
        %v830 = vcombine.low %v822, %v829
        %v832 = vunpack.c.l.s4 1966171168
        %v833 = vunpack.c.0.s8 %v832
        %v834 = vlaneseq
        %v835 = vshrl.u32 %v834, 7
        %v836 = vsub.s32 %v833, %v835
        %v837 = vrot.slane %v682, %v836
        %v839 = vunpack.c.l.s4 1966171168
        %v840 = vunpack.c.0.s8 %v839
        %v841 = vlaneseq
        %v842 = vshrl.u32 %v841, 7
        %v843 = vsub.s32 %v840, %v842
        %v844 = vrot.slane %v837, %v843
        %vm845 = vcmask 64512
        %v846 = vsel %vm845, %v732, 0
        %v848 = vsel %vm845, %v781, 0
        %v850 = vsel %vm845, %v830, 0
        %v852 = vsel %vm845, %v844, 0
        %854 = vmatprep.subr.mxu0 0.0
        %855 = vmatpush1.msra.mxu0 %v683
        %856 = vmatprep.subr.mxu0 0.0
        %857 = vmatpush1.msra.mxu0 0.0
        %858 = vmatprep.subr.mxu0 0.0
        %859 = vmatpush1.msra.mxu0 0.0
        %860 = vmatprep.subr.mxu0 0.0
        %861 = vmatpush1.msra.mxu0 0.0
        %862 = vmatprep.subr.mxu0 0.0
        %863 = vmatpush1.msra.mxu0 0.0
        %864 = vmatprep.subr.mxu0 0.0
        %865 = vmatpush1.msra.mxu0 0.0
        %866 = vmatprep.subr.mxu0 0.0
        %867 = vmatpush1.msra.mxu0 0.0
        %868 = vmatprep.subr.mxu0 0.0
        %869 = vmatpush1.msra.mxu0 0.0
        %870 = vmatprep.subr.mxu0 0.0
        %871 = vmatpush1.msra.mxu0 0.0
        %872 = vmatprep.subr.mxu0 0.0
        %873 = vmatpush1.msra.mxu0 0.0
        %874 = vmatprep.subr.mxu0 0.0
        %875 = vmatpush1.msra.mxu0 0.0
        %876 = vmatprep.subr.mxu0 0.0
        %877 = vmatpush1.msra.mxu0 0.0
        %878 = vmatprep.subr.mxu0 0.0
        %879 = vmatpush1.msra.mxu0 0.0
        %880 = vmatprep.subr.mxu0 0.0
        %881 = vmatpush1.msra.mxu0 0.0
        %882 = vmatprep.subr.mxu0 0.0
        %883 = vmatpush1.msra.mxu0 0.0
        %884 = vmatprep.subr.mxu0 0.0
        %885 = vmatpush1.msra.mxu0 0.0
        %886 = vmatprep.subr.mxu0 0.0
        %887 = vmatpush1.msra.mxu0 0.0
        %888 = vmatprep.subr.mxu0 0.0
        %889 = vmatpush1.msra.mxu0 0.0
        %890 = vmatprep.subr.mxu0 0.0
        %891 = vmatpush1.msra.mxu0 0.0
        %892 = vmatprep.subr.mxu0 0.0
        %893 = vmatpush1.msra.mxu0 0.0
        %894 = vmatprep.subr.mxu0 0.0
        %895 = vmatpush1.msra.mxu0 0.0
        %896 = vmatprep.subr.mxu0 0.0
        %897 = vmatpush1.msra.mxu0 0.0
        %898 = vmatprep.subr.mxu0 0.0
        %899 = vmatpush1.msra.mxu0 0.0
        %900 = vmatprep.subr.mxu0 0.0
        %901 = vmatpush1.msra.mxu0 0.0
        %902 = vmatprep.subr.mxu0 0.0
        %903 = vmatpush1.msra.mxu0 0.0
        %904 = vmatprep.subr.mxu0 0.0
        %905 = vmatpush1.msra.mxu0 0.0
        %906 = vmatprep.subr.mxu0 0.0
        %907 = vmatpush1.msra.mxu0 0.0
        %908 = vmatprep.subr.mxu0 0.0
        %909 = vmatpush1.msra.mxu0 0.0
        %910 = vmatprep.subr.mxu0 0.0
        %911 = vmatpush1.msra.mxu0 0.0
        %912 = vmatprep.subr.mxu0 0.0
        %913 = vmatpush1.msra.mxu0 0.0
        %914 = vmatprep.subr.mxu0 0.0
        %915 = vmatpush1.msra.mxu0 0.0
        %916 = vmatprep.subr.mxu0 0.0
        %917 = vmatpush1.msra.mxu0 0.0
        %918 = vmatprep.mubr.f32.mxu0 0.0
        %919 = vmatmul.mubr.f32.gmra.mrb[0].mxu0 %v846
        %v920 = vpop.f32.mrb[0].mxu0
        %v921 = vadd.f32 0.0, %v920
        %v922 = vpop.f32.mrb[0].mxu0
        %923 = vmatprep.mubr.f32.mxu0 0.0
        %924 = vmatmul.mubr.f32.gmra.mrb[0].mxu0 %v848
        %v925 = vpop.f32.mrb[0].mxu0
        %v926 = vadd.f32 0.0, %v925
        %v927 = vpop.f32.mrb[0].mxu0
        %928 = vmatprep.mubr.f32.mxu0 0.0
        %929 = vmatmul.mubr.f32.gmra.mrb[0].mxu0 %v850
        %v930 = vpop.f32.mrb[0].mxu0
        %v931 = vadd.f32 0.0, %v930
        %v932 = vpop.f32.mrb[0].mxu0
        %933 = vmatprep.mubr.f32.mxu0 0.0
        %934 = vmatmul.mubr.f32.gmra.mrb[0].mxu0 %v852
        %v935 = vpop.f32.mrb[0].mxu0
        %v936 = vadd.f32 0.0, %v935
        %v937 = vpop.f32.mrb[0].mxu0
        %938 = vdwg.mxu0
        %v939 = vcombine.low %v469, %v483
        %v940 = vcombine.low %v484, %v485
        %v941 = vcombine.low %v476, %v508
        %v942 = vcombine.low %v522, %v523
        %v944 = vunpack.c.l.s4 1966171168
        %v945 = vunpack.c.0.s8 %v944
        %v946 = vlaneseq
        %v947 = vshrl.u32 %v946, 7
        %v948 = vsub.s32 %v945, %v947
        %v949 = vrot.slane %v939, %v948
        %v951 = vunpack.c.l.s4 1966171168
        %v952 = vunpack.c.0.s8 %v951
        %v953 = vlaneseq
        %v954 = vshrl.u32 %v953, 7
        %v955 = vsub.s32 %v952, %v954
        %v956 = vrot.slane %v940, %v955
        %v958 = vunpack.c.l.s4 1966171168
        %v959 = vunpack.c.0.s8 %v958
        %v960 = vlaneseq
        %v961 = vshrl.u32 %v960, 7
        %v962 = vsub.s32 %v959, %v961
        %v963 = vrot.slane %v941, %v962
        %v965 = vunpack.c.l.s4 1966171168
        %v966 = vunpack.c.0.s8 %v965
        %v967 = vlaneseq
        %v968 = vshrl.u32 %v967, 7
        %v969 = vsub.s32 %v966, %v968
        %v970 = vrot.slane %v942, %v969
        %v971 = vcombine.low %v949, %v956
        %v972 = vcombine.low %v963, %v970
        %v974 = vunpack.c.l.s4 1966171168
        %v975 = vunpack.c.0.s8 %v974
        %v976 = vlaneseq
        %v977 = vshrl.u32 %v976, 7
        %v978 = vsub.s32 %v975, %v977
        %v979 = vrot.slane %v971, %v978
        %v981 = vunpack.c.l.s4 1966171168
        %v982 = vunpack.c.0.s8 %v981
        %v983 = vlaneseq
        %v984 = vshrl.u32 %v983, 7
        %v985 = vsub.s32 %v982, %v984
        %v986 = vrot.slane %v972, %v985
        %v987 = vcombine.low %v979, %v986
        %v988 = vcombine.low %v524, %v515
        %v989 = vcombine.low %v547, %v561
        %v990 = vcombine.low %v562, %v563
        %v991 = vcombine.low %v554, %v586
        %v993 = vunpack.c.l.s4 1966171168
        %v994 = vunpack.c.0.s8 %v993
        %v995 = vlaneseq
        %v996 = vshrl.u32 %v995, 7
        %v997 = vsub.s32 %v994, %v996
        %v998 = vrot.slane %v988, %v997
        %v1000 = vunpack.c.l.s4 1966171168
        %v1001 = vunpack.c.0.s8 %v1000
        %v1002 = vlaneseq
        %v1003 = vshrl.u32 %v1002, 7
        %v1004 = vsub.s32 %v1001, %v1003
        %v1005 = vrot.slane %v989, %v1004
        %v1007 = vunpack.c.l.s4 1966171168
        %v1008 = vunpack.c.0.s8 %v1007
        %v1009 = vlaneseq
        %v1010 = vshrl.u32 %v1009, 7
        %v1011 = vsub.s32 %v1008, %v1010
        %v1012 = vrot.slane %v990, %v1011
        %v1014 = vunpack.c.l.s4 1966171168
        %v1015 = vunpack.c.0.s8 %v1014
        %v1016 = vlaneseq
        %v1017 = vshrl.u32 %v1016, 7
        %v1018 = vsub.s32 %v1015, %v1017
        %v1019 = vrot.slane %v991, %v1018
        %v1020 = vcombine.low %v998, %v1005
        %v1021 = vcombine.low %v1012, %v1019
        %v1023 = vunpack.c.l.s4 1966171168
        %v1024 = vunpack.c.0.s8 %v1023
        %v1025 = vlaneseq
        %v1026 = vshrl.u32 %v1025, 7
        %v1027 = vsub.s32 %v1024, %v1026
        %v1028 = vrot.slane %v1020, %v1027
        %v1030 = vunpack.c.l.s4 1966171168
        %v1031 = vunpack.c.0.s8 %v1030
        %v1032 = vlaneseq
        %v1033 = vshrl.u32 %v1032, 7
        %v1034 = vsub.s32 %v1031, %v1033
        %v1035 = vrot.slane %v1021, %v1034
        %v1036 = vcombine.low %v1028, %v1035
        %v1037 = vcombine.low %v600, %v601
        %v1038 = vcombine.low %v602, %v593
        %v1039 = vcombine.low %v625, %v639
        %v1040 = vcombine.low %v640, %v641
        %v1042 = vunpack.c.l.s4 1966171168
        %v1043 = vunpack.c.0.s8 %v1042
        %v1044 = vlaneseq
        %v1045 = vshrl.u32 %v1044, 7
        %v1046 = vsub.s32 %v1043, %v1045
        %v1047 = vrot.slane %v1037, %v1046
        %v1049 = vunpack.c.l.s4 1966171168
        %v1050 = vunpack.c.0.s8 %v1049
        %v1051 = vlaneseq
        %v1052 = vshrl.u32 %v1051, 7
        %v1053 = vsub.s32 %v1050, %v1052
        %v1054 = vrot.slane %v1038, %v1053
        %v1056 = vunpack.c.l.s4 1966171168
        %v1057 = vunpack.c.0.s8 %v1056
        %v1058 = vlaneseq
        %v1059 = vshrl.u32 %v1058, 7
        %v1060 = vsub.s32 %v1057, %v1059
        %v1061 = vrot.slane %v1039, %v1060
        %v1063 = vunpack.c.l.s4 1966171168
        %v1064 = vunpack.c.0.s8 %v1063
        %v1065 = vlaneseq
        %v1066 = vshrl.u32 %v1065, 7
        %v1067 = vsub.s32 %v1064, %v1066
        %v1068 = vrot.slane %v1040, %v1067
        %v1069 = vcombine.low %v1047, %v1054
        %v1070 = vcombine.low %v1061, %v1068
        %v1072 = vunpack.c.l.s4 1966171168
        %v1073 = vunpack.c.0.s8 %v1072
        %v1074 = vlaneseq
        %v1075 = vshrl.u32 %v1074, 7
        %v1076 = vsub.s32 %v1073, %v1075
        %v1077 = vrot.slane %v1069, %v1076
        %v1079 = vunpack.c.l.s4 1966171168
        %v1080 = vunpack.c.0.s8 %v1079
        %v1081 = vlaneseq
        %v1082 = vshrl.u32 %v1081, 7
        %v1083 = vsub.s32 %v1080, %v1082
        %v1084 = vrot.slane %v1070, %v1083
        %v1085 = vcombine.low %v1077, %v1084
        %v1087 = vunpack.c.l.s4 1966171168
        %v1088 = vunpack.c.0.s8 %v1087
        %v1089 = vlaneseq
        %v1090 = vshrl.u32 %v1089, 7
        %v1091 = vsub.s32 %v1088, %v1090
        %v1092 = vrot.slane %v632, %v1091
        %v1094 = vunpack.c.l.s4 1966171168
        %v1095 = vunpack.c.0.s8 %v1094
        %v1096 = vlaneseq
        %v1097 = vshrl.u32 %v1096, 7
        %v1098 = vsub.s32 %v1095, %v1097
        %v1099 = vrot.slane %v1092, %v1098
        %v1100 = vsel %vm845, %v987, 0
        %v1102 = vsel %vm845, %v1036, 0
        %v1104 = vsel %vm845, %v1085, 0
        %v1106 = vsel %vm845, %v1099, 0
        %1108 = vmatprep.subr.mxu0 0.0
        %1109 = vmatpush1.msra.mxu0 %v642
        %1110 = vmatprep.subr.mxu0 0.0
        %1111 = vmatpush1.msra.mxu0 0.0
        %1112 = vmatprep.subr.mxu0 0.0
        %1113 = vmatpush1.msra.mxu0 0.0
        %1114 = vmatprep.subr.mxu0 0.0
        %1115 = vmatpush1.msra.mxu0 0.0
        %1116 = vmatprep.subr.mxu0 0.0
        %1117 = vmatpush1.msra.mxu0 0.0
        %1118 = vmatprep.subr.mxu0 0.0
        %1119 = vmatpush1.msra.mxu0 0.0
        %1120 = vmatprep.subr.mxu0 0.0
        %1121 = vmatpush1.msra.mxu0 0.0
        %1122 = vmatprep.subr.mxu0 0.0
        %1123 = vmatpush1.msra.mxu0 0.0
        %1124 = vmatprep.subr.mxu0 0.0
        %1125 = vmatpush1.msra.mxu0 0.0
        %1126 = vmatprep.subr.mxu0 0.0
        %1127 = vmatpush1.msra.mxu0 0.0
        %1128 = vmatprep.subr.mxu0 0.0
        %1129 = vmatpush1.msra.mxu0 0.0
        %1130 = vmatprep.subr.mxu0 0.0
        %1131 = vmatpush1.msra.mxu0 0.0
        %1132 = vmatprep.subr.mxu0 0.0
        %1133 = vmatpush1.msra.mxu0 0.0
        %1134 = vmatprep.subr.mxu0 0.0
        %1135 = vmatpush1.msra.mxu0 0.0
        %1136 = vmatprep.subr.mxu0 0.0
        %1137 = vmatpush1.msra.mxu0 0.0
        %1138 = vmatprep.subr.mxu0 0.0
        %1139 = vmatpush1.msra.mxu0 0.0
        %1140 = vmatprep.subr.mxu0 0.0
        %1141 = vmatpush1.msra.mxu0 0.0
        %1142 = vmatprep.subr.mxu0 0.0
        %1143 = vmatpush1.msra.mxu0 0.0
        %1144 = vmatprep.subr.mxu0 0.0
        %1145 = vmatpush1.msra.mxu0 0.0
        %1146 = vmatprep.subr.mxu0 0.0
        %1147 = vmatpush1.msra.mxu0 0.0
        %1148 = vmatprep.subr.mxu0 0.0
        %1149 = vmatpush1.msra.mxu0 0.0
        %1150 = vmatprep.subr.mxu0 0.0
        %1151 = vmatpush1.msra.mxu0 0.0
        %1152 = vmatprep.subr.mxu0 0.0
        %1153 = vmatpush1.msra.mxu0 0.0
        %1154 = vmatprep.subr.mxu0 0.0
        %1155 = vmatpush1.msra.mxu0 0.0
        %1156 = vmatprep.subr.mxu0 0.0
        %1157 = vmatpush1.msra.mxu0 0.0
        %1158 = vmatprep.subr.mxu0 0.0
        %1159 = vmatpush1.msra.mxu0 0.0
        %1160 = vmatprep.subr.mxu0 0.0
        %1161 = vmatpush1.msra.mxu0 0.0
        %1162 = vmatprep.subr.mxu0 0.0
        %1163 = vmatpush1.msra.mxu0 0.0
        %1164 = vmatprep.subr.mxu0 0.0
        %1165 = vmatpush1.msra.mxu0 0.0
        %1166 = vmatprep.subr.mxu0 0.0
        %1167 = vmatpush1.msra.mxu0 0.0
        %1168 = vmatprep.subr.mxu0 0.0
        %1169 = vmatpush1.msra.mxu0 0.0
        %1170 = vmatprep.subr.mxu0 0.0
        %1171 = vmatpush1.msra.mxu0 0.0
        %1172 = vmatprep.mubr.f32.mxu0 0.0
        %1173 = vmatmul.mubr.f32.gmra.mrb[0].mxu0 %v1100
        %v1174 = vpop.f32.mrb[0].mxu0
        %v1175 = vadd.f32 %v921, %v1174
        %v1176 = vpop.f32.mrb[0].mxu0
        %1177 = vmatprep.mubr.f32.mxu0 0.0
        %1178 = vmatmul.mubr.f32.gmra.mrb[0].mxu0 %v1102
        %v1179 = vpop.f32.mrb[0].mxu0
        %v1180 = vadd.f32 %v926, %v1179
        %v1181 = vpop.f32.mrb[0].mxu0
        %1182 = vmatprep.mubr.f32.mxu0 0.0
        %1183 = vmatmul.mubr.f32.gmra.mrb[0].mxu0 %v1104
        %v1184 = vpop.f32.mrb[0].mxu0
        %v1185 = vadd.f32 %v931, %v1184
        %v1186 = vpop.f32.mrb[0].mxu0
        %1187 = vmatprep.mubr.f32.mxu0 0.0
        %1188 = vmatmul.mubr.f32.gmra.mrb[0].mxu0 %v1106
        %v1189 = vpop.f32.mrb[0].mxu0
        %v1190 = vadd.f32 %v936, %v1189
        %v1191 = vpop.f32.mrb[0].mxu0
        %1192 = vdwg.mxu0
        %v1193 = vcombine.high %v476, %v476
        %v1194 = vcombine.high %v515, %v515
        %v1195 = vcombine.high %v554, %v554
        %v1196 = vcombine.high %v593, %v593
        %v1197 = vcombine.high %v632, %v632
        %v1198 = vld [vmem:[%s3 + $0x10] sm:$0xff]
        %v1199 = vcombine.low %v476, %v650
        %v1200 = vcombine.low %v1193, %v523
        %v1202 = vunpack.c.l.s4 1966171168
        %v1203 = vunpack.c.0.s8 %v1202
        %v1204 = vlaneseq
        %v1205 = vshrl.u32 %v1204, 7
        %v1206 = vsub.s32 %v1203, %v1205
        %v1207 = vrot.slane %v1199, %v1206
        %v1209 = vunpack.c.l.s4 1966171168
        %v1210 = vunpack.c.0.s8 %v1209
        %v1211 = vlaneseq
        %v1212 = vshrl.u32 %v1211, 7
        %v1213 = vsub.s32 %v1210, %v1212
        %v1214 = vrot.slane %v1200, %v1213
        %v1215 = vcombine.low %v956, %v1207
        %v1216 = vcombine.low %v1214, %v998
        %v1218 = vunpack.c.l.s4 1966171168
        %v1219 = vunpack.c.0.s8 %v1218
        %v1220 = vlaneseq
        %v1221 = vshrl.u32 %v1220, 7
        %v1222 = vsub.s32 %v1219, %v1221
        %v1223 = vrot.slane %v1215, %v1222
        %v1225 = vunpack.c.l.s4 1966171168
        %v1226 = vunpack.c.0.s8 %v1225
        %v1227 = vlaneseq
        %v1228 = vshrl.u32 %v1227, 7
        %v1229 = vsub.s32 %v1226, %v1228
        %v1230 = vrot.slane %v1216, %v1229
        %v1231 = vcombine.low %v1223, %v1230
        %v1232 = vcombine.low %v658, %v1194
        %v1233 = vcombine.low %v554, %v666
        %v1234 = vcombine.low %v1195, %v601
        %v1236 = vunpack.c.l.s4 1966171168
        %v1237 = vunpack.c.0.s8 %v1236
        %v1238 = vlaneseq
        %v1239 = vshrl.u32 %v1238, 7
        %v1240 = vsub.s32 %v1237, %v1239
        %v1241 = vrot.slane %v1232, %v1240
        %v1243 = vunpack.c.l.s4 1966171168
        %v1244 = vunpack.c.0.s8 %v1243
        %v1245 = vlaneseq
        %v1246 = vshrl.u32 %v1245, 7
        %v1247 = vsub.s32 %v1244, %v1246
        %v1248 = vrot.slane %v1233, %v1247
        %v1250 = vunpack.c.l.s4 1966171168
        %v1251 = vunpack.c.0.s8 %v1250
        %v1252 = vlaneseq
        %v1253 = vshrl.u32 %v1252, 7
        %v1254 = vsub.s32 %v1251, %v1253
        %v1255 = vrot.slane %v1234, %v1254
        %v1256 = vcombine.low %v1241, %v1012
        %v1257 = vcombine.low %v1248, %v1255
        %v1259 = vunpack.c.l.s4 1966171168
        %v1260 = vunpack.c.0.s8 %v1259
        %v1261 = vlaneseq
        %v1262 = vshrl.u32 %v1261, 7
        %v1263 = vsub.s32 %v1260, %v1262
        %v1264 = vrot.slane %v1256, %v1263
        %v1266 = vunpack.c.l.s4 1966171168
        %v1267 = vunpack.c.0.s8 %v1266
        %v1268 = vlaneseq
        %v1269 = vshrl.u32 %v1268, 7
        %v1270 = vsub.s32 %v1267, %v1269
        %v1271 = vrot.slane %v1257, %v1270
        %v1272 = vcombine.low %v1264, %v1271
        %v1273 = vcombine.low %v674, %v1196
        %v1274 = vcombine.low %v632, %v682
        %v1276 = vunpack.c.l.s4 1966171168
        %v1277 = vunpack.c.0.s8 %v1276
        %v1278 = vlaneseq
        %v1279 = vshrl.u32 %v1278, 7
        %v1280 = vsub.s32 %v1277, %v1279
        %v1281 = vrot.slane %v1273, %v1280
        %v1283 = vunpack.c.l.s4 1966171168
        %v1284 = vunpack.c.0.s8 %v1283
        %v1285 = vlaneseq
        %v1286 = vshrl.u32 %v1285, 7
        %v1287 = vsub.s32 %v1284, %v1286
        %v1288 = vrot.slane %v1274, %v1287
        %v1289 = vcombine.low %v1054, %v1281
        %v1290 = vcombine.low %v1068, %v1288
        %v1292 = vunpack.c.l.s4 1966171168
        %v1293 = vunpack.c.0.s8 %v1292
        %v1294 = vlaneseq
        %v1295 = vshrl.u32 %v1294, 7
        %v1296 = vsub.s32 %v1293, %v1295
        %v1297 = vrot.slane %v1289, %v1296
        %v1299 = vunpack.c.l.s4 1966171168
        %v1300 = vunpack.c.0.s8 %v1299
        %v1301 = vlaneseq
        %v1302 = vshrl.u32 %v1301, 7
        %v1303 = vsub.s32 %v1300, %v1302
        %v1304 = vrot.slane %v1290, %v1303
        %v1305 = vcombine.low %v1297, %v1304
        %v1307 = vunpack.c.l.s4 1966171168
        %v1308 = vunpack.c.0.s8 %v1307
        %v1309 = vlaneseq
        %v1310 = vshrl.u32 %v1309, 7
        %v1311 = vsub.s32 %v1308, %v1310
        %v1312 = vrot.slane %v1197, %v1311
        %v1314 = vunpack.c.l.s4 1966171168
        %v1315 = vunpack.c.0.s8 %v1314
        %v1316 = vlaneseq
        %v1317 = vshrl.u32 %v1316, 7
        %v1318 = vsub.s32 %v1315, %v1317
        %v1319 = vrot.slane %v1312, %v1318
        %v1320 = vsel %vm845, %v1231, 0
        %v1322 = vsel %vm845, %v1272, 0
        %v1324 = vsel %vm845, %v1305, 0
        %v1326 = vsel %vm845, %v1319, 0
        %1328 = vmatprep.subr.mxu0 0.0
        %1329 = vmatpush1.msra.mxu0 %v1198
        %1330 = vmatprep.subr.mxu0 0.0
        %1331 = vmatpush1.msra.mxu0 0.0
        %1332 = vmatprep.subr.mxu0 0.0
        %1333 = vmatpush1.msra.mxu0 0.0
        %1334 = vmatprep.subr.mxu0 0.0
        %1335 = vmatpush1.msra.mxu0 0.0
        %1336 = vmatprep.subr.mxu0 0.0
        %1337 = vmatpush1.msra.mxu0 0.0
        %1338 = vmatprep.subr.mxu0 0.0
        %1339 = vmatpush1.msra.mxu0 0.0
        %1340 = vmatprep.subr.mxu0 0.0
        %1341 = vmatpush1.msra.mxu0 0.0
        %1342 = vmatprep.subr.mxu0 0.0
        %1343 = vmatpush1.msra.mxu0 0.0
        %1344 = vmatprep.subr.mxu0 0.0
        %1345 = vmatpush1.msra.mxu0 0.0
        %1346 = vmatprep.subr.mxu0 0.0
        %1347 = vmatpush1.msra.mxu0 0.0
        %1348 = vmatprep.subr.mxu0 0.0
        %1349 = vmatpush1.msra.mxu0 0.0
        %1350 = vmatprep.subr.mxu0 0.0
        %1351 = vmatpush1.msra.mxu0 0.0
        %1352 = vmatprep.subr.mxu0 0.0
        %1353 = vmatpush1.msra.mxu0 0.0
        %1354 = vmatprep.subr.mxu0 0.0
        %1355 = vmatpush1.msra.mxu0 0.0
        %1356 = vmatprep.subr.mxu0 0.0
        %1357 = vmatpush1.msra.mxu0 0.0
        %1358 = vmatprep.subr.mxu0 0.0
        %1359 = vmatpush1.msra.mxu0 0.0
        %1360 = vmatprep.subr.mxu0 0.0
        %1361 = vmatpush1.msra.mxu0 0.0
        %1362 = vmatprep.subr.mxu0 0.0
        %1363 = vmatpush1.msra.mxu0 0.0
        %1364 = vmatprep.subr.mxu0 0.0
        %1365 = vmatpush1.msra.mxu0 0.0
        %1366 = vmatprep.subr.mxu0 0.0
        %1367 = vmatpush1.msra.mxu0 0.0
        %1368 = vmatprep.subr.mxu0 0.0
        %1369 = vmatpush1.msra.mxu0 0.0
        %1370 = vmatprep.subr.mxu0 0.0
        %1371 = vmatpush1.msra.mxu0 0.0
        %1372 = vmatprep.subr.mxu0 0.0
        %1373 = vmatpush1.msra.mxu0 0.0
        %1374 = vmatprep.subr.mxu0 0.0
        %1375 = vmatpush1.msra.mxu0 0.0
        %1376 = vmatprep.subr.mxu0 0.0
        %1377 = vmatpush1.msra.mxu0 0.0
        %1378 = vmatprep.subr.mxu0 0.0
        %1379 = vmatpush1.msra.mxu0 0.0
        %1380 = vmatprep.subr.mxu0 0.0
        %1381 = vmatpush1.msra.mxu0 0.0
        %1382 = vmatprep.subr.mxu0 0.0
        %1383 = vmatpush1.msra.mxu0 0.0
        %1384 = vmatprep.subr.mxu0 0.0
        %1385 = vmatpush1.msra.mxu0 0.0
        %1386 = vmatprep.subr.mxu0 0.0
        %1387 = vmatpush1.msra.mxu0 0.0
        %1388 = vmatprep.subr.mxu0 0.0
        %1389 = vmatpush1.msra.mxu0 0.0
        %1390 = vmatprep.subr.mxu0 0.0
        %1391 = vmatpush1.msra.mxu0 0.0
        %1392 = vmatprep.mubr.f32.mxu0 0.0
        %1393 = vmatmul.mubr.f32.gmra.mrb[0].mxu0 %v1320
        %v1394 = vpop.f32.mrb[0].mxu0
        %v1395 = vadd.f32 0.0, %v1394
        %v1396 = vpop.f32.mrb[0].mxu0
        %1397 = vmatprep.mubr.f32.mxu0 0.0
        %1398 = vmatmul.mubr.f32.gmra.mrb[0].mxu0 %v1322
        %v1399 = vpop.f32.mrb[0].mxu0
        %v1400 = vadd.f32 0.0, %v1399
        %v1401 = vpop.f32.mrb[0].mxu0
        %1402 = vmatprep.mubr.f32.mxu0 0.0
        %1403 = vmatmul.mubr.f32.gmra.mrb[0].mxu0 %v1324
        %v1404 = vpop.f32.mrb[0].mxu0
        %v1405 = vadd.f32 0.0, %v1404
        %v1406 = vpop.f32.mrb[0].mxu0
        %1407 = vmatprep.mubr.f32.mxu0 0.0
        %1408 = vmatmul.mubr.f32.gmra.mrb[0].mxu0 %v1326
        %v1409 = vpop.f32.mrb[0].mxu0
        %v1410 = vadd.f32 0.0, %v1409
        %v1411 = vpop.f32.mrb[0].mxu0
        %1412 = vdwg.mxu0
        %v1413 = vadd.f32 %v1175, %v1395
        %v1414 = vadd.f32 %v1180, %v1400
        %v1415 = vadd.f32 %v1185, %v1405
        %v1416 = vadd.f32 %v1190, %v1410
        %v1418 = vcombine.high %v440, %v440
        %v1420 = vunpack.c.l.s4 1966171168
        %v1421 = vunpack.c.0.s8 %v1420
        %v1422 = vlaneseq
        %v1423 = vshrl.u32 %v1422, 7
        %v1424 = vsub.s32 %v1421, %v1423
        %v1425 = vrot.slane %v440, %v1424
        %v1427 = vunpack.c.l.s4 1966171168
        %v1428 = vunpack.c.0.s8 %v1427
        %v1429 = vlaneseq
        %v1430 = vshrl.u32 %v1429, 7
        %v1431 = vsub.s32 %v1428, %v1430
        %v1432 = vrot.slane %v1418, %v1431
        %v1433 = vcombine.high %v1425, %v1425
        %v1435 = vunpack.c.l.s4 1966171168
        %v1436 = vunpack.c.0.s8 %v1435
        %v1437 = vlaneseq
        %v1438 = vshrl.u32 %v1437, 7
        %v1439 = vsub.s32 %v1436, %v1438
        %v1440 = vrot.slane %v1425, %v1439
        %v1442 = vunpack.c.l.s4 1966171168
        %v1443 = vunpack.c.0.s8 %v1442
        %v1444 = vlaneseq
        %v1445 = vshrl.u32 %v1444, 7
        %v1446 = vsub.s32 %v1443, %v1445
        %v1447 = vrot.slane %v1432, %v1446
        %v1449 = vunpack.c.l.s4 1966171168
        %v1450 = vunpack.c.0.s8 %v1449
        %v1451 = vlaneseq
        %v1452 = vshrl.u32 %v1451, 7
        %v1453 = vsub.s32 %v1450, %v1452
        %v1454 = vrot.slane %v1433, %v1453
        %v1455 = vcombine.high %v1440, %v1440
        %v1456 = vcombine.high %v1454, %v1454
        %v1457 = vld [vmem:[%s3 + $0x18] sm:$0xff]
        %v1458 = vcombine.low %v508, %v522
        %v1459 = vcombine.low %v515, %v547
        %v1461 = vunpack.c.l.s4 1966171168
        %v1462 = vunpack.c.0.s8 %v1461
        %v1463 = vlaneseq
        %v1464 = vshrl.u32 %v1463, 7
        %v1465 = vsub.s32 %v1462, %v1464
        %v1466 = vrot.slane %v1458, %v1465
        %v1468 = vunpack.c.l.s4 1966171168
        %v1469 = vunpack.c.0.s8 %v1468
        %v1470 = vlaneseq
        %v1471 = vshrl.u32 %v1470, 7
        %v1472 = vsub.s32 %v1469, %v1471
        %v1473 = vrot.slane %v1459, %v1472
        %v1474 = vcombine.low %v1466, %v715
        %v1475 = vcombine.low %v1473, %v750
        %v1477 = vunpack.c.l.s4 1966171168
        %v1478 = vunpack.c.0.s8 %v1477
        %v1479 = vlaneseq
        %v1480 = vshrl.u32 %v1479, 7
        %v1481 = vsub.s32 %v1478, %v1480
        %v1482 = vrot.slane %v1474, %v1481
        %v1484 = vunpack.c.l.s4 1966171168
        %v1485 = vunpack.c.0.s8 %v1484
        %v1486 = vlaneseq
        %v1487 = vshrl.u32 %v1486, 7
        %v1488 = vsub.s32 %v1485, %v1487
        %v1489 = vrot.slane %v1475, %v1488
        %v1490 = vcombine.low %v1482, %v1489
        %v1491 = vcombine.low %v586, %v600
        %v1492 = vcombine.low %v593, %v625
        %v1494 = vunpack.c.l.s4 1966171168
        %v1495 = vunpack.c.0.s8 %v1494
        %v1496 = vlaneseq
        %v1497 = vshrl.u32 %v1496, 7
        %v1498 = vsub.s32 %v1495, %v1497
        %v1499 = vrot.slane %v1491, %v1498
        %v1501 = vunpack.c.l.s4 1966171168
        %v1502 = vunpack.c.0.s8 %v1501
        %v1503 = vlaneseq
        %v1504 = vshrl.u32 %v1503, 7
        %v1505 = vsub.s32 %v1502, %v1504
        %v1506 = vrot.slane %v1492, %v1505
        %v1507 = vcombine.low %v757, %v1499
        %v1508 = vcombine.low %v792, %v1506
        %v1510 = vunpack.c.l.s4 1966171168
        %v1511 = vunpack.c.0.s8 %v1510
        %v1512 = vlaneseq
        %v1513 = vshrl.u32 %v1512, 7
        %v1514 = vsub.s32 %v1511, %v1513
        %v1515 = vrot.slane %v1507, %v1514
        %v1517 = vunpack.c.l.s4 1966171168
        %v1518 = vunpack.c.0.s8 %v1517
        %v1519 = vlaneseq
        %v1520 = vshrl.u32 %v1519, 7
        %v1521 = vsub.s32 %v1518, %v1520
        %v1522 = vrot.slane %v1508, %v1521
        %v1523 = vcombine.low %v1515, %v1522
        %v1524 = vcombine.low %v1440, %v1454
        %v1525 = vcombine.low %v1455, %v1456
        %v1527 = vunpack.c.l.s4 1966171168
        %v1528 = vunpack.c.0.s8 %v1527
        %v1529 = vlaneseq
        %v1530 = vshrl.u32 %v1529, 7
        %v1531 = vsub.s32 %v1528, %v1530
        %v1532 = vrot.slane %v1524, %v1531
        %v1534 = vunpack.c.l.s4 1966171168
        %v1535 = vunpack.c.0.s8 %v1534
        %v1536 = vlaneseq
        %v1537 = vshrl.u32 %v1536, 7
        %v1538 = vsub.s32 %v1535, %v1537
        %v1539 = vrot.slane %v1525, %v1538
        %v1540 = vcombine.low %v1532, %v1539
        %v1542 = vunpack.c.l.s4 1966171168
        %v1543 = vunpack.c.0.s8 %v1542
        %v1544 = vlaneseq
        %v1545 = vshrl.u32 %v1544, 7
        %v1546 = vsub.s32 %v1543, %v1545
        %v1547 = vrot.slane %v1540, %v1546
        %v1548 = vcombine.low %v829, %v1547
        %v1550 = vunpack.c.l.s4 1966171168
        %v1551 = vunpack.c.0.s8 %v1550
        %v1552 = vlaneseq
        %v1553 = vshrl.u32 %v1552, 7
        %v1554 = vsub.s32 %v1551, %v1553
        %v1555 = vrot.slane %v1447, %v1554
        %v1557 = vunpack.c.l.s4 1966171168
        %v1558 = vunpack.c.0.s8 %v1557
        %v1559 = vlaneseq
        %v1560 = vshrl.u32 %v1559, 7
        %v1561 = vsub.s32 %v1558, %v1560
        %v1562 = vrot.slane %v1555, %v1561
        %v1563 = vsel %vm845, %v1490, 0
        %v1565 = vsel %vm845, %v1523, 0
        %v1567 = vsel %vm845, %v1548, 0
        %v1569 = vsel %vm845, %v1562, 0
        %1571 = vmatprep.subr.mxu0 0.0
        %1572 = vmatpush1.msra.mxu0 %v1457
        %1573 = vmatprep.subr.mxu0 0.0
        %1574 = vmatpush1.msra.mxu0 0.0
        %1575 = vmatprep.subr.mxu0 0.0
        %1576 = vmatpush1.msra.mxu0 0.0
        %1577 = vmatprep.subr.mxu0 0.0
        %1578 = vmatpush1.msra.mxu0 0.0
        %1579 = vmatprep.subr.mxu0 0.0
        %1580 = vmatpush1.msra.mxu0 0.0
        %1581 = vmatprep.subr.mxu0 0.0
        %1582 = vmatpush1.msra.mxu0 0.0
        %1583 = vmatprep.subr.mxu0 0.0
        %1584 = vmatpush1.msra.mxu0 0.0
        %1585 = vmatprep.subr.mxu0 0.0
        %1586 = vmatpush1.msra.mxu0 0.0
        %1587 = vmatprep.subr.mxu0 0.0
        %1588 = vmatpush1.msra.mxu0 0.0
        %1589 = vmatprep.subr.mxu0 0.0
        %1590 = vmatpush1.msra.mxu0 0.0
        %1591 = vmatprep.subr.mxu0 0.0
        %1592 = vmatpush1.msra.mxu0 0.0
        %1593 = vmatprep.subr.mxu0 0.0
        %1594 = vmatpush1.msra.mxu0 0.0
        %1595 = vmatprep.subr.mxu0 0.0
        %1596 = vmatpush1.msra.mxu0 0.0
        %1597 = vmatprep.subr.mxu0 0.0
        %1598 = vmatpush1.msra.mxu0 0.0
        %1599 = vmatprep.subr.mxu0 0.0
        %1600 = vmatpush1.msra.mxu0 0.0
        %1601 = vmatprep.subr.mxu0 0.0
        %1602 = vmatpush1.msra.mxu0 0.0
        %1603 = vmatprep.subr.mxu0 0.0
        %1604 = vmatpush1.msra.mxu0 0.0
        %1605 = vmatprep.subr.mxu0 0.0
        %1606 = vmatpush1.msra.mxu0 0.0
        %1607 = vmatprep.subr.mxu0 0.0
        %1608 = vmatpush1.msra.mxu0 0.0
        %1609 = vmatprep.subr.mxu0 0.0
        %1610 = vmatpush1.msra.mxu0 0.0
        %1611 = vmatprep.subr.mxu0 0.0
        %1612 = vmatpush1.msra.mxu0 0.0
        %1613 = vmatprep.subr.mxu0 0.0
        %1614 = vmatpush1.msra.mxu0 0.0
        %1615 = vmatprep.subr.mxu0 0.0
        %1616 = vmatpush1.msra.mxu0 0.0
        %1617 = vmatprep.subr.mxu0 0.0
        %1618 = vmatpush1.msra.mxu0 0.0
        %1619 = vmatprep.subr.mxu0 0.0
        %1620 = vmatpush1.msra.mxu0 0.0
        %1621 = vmatprep.subr.mxu0 0.0
        %1622 = vmatpush1.msra.mxu0 0.0
        %1623 = vmatprep.subr.mxu0 0.0
        %1624 = vmatpush1.msra.mxu0 0.0
        %1625 = vmatprep.subr.mxu0 0.0
        %1626 = vmatpush1.msra.mxu0 0.0
        %1627 = vmatprep.subr.mxu0 0.0
        %1628 = vmatpush1.msra.mxu0 0.0
        %1629 = vmatprep.subr.mxu0 0.0
        %1630 = vmatpush1.msra.mxu0 0.0
        %1631 = vmatprep.subr.mxu0 0.0
        %1632 = vmatpush1.msra.mxu0 0.0
        %1633 = vmatprep.subr.mxu0 0.0
        %1634 = vmatpush1.msra.mxu0 0.0
        %1635 = vmatprep.mubr.f32.mxu0 0.0
        %1636 = vmatmul.mubr.f32.gmra.mrb[0].mxu0 %v1563
        %v1637 = vpop.f32.mrb[0].mxu0
        %v1638 = vadd.f32 0.0, %v1637
        %v1639 = vpop.f32.mrb[0].mxu0
        %1640 = vmatprep.mubr.f32.mxu0 0.0
        %1641 = vmatmul.mubr.f32.gmra.mrb[0].mxu0 %v1565
        %v1642 = vpop.f32.mrb[0].mxu0
        %v1643 = vadd.f32 0.0, %v1642
        %v1644 = vpop.f32.mrb[0].mxu0
        %1645 = vmatprep.mubr.f32.mxu0 0.0
        %1646 = vmatmul.mubr.f32.gmra.mrb[0].mxu0 %v1567
        %v1647 = vpop.f32.mrb[0].mxu0
        %v1648 = vadd.f32 0.0, %v1647
        %v1649 = vpop.f32.mrb[0].mxu0
        %1650 = vmatprep.mubr.f32.mxu0 0.0
        %1651 = vmatmul.mubr.f32.gmra.mrb[0].mxu0 %v1569
        %v1652 = vpop.f32.mrb[0].mxu0
        %v1653 = vadd.f32 0.0, %v1652
        %v1654 = vpop.f32.mrb[0].mxu0
        %1655 = vdwg.mxu0
        %v1656 = vadd.f32 %v1413, %v1638
        %v1657 = vadd.f32 %v1414, %v1643
        %v1658 = vadd.f32 %v1415, %v1648
        %v1659 = vadd.f32 %v1416, %v1653
        %v1660 = vcombine.high %v1432, %v1432
        %v1662 = vunpack.c.l.s4 1966171168
        %v1663 = vunpack.c.0.s8 %v1662
        %v1664 = vlaneseq
        %v1665 = vshrl.u32 %v1664, 7
        %v1666 = vsub.s32 %v1663, %v1665
        %v1667 = vrot.slane %v1660, %v1666
        %v1668 = vld [vmem:[%s3 + $0x20] sm:$0xff]
        %v1669 = vcombine.low %v658, %v561
        %v1671 = vunpack.c.l.s4 1966171168
        %v1672 = vunpack.c.0.s8 %v1671
        %v1673 = vlaneseq
        %v1674 = vshrl.u32 %v1673, 7
        %v1675 = vsub.s32 %v1672, %v1674
        %v1676 = vrot.slane %v1669, %v1675
        %v1677 = vcombine.low %v970, %v998
        %v1678 = vcombine.low %v1676, %v1012
        %v1680 = vunpack.c.l.s4 1966171168
        %v1681 = vunpack.c.0.s8 %v1680
        %v1682 = vlaneseq
        %v1683 = vshrl.u32 %v1682, 7
        %v1684 = vsub.s32 %v1681, %v1683
        %v1685 = vrot.slane %v1677, %v1684
        %v1687 = vunpack.c.l.s4 1966171168
        %v1688 = vunpack.c.0.s8 %v1687
        %v1689 = vlaneseq
        %v1690 = vshrl.u32 %v1689, 7
        %v1691 = vsub.s32 %v1688, %v1690
        %v1692 = vrot.slane %v1678, %v1691
        %v1693 = vcombine.low %v1685, %v1692
        %v1694 = vcombine.low %v674, %v639
        %v1696 = vunpack.c.l.s4 1966171168
        %v1697 = vunpack.c.0.s8 %v1696
        %v1698 = vlaneseq
        %v1699 = vshrl.u32 %v1698, 7
        %v1700 = vsub.s32 %v1697, %v1699
        %v1701 = vrot.slane %v1694, %v1700
        %v1702 = vcombine.low %v1248, %v1047
        %v1703 = vcombine.low %v1054, %v1701
        %v1705 = vunpack.c.l.s4 1966171168
        %v1706 = vunpack.c.0.s8 %v1705
        %v1707 = vlaneseq
        %v1708 = vshrl.u32 %v1707, 7
        %v1709 = vsub.s32 %v1706, %v1708
        %v1710 = vrot.slane %v1702, %v1709
        %v1712 = vunpack.c.l.s4 1966171168
        %v1713 = vunpack.c.0.s8 %v1712
        %v1714 = vlaneseq
        %v1715 = vshrl.u32 %v1714, 7
        %v1716 = vsub.s32 %v1713, %v1715
        %v1717 = vrot.slane %v1703, %v1716
        %v1718 = vcombine.low %v1710, %v1717
        %v1719 = vcombine.low %v1454, %v1455
        %v1720 = vcombine.low %v1456, %v1447
        %v1722 = vunpack.c.l.s4 1966171168
        %v1723 = vunpack.c.0.s8 %v1722
        %v1724 = vlaneseq
        %v1725 = vshrl.u32 %v1724, 7
        %v1726 = vsub.s32 %v1723, %v1725
        %v1727 = vrot.slane %v1719, %v1726
        %v1729 = vunpack.c.l.s4 1966171168
        %v1730 = vunpack.c.0.s8 %v1729
        %v1731 = vlaneseq
        %v1732 = vshrl.u32 %v1731, 7
        %v1733 = vsub.s32 %v1730, %v1732
        %v1734 = vrot.slane %v1720, %v1733
        %v1735 = vcombine.low %v1727, %v1734
        %v1737 = vunpack.c.l.s4 1966171168
        %v1738 = vunpack.c.0.s8 %v1737
        %v1739 = vlaneseq
        %v1740 = vshrl.u32 %v1739, 7
        %v1741 = vsub.s32 %v1738, %v1740
        %v1742 = vrot.slane %v1735, %v1741
        %v1743 = vcombine.low %v1304, %v1742
        %v1745 = vunpack.c.l.s4 1966171168
        %v1746 = vunpack.c.0.s8 %v1745
        %v1747 = vlaneseq
        %v1748 = vshrl.u32 %v1747, 7
        %v1749 = vsub.s32 %v1746, %v1748
        %v1750 = vrot.slane %v1667, %v1749
        %v1752 = vunpack.c.l.s4 1966171168
        %v1753 = vunpack.c.0.s8 %v1752
        %v1754 = vlaneseq
        %v1755 = vshrl.u32 %v1754, 7
        %v1756 = vsub.s32 %v1753, %v1755
        %v1757 = vrot.slane %v1750, %v1756
        %v1758 = vsel %vm845, %v1693, 0
        %v1760 = vsel %vm845, %v1718, 0
        %v1762 = vsel %vm845, %v1743, 0
        %v1764 = vsel %vm845, %v1757, 0
        %1766 = vmatprep.subr.mxu0 0.0
        %1767 = vmatpush1.msra.mxu0 %v1668
        %1768 = vmatprep.subr.mxu0 0.0
        %1769 = vmatpush1.msra.mxu0 0.0
        %1770 = vmatprep.subr.mxu0 0.0
        %1771 = vmatpush1.msra.mxu0 0.0
        %1772 = vmatprep.subr.mxu0 0.0
        %1773 = vmatpush1.msra.mxu0 0.0
        %1774 = vmatprep.subr.mxu0 0.0
        %1775 = vmatpush1.msra.mxu0 0.0
        %1776 = vmatprep.subr.mxu0 0.0
        %1777 = vmatpush1.msra.mxu0 0.0
        %1778 = vmatprep.subr.mxu0 0.0
        %1779 = vmatpush1.msra.mxu0 0.0
        %1780 = vmatprep.subr.mxu0 0.0
        %1781 = vmatpush1.msra.mxu0 0.0
        %1782 = vmatprep.subr.mxu0 0.0
        %1783 = vmatpush1.msra.mxu0 0.0
        %1784 = vmatprep.subr.mxu0 0.0
        %1785 = vmatpush1.msra.mxu0 0.0
        %1786 = vmatprep.subr.mxu0 0.0
        %1787 = vmatpush1.msra.mxu0 0.0
        %1788 = vmatprep.subr.mxu0 0.0
        %1789 = vmatpush1.msra.mxu0 0.0
        %1790 = vmatprep.subr.mxu0 0.0
        %1791 = vmatpush1.msra.mxu0 0.0
        %1792 = vmatprep.subr.mxu0 0.0
        %1793 = vmatpush1.msra.mxu0 0.0
        %1794 = vmatprep.subr.mxu0 0.0
        %1795 = vmatpush1.msra.mxu0 0.0
        %1796 = vmatprep.subr.mxu0 0.0
        %1797 = vmatpush1.msra.mxu0 0.0
        %1798 = vmatprep.subr.mxu0 0.0
        %1799 = vmatpush1.msra.mxu0 0.0
        %1800 = vmatprep.subr.mxu0 0.0
        %1801 = vmatpush1.msra.mxu0 0.0
        %1802 = vmatprep.subr.mxu0 0.0
        %1803 = vmatpush1.msra.mxu0 0.0
        %1804 = vmatprep.subr.mxu0 0.0
        %1805 = vmatpush1.msra.mxu0 0.0
        %1806 = vmatprep.subr.mxu0 0.0
        %1807 = vmatpush1.msra.mxu0 0.0
        %1808 = vmatprep.subr.mxu0 0.0
        %1809 = vmatpush1.msra.mxu0 0.0
        %1810 = vmatprep.subr.mxu0 0.0
        %1811 = vmatpush1.msra.mxu0 0.0
        %1812 = vmatprep.subr.mxu0 0.0
        %1813 = vmatpush1.msra.mxu0 0.0
        %1814 = vmatprep.subr.mxu0 0.0
        %1815 = vmatpush1.msra.mxu0 0.0
        %1816 = vmatprep.subr.mxu0 0.0
        %1817 = vmatpush1.msra.mxu0 0.0
        %1818 = vmatprep.subr.mxu0 0.0
        %1819 = vmatpush1.msra.mxu0 0.0
        %1820 = vmatprep.subr.mxu0 0.0
        %1821 = vmatpush1.msra.mxu0 0.0
        %1822 = vmatprep.subr.mxu0 0.0
        %1823 = vmatpush1.msra.mxu0 0.0
        %1824 = vmatprep.subr.mxu0 0.0
        %1825 = vmatpush1.msra.mxu0 0.0
        %1826 = vmatprep.subr.mxu0 0.0
        %1827 = vmatpush1.msra.mxu0 0.0
        %1828 = vmatprep.subr.mxu0 0.0
        %1829 = vmatpush1.msra.mxu0 0.0
        %1830 = vmatprep.mubr.f32.mxu0 0.0
        %1831 = vmatmul.mubr.f32.gmra.mrb[0].mxu0 %v1758
        %v1832 = vpop.f32.mrb[0].mxu0
        %v1833 = vadd.f32 0.0, %v1832
        %v1834 = vpop.f32.mrb[0].mxu0
        %1835 = vmatprep.mubr.f32.mxu0 0.0
        %1836 = vmatmul.mubr.f32.gmra.mrb[0].mxu0 %v1760
        %v1837 = vpop.f32.mrb[0].mxu0
        %v1838 = vadd.f32 0.0, %v1837
        %v1839 = vpop.f32.mrb[0].mxu0
        %1840 = vmatprep.mubr.f32.mxu0 0.0
        %1841 = vmatmul.mubr.f32.gmra.mrb[0].mxu0 %v1762
        %v1842 = vpop.f32.mrb[0].mxu0
        %v1843 = vadd.f32 0.0, %v1842
        %v1844 = vpop.f32.mrb[0].mxu0
        %1845 = vmatprep.mubr.f32.mxu0 0.0
        %1846 = vmatmul.mubr.f32.gmra.mrb[0].mxu0 %v1764
        %v1847 = vpop.f32.mrb[0].mxu0
        %v1848 = vadd.f32 0.0, %v1847
        %v1849 = vpop.f32.mrb[0].mxu0
        %1850 = vdwg.mxu0
        %v1851 = vadd.f32 %v1656, %v1833
        %v1852 = vadd.f32 %v1657, %v1838
        %v1853 = vadd.f32 %v1658, %v1843
        %v1854 = vadd.f32 %v1659, %v1848
        %v1855 = vcombine.high %v1447, %v1447
        %v1856 = vld [vmem:[%s3 + $0x28] sm:$0xff]
        %v1857 = vcombine.low %v1194, %v562
        %v1859 = vunpack.c.l.s4 1966171168
        %v1860 = vunpack.c.0.s8 %v1859
        %v1861 = vlaneseq
        %v1862 = vshrl.u32 %v1861, 7
        %v1863 = vsub.s32 %v1860, %v1862
        %v1864 = vrot.slane %v1857, %v1863
        %v1865 = vcombine.low %v715, %v743
        %v1866 = vcombine.low %v1864, %v757
        %v1868 = vunpack.c.l.s4 1966171168
        %v1869 = vunpack.c.0.s8 %v1868
        %v1870 = vlaneseq
        %v1871 = vshrl.u32 %v1870, 7
        %v1872 = vsub.s32 %v1869, %v1871
        %v1873 = vrot.slane %v1865, %v1872
        %v1875 = vunpack.c.l.s4 1966171168
        %v1876 = vunpack.c.0.s8 %v1875
        %v1877 = vlaneseq
        %v1878 = vshrl.u32 %v1877, 7
        %v1879 = vsub.s32 %v1876, %v1878
        %v1880 = vrot.slane %v1866, %v1879
        %v1881 = vcombine.low %v1873, %v1880
        %v1882 = vcombine.low %v666, %v1195
        %v1883 = vcombine.low %v1196, %v640
        %v1885 = vunpack.c.l.s4 1966171168
        %v1886 = vunpack.c.0.s8 %v1885
        %v1887 = vlaneseq
        %v1888 = vshrl.u32 %v1887, 7
        %v1889 = vsub.s32 %v1886, %v1888
        %v1890 = vrot.slane %v1882, %v1889
        %v1892 = vunpack.c.l.s4 1966171168
        %v1893 = vunpack.c.0.s8 %v1892
        %v1894 = vlaneseq
        %v1895 = vshrl.u32 %v1894, 7
        %v1896 = vsub.s32 %v1893, %v1895
        %v1897 = vrot.slane %v1883, %v1896
        %v1898 = vcombine.low %v1890, %v792
        %v1899 = vcombine.low %v799, %v1897
        %v1901 = vunpack.c.l.s4 1966171168
        %v1902 = vunpack.c.0.s8 %v1901
        %v1903 = vlaneseq
        %v1904 = vshrl.u32 %v1903, 7
        %v1905 = vsub.s32 %v1902, %v1904
        %v1906 = vrot.slane %v1898, %v1905
        %v1908 = vunpack.c.l.s4 1966171168
        %v1909 = vunpack.c.0.s8 %v1908
        %v1910 = vlaneseq
        %v1911 = vshrl.u32 %v1910, 7
        %v1912 = vsub.s32 %v1909, %v1911
        %v1913 = vrot.slane %v1899, %v1912
        %v1914 = vcombine.low %v1906, %v1913
        %v1915 = vcombine.low %v682, %v1197
        %v1916 = vcombine.low %v1447, %v1667
        %v1918 = vunpack.c.l.s4 1966171168
        %v1919 = vunpack.c.0.s8 %v1918
        %v1920 = vlaneseq
        %v1921 = vshrl.u32 %v1920, 7
        %v1922 = vsub.s32 %v1919, %v1921
        %v1923 = vrot.slane %v1915, %v1922
        %v1925 = vunpack.c.l.s4 1966171168
        %v1926 = vunpack.c.0.s8 %v1925
        %v1927 = vlaneseq
        %v1928 = vshrl.u32 %v1927, 7
        %v1929 = vsub.s32 %v1926, %v1928
        %v1930 = vrot.slane %v1916, %v1929
        %v1931 = vcombine.low %v813, %v1923
        %v1932 = vcombine.low %v1539, %v1930
        %v1934 = vunpack.c.l.s4 1966171168
        %v1935 = vunpack.c.0.s8 %v1934
        %v1936 = vlaneseq
        %v1937 = vshrl.u32 %v1936, 7
        %v1938 = vsub.s32 %v1935, %v1937
        %v1939 = vrot.slane %v1931, %v1938
        %v1941 = vunpack.c.l.s4 1966171168
        %v1942 = vunpack.c.0.s8 %v1941
        %v1943 = vlaneseq
        %v1944 = vshrl.u32 %v1943, 7
        %v1945 = vsub.s32 %v1942, %v1944
        %v1946 = vrot.slane %v1932, %v1945
        %v1947 = vcombine.low %v1939, %v1946
        %v1949 = vunpack.c.l.s4 1966171168
        %v1950 = vunpack.c.0.s8 %v1949
        %v1951 = vlaneseq
        %v1952 = vshrl.u32 %v1951, 7
        %v1953 = vsub.s32 %v1950, %v1952
        %v1954 = vrot.slane %v1855, %v1953
        %v1956 = vunpack.c.l.s4 1966171168
        %v1957 = vunpack.c.0.s8 %v1956
        %v1958 = vlaneseq
        %v1959 = vshrl.u32 %v1958, 7
        %v1960 = vsub.s32 %v1957, %v1959
        %v1961 = vrot.slane %v1954, %v1960
        %v1962 = vsel %vm845, %v1881, 0
        %v1964 = vsel %vm845, %v1914, 0
        %v1966 = vsel %vm845, %v1947, 0
        %v1968 = vsel %vm845, %v1961, 0
        %1970 = vmatprep.subr.mxu0 0.0
        %1971 = vmatpush1.msra.mxu0 %v1856
        %1972 = vmatprep.subr.mxu0 0.0
        %1973 = vmatpush1.msra.mxu0 0.0
        %1974 = vmatprep.subr.mxu0 0.0
        %1975 = vmatpush1.msra.mxu0 0.0
        %1976 = vmatprep.subr.mxu0 0.0
        %1977 = vmatpush1.msra.mxu0 0.0
        %1978 = vmatprep.subr.mxu0 0.0
        %1979 = vmatpush1.msra.mxu0 0.0
        %1980 = vmatprep.subr.mxu0 0.0
        %1981 = vmatpush1.msra.mxu0 0.0
        %1982 = vmatprep.subr.mxu0 0.0
        %1983 = vmatpush1.msra.mxu0 0.0
        %1984 = vmatprep.subr.mxu0 0.0
        %1985 = vmatpush1.msra.mxu0 0.0
        %1986 = vmatprep.subr.mxu0 0.0
        %1987 = vmatpush1.msra.mxu0 0.0
        %1988 = vmatprep.subr.mxu0 0.0
        %1989 = vmatpush1.msra.mxu0 0.0
        %1990 = vmatprep.subr.mxu0 0.0
        %1991 = vmatpush1.msra.mxu0 0.0
        %1992 = vmatprep.subr.mxu0 0.0
        %1993 = vmatpush1.msra.mxu0 0.0
        %1994 = vmatprep.subr.mxu0 0.0
        %1995 = vmatpush1.msra.mxu0 0.0
        %1996 = vmatprep.subr.mxu0 0.0
        %1997 = vmatpush1.msra.mxu0 0.0
        %1998 = vmatprep.subr.mxu0 0.0
        %1999 = vmatpush1.msra.mxu0 0.0
        %2000 = vmatprep.subr.mxu0 0.0
        %2001 = vmatpush1.msra.mxu0 0.0
        %2002 = vmatprep.subr.mxu0 0.0
        %2003 = vmatpush1.msra.mxu0 0.0
        %2004 = vmatprep.subr.mxu0 0.0
        %2005 = vmatpush1.msra.mxu0 0.0
        %2006 = vmatprep.subr.mxu0 0.0
        %2007 = vmatpush1.msra.mxu0 0.0
        %2008 = vmatprep.subr.mxu0 0.0
        %2009 = vmatpush1.msra.mxu0 0.0
        %2010 = vmatprep.subr.mxu0 0.0
        %2011 = vmatpush1.msra.mxu0 0.0
        %2012 = vmatprep.subr.mxu0 0.0
        %2013 = vmatpush1.msra.mxu0 0.0
        %2014 = vmatprep.subr.mxu0 0.0
        %2015 = vmatpush1.msra.mxu0 0.0
        %2016 = vmatprep.subr.mxu0 0.0
        %2017 = vmatpush1.msra.mxu0 0.0
        %2018 = vmatprep.subr.mxu0 0.0
        %2019 = vmatpush1.msra.mxu0 0.0
        %2020 = vmatprep.subr.mxu0 0.0
        %2021 = vmatpush1.msra.mxu0 0.0
        %2022 = vmatprep.subr.mxu0 0.0
        %2023 = vmatpush1.msra.mxu0 0.0
        %2024 = vmatprep.subr.mxu0 0.0
        %2025 = vmatpush1.msra.mxu0 0.0
        %2026 = vmatprep.subr.mxu0 0.0
        %2027 = vmatpush1.msra.mxu0 0.0
        %2028 = vmatprep.subr.mxu0 0.0
        %2029 = vmatpush1.msra.mxu0 0.0
        %2030 = vmatprep.subr.mxu0 0.0
        %2031 = vmatpush1.msra.mxu0 0.0
        %2032 = vmatprep.subr.mxu0 0.0
        %2033 = vmatpush1.msra.mxu0 0.0
        %2034 = vmatprep.mubr.f32.mxu0 0.0
        %2035 = vmatmul.mubr.f32.gmra.mrb[0].mxu0 %v1962
        %v2036 = vpop.f32.mrb[0].mxu0
        %v2037 = vadd.f32 0.0, %v2036
        %v2038 = vpop.f32.mrb[0].mxu0
        %2039 = vmatprep.mubr.f32.mxu0 0.0
        %2040 = vmatmul.mubr.f32.gmra.mrb[0].mxu0 %v1964
        %v2041 = vpop.f32.mrb[0].mxu0
        %v2042 = vadd.f32 0.0, %v2041
        %v2043 = vpop.f32.mrb[0].mxu0
        %2044 = vmatprep.mubr.f32.mxu0 0.0
        %2045 = vmatmul.mubr.f32.gmra.mrb[0].mxu0 %v1966
        %v2046 = vpop.f32.mrb[0].mxu0
        %v2047 = vadd.f32 0.0, %v2046
        %v2048 = vpop.f32.mrb[0].mxu0
        %2049 = vmatprep.mubr.f32.mxu0 0.0
        %2050 = vmatmul.mubr.f32.gmra.mrb[0].mxu0 %v1968
        %v2051 = vpop.f32.mrb[0].mxu0
        %v2052 = vadd.f32 0.0, %v2051
        %v2053 = vpop.f32.mrb[0].mxu0
        %2054 = vdwg.mxu0
        %v2055 = vadd.f32 %v1851, %v2037
        %v2056 = vadd.f32 %v1852, %v2042
        %v2057 = vadd.f32 %v1853, %v2047
        %v2058 = vadd.f32 %v1854, %v2052
        %v2060 = vcombine.high %v441, %v441
        %v2062 = vunpack.c.l.s4 1966171168
        %v2063 = vunpack.c.0.s8 %v2062
        %v2064 = vlaneseq
        %v2065 = vshrl.u32 %v2064, 7
        %v2066 = vsub.s32 %v2063, %v2065
        %v2067 = vrot.slane %v441, %v2066
        %v2069 = vunpack.c.l.s4 1966171168
        %v2070 = vunpack.c.0.s8 %v2069
        %v2071 = vlaneseq
        %v2072 = vshrl.u32 %v2071, 7
        %v2073 = vsub.s32 %v2070, %v2072
        %v2074 = vrot.slane %v2060, %v2073
        %v2075 = vcombine.high %v2067, %v2067
        %v2077 = vunpack.c.l.s4 1966171168
        %v2078 = vunpack.c.0.s8 %v2077
        %v2079 = vlaneseq
        %v2080 = vshrl.u32 %v2079, 7
        %v2081 = vsub.s32 %v2078, %v2080
        %v2082 = vrot.slane %v2067, %v2081
        %v2084 = vunpack.c.l.s4 1966171168
        %v2085 = vunpack.c.0.s8 %v2084
        %v2086 = vlaneseq
        %v2087 = vshrl.u32 %v2086, 7
        %v2088 = vsub.s32 %v2085, %v2087
        %v2089 = vrot.slane %v2074, %v2088
        %v2091 = vunpack.c.l.s4 1966171168
        %v2092 = vunpack.c.0.s8 %v2091
        %v2093 = vlaneseq
        %v2094 = vshrl.u32 %v2093, 7
        %v2095 = vsub.s32 %v2092, %v2094
        %v2096 = vrot.slane %v2075, %v2095
        %v2097 = vcombine.high %v2082, %v2082
        %v2098 = vcombine.high %v2096, %v2096
        %v2099 = vld [vmem:[%s3 + $0x30] sm:$0xff]
        %v2100 = vcombine.low %v1005, %v1012
        %v2101 = vcombine.low %v1019, %v1047
        %v2103 = vunpack.c.l.s4 1966171168
        %v2104 = vunpack.c.0.s8 %v2103
        %v2105 = vlaneseq
        %v2106 = vshrl.u32 %v2105, 7
        %v2107 = vsub.s32 %v2104, %v2106
        %v2108 = vrot.slane %v2100, %v2107
        %v2110 = vunpack.c.l.s4 1966171168
        %v2111 = vunpack.c.0.s8 %v2110
        %v2112 = vlaneseq
        %v2113 = vshrl.u32 %v2112, 7
        %v2114 = vsub.s32 %v2111, %v2113
        %v2115 = vrot.slane %v2101, %v2114
        %v2116 = vcombine.low %v2108, %v2115
        %v2117 = vcombine.low %v632, %v1440
        %v2119 = vunpack.c.l.s4 1966171168
        %v2120 = vunpack.c.0.s8 %v2119
        %v2121 = vlaneseq
        %v2122 = vshrl.u32 %v2121, 7
        %v2123 = vsub.s32 %v2120, %v2122
        %v2124 = vrot.slane %v2117, %v2123
        %v2125 = vcombine.low %v1054, %v1061
        %v2126 = vcombine.low %v1068, %v2124
        %v2128 = vunpack.c.l.s4 1966171168
        %v2129 = vunpack.c.0.s8 %v2128
        %v2130 = vlaneseq
        %v2131 = vshrl.u32 %v2130, 7
        %v2132 = vsub.s32 %v2129, %v2131
        %v2133 = vrot.slane %v2125, %v2132
        %v2135 = vunpack.c.l.s4 1966171168
        %v2136 = vunpack.c.0.s8 %v2135
        %v2137 = vlaneseq
        %v2138 = vshrl.u32 %v2137, 7
        %v2139 = vsub.s32 %v2136, %v2138
        %v2140 = vrot.slane %v2126, %v2139
        %v2141 = vcombine.low %v2133, %v2140
        %v2142 = vcombine.low %v2082, %v2096
        %v2143 = vcombine.low %v2097, %v2098
        %v2145 = vunpack.c.l.s4 1966171168
        %v2146 = vunpack.c.0.s8 %v2145
        %v2147 = vlaneseq
        %v2148 = vshrl.u32 %v2147, 7
        %v2149 = vsub.s32 %v2146, %v2148
        %v2150 = vrot.slane %v2142, %v2149
        %v2152 = vunpack.c.l.s4 1966171168
        %v2153 = vunpack.c.0.s8 %v2152
        %v2154 = vlaneseq
        %v2155 = vshrl.u32 %v2154, 7
        %v2156 = vsub.s32 %v2153, %v2155
        %v2157 = vrot.slane %v2143, %v2156
        %v2158 = vcombine.low %v2150, %v2157
        %v2160 = vunpack.c.l.s4 1966171168
        %v2161 = vunpack.c.0.s8 %v2160
        %v2162 = vlaneseq
        %v2163 = vshrl.u32 %v2162, 7
        %v2164 = vsub.s32 %v2161, %v2163
        %v2165 = vrot.slane %v2158, %v2164
        %v2166 = vcombine.low %v1742, %v2165
        %v2168 = vunpack.c.l.s4 1966171168
        %v2169 = vunpack.c.0.s8 %v2168
        %v2170 = vlaneseq
        %v2171 = vshrl.u32 %v2170, 7
        %v2172 = vsub.s32 %v2169, %v2171
        %v2173 = vrot.slane %v2089, %v2172
        %v2175 = vunpack.c.l.s4 1966171168
        %v2176 = vunpack.c.0.s8 %v2175
        %v2177 = vlaneseq
        %v2178 = vshrl.u32 %v2177, 7
        %v2179 = vsub.s32 %v2176, %v2178
        %v2180 = vrot.slane %v2173, %v2179
        %v2181 = vsel %vm845, %v2116, 0
        %v2183 = vsel %vm845, %v2141, 0
        %v2185 = vsel %vm845, %v2166, 0
        %v2187 = vsel %vm845, %v2180, 0
        %2189 = vmatprep.subr.mxu0 0.0
        %2190 = vmatpush1.msra.mxu0 %v2099
        %2191 = vmatprep.subr.mxu0 0.0
        %2192 = vmatpush1.msra.mxu0 0.0
        %2193 = vmatprep.subr.mxu0 0.0
        %2194 = vmatpush1.msra.mxu0 0.0
        %2195 = vmatprep.subr.mxu0 0.0
        %2196 = vmatpush1.msra.mxu0 0.0
        %2197 = vmatprep.subr.mxu0 0.0
        %2198 = vmatpush1.msra.mxu0 0.0
        %2199 = vmatprep.subr.mxu0 0.0
        %2200 = vmatpush1.msra.mxu0 0.0
        %2201 = vmatprep.subr.mxu0 0.0
        %2202 = vmatpush1.msra.mxu0 0.0
        %2203 = vmatprep.subr.mxu0 0.0
        %2204 = vmatpush1.msra.mxu0 0.0
        %2205 = vmatprep.subr.mxu0 0.0
        %2206 = vmatpush1.msra.mxu0 0.0
        %2207 = vmatprep.subr.mxu0 0.0
        %2208 = vmatpush1.msra.mxu0 0.0
        %2209 = vmatprep.subr.mxu0 0.0
        %2210 = vmatpush1.msra.mxu0 0.0
        %2211 = vmatprep.subr.mxu0 0.0
        %2212 = vmatpush1.msra.mxu0 0.0
        %2213 = vmatprep.subr.mxu0 0.0
        %2214 = vmatpush1.msra.mxu0 0.0
        %2215 = vmatprep.subr.mxu0 0.0
        %2216 = vmatpush1.msra.mxu0 0.0
        %2217 = vmatprep.subr.mxu0 0.0
        %2218 = vmatpush1.msra.mxu0 0.0
        %2219 = vmatprep.subr.mxu0 0.0
        %2220 = vmatpush1.msra.mxu0 0.0
        %2221 = vmatprep.subr.mxu0 0.0
        %2222 = vmatpush1.msra.mxu0 0.0
        %2223 = vmatprep.subr.mxu0 0.0
        %2224 = vmatpush1.msra.mxu0 0.0
        %2225 = vmatprep.subr.mxu0 0.0
        %2226 = vmatpush1.msra.mxu0 0.0
        %2227 = vmatprep.subr.mxu0 0.0
        %2228 = vmatpush1.msra.mxu0 0.0
        %2229 = vmatprep.subr.mxu0 0.0
        %2230 = vmatpush1.msra.mxu0 0.0
        %2231 = vmatprep.subr.mxu0 0.0
        %2232 = vmatpush1.msra.mxu0 0.0
        %2233 = vmatprep.subr.mxu0 0.0
        %2234 = vmatpush1.msra.mxu0 0.0
        %2235 = vmatprep.subr.mxu0 0.0
        %2236 = vmatpush1.msra.mxu0 0.0
        %2237 = vmatprep.subr.mxu0 0.0
        %2238 = vmatpush1.msra.mxu0 0.0
        %2239 = vmatprep.subr.mxu0 0.0
        %2240 = vmatpush1.msra.mxu0 0.0
        %2241 = vmatprep.subr.mxu0 0.0
        %2242 = vmatpush1.msra.mxu0 0.0
        %2243 = vmatprep.subr.mxu0 0.0
        %2244 = vmatpush1.msra.mxu0 0.0
        %2245 = vmatprep.subr.mxu0 0.0
        %2246 = vmatpush1.msra.mxu0 0.0
        %2247 = vmatprep.subr.mxu0 0.0
        %2248 = vmatpush1.msra.mxu0 0.0
        %2249 = vmatprep.subr.mxu0 0.0
        %2250 = vmatpush1.msra.mxu0 0.0
        %2251 = vmatprep.subr.mxu0 0.0
        %2252 = vmatpush1.msra.mxu0 0.0
        %2253 = vmatprep.mubr.f32.mxu0 0.0
        %2254 = vmatmul.mubr.f32.gmra.mrb[0].mxu0 %v2181
        %v2255 = vpop.f32.mrb[0].mxu0
        %v2256 = vadd.f32 0.0, %v2255
        %v2257 = vpop.f32.mrb[0].mxu0
        %2258 = vmatprep.mubr.f32.mxu0 0.0
        %2259 = vmatmul.mubr.f32.gmra.mrb[0].mxu0 %v2183
        %v2260 = vpop.f32.mrb[0].mxu0
        %v2261 = vadd.f32 0.0, %v2260
        %v2262 = vpop.f32.mrb[0].mxu0
        %2263 = vmatprep.mubr.f32.mxu0 0.0
        %2264 = vmatmul.mubr.f32.gmra.mrb[0].mxu0 %v2185
        %v2265 = vpop.f32.mrb[0].mxu0
        %v2266 = vadd.f32 0.0, %v2265
        %v2267 = vpop.f32.mrb[0].mxu0
        %2268 = vmatprep.mubr.f32.mxu0 0.0
        %2269 = vmatmul.mubr.f32.gmra.mrb[0].mxu0 %v2187
        %v2270 = vpop.f32.mrb[0].mxu0
        %v2271 = vadd.f32 0.0, %v2270
        %v2272 = vpop.f32.mrb[0].mxu0
        %2273 = vdwg.mxu0
        %v2274 = vadd.f32 %v2055, %v2256
        %v2275 = vadd.f32 %v2056, %v2261
        %v2276 = vadd.f32 %v2057, %v2266
        %v2277 = vadd.f32 %v2058, %v2271
        %v2278 = vcombine.high %v2074, %v2074
        %v2280 = vunpack.c.l.s4 1966171168
        %v2281 = vunpack.c.0.s8 %v2280
        %v2282 = vlaneseq
        %v2283 = vshrl.u32 %v2282, 7
        %v2284 = vsub.s32 %v2281, %v2283
        %v2285 = vrot.slane %v2278, %v2284
        %v2286 = vld [vmem:[%s3 + $0x38] sm:$0xff]
        %v2287 = vcombine.low %v750, %v757
        %v2288 = vcombine.low %v764, %v792
        %v2290 = vunpack.c.l.s4 1966171168
        %v2291 = vunpack.c.0.s8 %v2290
        %v2292 = vlaneseq
        %v2293 = vshrl.u32 %v2292, 7
        %v2294 = vsub.s32 %v2291, %v2293
        %v2295 = vrot.slane %v2287, %v2294
        %v2297 = vunpack.c.l.s4 1966171168
        %v2298 = vunpack.c.0.s8 %v2297
        %v2299 = vlaneseq
        %v2300 = vshrl.u32 %v2299, 7
        %v2301 = vsub.s32 %v2298, %v2300
        %v2302 = vrot.slane %v2288, %v2301
        %v2303 = vcombine.low %v2295, %v2302
        %v2304 = vcombine.low %v682, %v1454
        %v2306 = vunpack.c.l.s4 1966171168
        %v2307 = vunpack.c.0.s8 %v2306
        %v2308 = vlaneseq
        %v2309 = vshrl.u32 %v2308, 7
        %v2310 = vsub.s32 %v2307, %v2309
        %v2311 = vrot.slane %v2304, %v2310
        %v2312 = vcombine.low %v799, %v806
        %v2313 = vcombine.low %v813, %v2311
        %v2315 = vunpack.c.l.s4 1966171168
        %v2316 = vunpack.c.0.s8 %v2315
        %v2317 = vlaneseq
        %v2318 = vshrl.u32 %v2317, 7
        %v2319 = vsub.s32 %v2316, %v2318
        %v2320 = vrot.slane %v2312, %v2319
        %v2322 = vunpack.c.l.s4 1966171168
        %v2323 = vunpack.c.0.s8 %v2322
        %v2324 = vlaneseq
        %v2325 = vshrl.u32 %v2324, 7
        %v2326 = vsub.s32 %v2323, %v2325
        %v2327 = vrot.slane %v2313, %v2326
        %v2328 = vcombine.low %v2320, %v2327
        %v2329 = vcombine.low %v2096, %v2097
        %v2330 = vcombine.low %v2098, %v2089
        %v2332 = vunpack.c.l.s4 1966171168
        %v2333 = vunpack.c.0.s8 %v2332
        %v2334 = vlaneseq
        %v2335 = vshrl.u32 %v2334, 7
        %v2336 = vsub.s32 %v2333, %v2335
        %v2337 = vrot.slane %v2329, %v2336
        %v2339 = vunpack.c.l.s4 1966171168
        %v2340 = vunpack.c.0.s8 %v2339
        %v2341 = vlaneseq
        %v2342 = vshrl.u32 %v2341, 7
        %v2343 = vsub.s32 %v2340, %v2342
        %v2344 = vrot.slane %v2330, %v2343
        %v2345 = vcombine.low %v2337, %v2344
        %v2347 = vunpack.c.l.s4 1966171168
        %v2348 = vunpack.c.0.s8 %v2347
        %v2349 = vlaneseq
        %v2350 = vshrl.u32 %v2349, 7
        %v2351 = vsub.s32 %v2348, %v2350
        %v2352 = vrot.slane %v2345, %v2351
        %v2353 = vcombine.low %v1946, %v2352
        %v2355 = vunpack.c.l.s4 1966171168
        %v2356 = vunpack.c.0.s8 %v2355
        %v2357 = vlaneseq
        %v2358 = vshrl.u32 %v2357, 7
        %v2359 = vsub.s32 %v2356, %v2358
        %v2360 = vrot.slane %v2285, %v2359
        %v2362 = vunpack.c.l.s4 1966171168
        %v2363 = vunpack.c.0.s8 %v2362
        %v2364 = vlaneseq
        %v2365 = vshrl.u32 %v2364, 7
        %v2366 = vsub.s32 %v2363, %v2365
        %v2367 = vrot.slane %v2360, %v2366
        %v2368 = vsel %vm845, %v2303, 0
        %v2370 = vsel %vm845, %v2328, 0
        %v2372 = vsel %vm845, %v2353, 0
        %v2374 = vsel %vm845, %v2367, 0
        %2376 = vmatprep.subr.mxu0 0.0
        %2377 = vmatpush1.msra.mxu0 %v2286
        %2378 = vmatprep.subr.mxu0 0.0
        %2379 = vmatpush1.msra.mxu0 0.0
        %2380 = vmatprep.subr.mxu0 0.0
        %2381 = vmatpush1.msra.mxu0 0.0
        %2382 = vmatprep.subr.mxu0 0.0
        %2383 = vmatpush1.msra.mxu0 0.0
        %2384 = vmatprep.subr.mxu0 0.0
        %2385 = vmatpush1.msra.mxu0 0.0
        %2386 = vmatprep.subr.mxu0 0.0
        %2387 = vmatpush1.msra.mxu0 0.0
        %2388 = vmatprep.subr.mxu0 0.0
        %2389 = vmatpush1.msra.mxu0 0.0
        %2390 = vmatprep.subr.mxu0 0.0
        %2391 = vmatpush1.msra.mxu0 0.0
        %2392 = vmatprep.subr.mxu0 0.0
        %2393 = vmatpush1.msra.mxu0 0.0
        %2394 = vmatprep.subr.mxu0 0.0
        %2395 = vmatpush1.msra.mxu0 0.0
        %2396 = vmatprep.subr.mxu0 0.0
        %2397 = vmatpush1.msra.mxu0 0.0
        %2398 = vmatprep.subr.mxu0 0.0
        %2399 = vmatpush1.msra.mxu0 0.0
        %2400 = vmatprep.subr.mxu0 0.0
        %2401 = vmatpush1.msra.mxu0 0.0
        %2402 = vmatprep.subr.mxu0 0.0
        %2403 = vmatpush1.msra.mxu0 0.0
        %2404 = vmatprep.subr.mxu0 0.0
        %2405 = vmatpush1.msra.mxu0 0.0
        %2406 = vmatprep.subr.mxu0 0.0
        %2407 = vmatpush1.msra.mxu0 0.0
        %2408 = vmatprep.subr.mxu0 0.0
        %2409 = vmatpush1.msra.mxu0 0.0
        %2410 = vmatprep.subr.mxu0 0.0
        %2411 = vmatpush1.msra.mxu0 0.0
        %2412 = vmatprep.subr.mxu0 0.0
        %2413 = vmatpush1.msra.mxu0 0.0
        %2414 = vmatprep.subr.mxu0 0.0
        %2415 = vmatpush1.msra.mxu0 0.0
        %2416 = vmatprep.subr.mxu0 0.0
        %2417 = vmatpush1.msra.mxu0 0.0
        %2418 = vmatprep.subr.mxu0 0.0
        %2419 = vmatpush1.msra.mxu0 0.0
        %2420 = vmatprep.subr.mxu0 0.0
        %2421 = vmatpush1.msra.mxu0 0.0
        %2422 = vmatprep.subr.mxu0 0.0
        %2423 = vmatpush1.msra.mxu0 0.0
        %2424 = vmatprep.subr.mxu0 0.0
        %2425 = vmatpush1.msra.mxu0 0.0
        %2426 = vmatprep.subr.mxu0 0.0
        %2427 = vmatpush1.msra.mxu0 0.0
        %2428 = vmatprep.subr.mxu0 0.0
        %2429 = vmatpush1.msra.mxu0 0.0
        %2430 = vmatprep.subr.mxu0 0.0
        %2431 = vmatpush1.msra.mxu0 0.0
        %2432 = vmatprep.subr.mxu0 0.0
        %2433 = vmatpush1.msra.mxu0 0.0
        %2434 = vmatprep.subr.mxu0 0.0
        %2435 = vmatpush1.msra.mxu0 0.0
        %2436 = vmatprep.subr.mxu0 0.0
        %2437 = vmatpush1.msra.mxu0 0.0
        %2438 = vmatprep.subr.mxu0 0.0
        %2439 = vmatpush1.msra.mxu0 0.0
        %2440 = vmatprep.mubr.f32.mxu0 0.0
        %2441 = vmatmul.mubr.f32.gmra.mrb[0].mxu0 %v2368
        %v2442 = vpop.f32.mrb[0].mxu0
        %v2443 = vadd.f32 0.0, %v2442
        %v2444 = vpop.f32.mrb[0].mxu0
        %2445 = vmatprep.mubr.f32.mxu0 0.0
        %2446 = vmatmul.mubr.f32.gmra.mrb[0].mxu0 %v2370
        %v2447 = vpop.f32.mrb[0].mxu0
        %v2448 = vadd.f32 0.0, %v2447
        %v2449 = vpop.f32.mrb[0].mxu0
        %2450 = vmatprep.mubr.f32.mxu0 0.0
        %2451 = vmatmul.mubr.f32.gmra.mrb[0].mxu0 %v2372
        %v2452 = vpop.f32.mrb[0].mxu0
        %v2453 = vadd.f32 0.0, %v2452
        %v2454 = vpop.f32.mrb[0].mxu0
        %2455 = vmatprep.mubr.f32.mxu0 0.0
        %2456 = vmatmul.mubr.f32.gmra.mrb[0].mxu0 %v2374
        %v2457 = vpop.f32.mrb[0].mxu0
        %v2458 = vadd.f32 0.0, %v2457
        %v2459 = vpop.f32.mrb[0].mxu0
        %2460 = vdwg.mxu0
        %v2461 = vadd.f32 %v2274, %v2443
        %v2462 = vadd.f32 %v2275, %v2448
        %v2463 = vadd.f32 %v2276, %v2453
        %v2464 = vadd.f32 %v2277, %v2458
        %v2465 = vcombine.high %v2089, %v2089
        %v2466 = vld [vmem:[%s3 + $0x40] sm:$0xff]
        %v2467 = vcombine.low %v1012, %v1248
        %v2468 = vcombine.low %v1255, %v1054
        %v2470 = vunpack.c.l.s4 1966171168
        %v2471 = vunpack.c.0.s8 %v2470
        %v2472 = vlaneseq
        %v2473 = vshrl.u32 %v2472, 7
        %v2474 = vsub.s32 %v2471, %v2473
        %v2475 = vrot.slane %v2467, %v2474
        %v2477 = vunpack.c.l.s4 1966171168
        %v2478 = vunpack.c.0.s8 %v2477
        %v2479 = vlaneseq
        %v2480 = vshrl.u32 %v2479, 7
        %v2481 = vsub.s32 %v2478, %v2480
        %v2482 = vrot.slane %v2468, %v2481
        %v2483 = vcombine.low %v2475, %v2482
        %v2484 = vcombine.low %v1197, %v1455
        %v2486 = vunpack.c.l.s4 1966171168
        %v2487 = vunpack.c.0.s8 %v2486
        %v2488 = vlaneseq
        %v2489 = vshrl.u32 %v2488, 7
        %v2490 = vsub.s32 %v2487, %v2489
        %v2491 = vrot.slane %v2484, %v2490
        %v2492 = vcombine.low %v1281, %v1068
        %v2493 = vcombine.low %v1288, %v2491
        %v2495 = vunpack.c.l.s4 1966171168
        %v2496 = vunpack.c.0.s8 %v2495
        %v2497 = vlaneseq
        %v2498 = vshrl.u32 %v2497, 7
        %v2499 = vsub.s32 %v2496, %v2498
        %v2500 = vrot.slane %v2492, %v2499
        %v2502 = vunpack.c.l.s4 1966171168
        %v2503 = vunpack.c.0.s8 %v2502
        %v2504 = vlaneseq
        %v2505 = vshrl.u32 %v2504, 7
        %v2506 = vsub.s32 %v2503, %v2505
        %v2507 = vrot.slane %v2493, %v2506
        %v2508 = vcombine.low %v2500, %v2507
        %v2509 = vcombine.low %v1667, %v1855
        %v2510 = vcombine.low %v2089, %v2285
        %v2512 = vunpack.c.l.s4 1966171168
        %v2513 = vunpack.c.0.s8 %v2512
        %v2514 = vlaneseq
        %v2515 = vshrl.u32 %v2514, 7
        %v2516 = vsub.s32 %v2513, %v2515
        %v2517 = vrot.slane %v2509, %v2516
        %v2519 = vunpack.c.l.s4 1966171168
        %v2520 = vunpack.c.0.s8 %v2519
        %v2521 = vlaneseq
        %v2522 = vshrl.u32 %v2521, 7
        %v2523 = vsub.s32 %v2520, %v2522
        %v2524 = vrot.slane %v2510, %v2523
        %v2525 = vcombine.low %v1734, %v2517
        %v2526 = vcombine.low %v2157, %v2524
        %v2528 = vunpack.c.l.s4 1966171168
        %v2529 = vunpack.c.0.s8 %v2528
        %v2530 = vlaneseq
        %v2531 = vshrl.u32 %v2530, 7
        %v2532 = vsub.s32 %v2529, %v2531
        %v2533 = vrot.slane %v2525, %v2532
        %v2535 = vunpack.c.l.s4 1966171168
        %v2536 = vunpack.c.0.s8 %v2535
        %v2537 = vlaneseq
        %v2538 = vshrl.u32 %v2537, 7
        %v2539 = vsub.s32 %v2536, %v2538
        %v2540 = vrot.slane %v2526, %v2539
        %v2541 = vcombine.low %v2533, %v2540
        %v2543 = vunpack.c.l.s4 1966171168
        %v2544 = vunpack.c.0.s8 %v2543
        %v2545 = vlaneseq
        %v2546 = vshrl.u32 %v2545, 7
        %v2547 = vsub.s32 %v2544, %v2546
        %v2548 = vrot.slane %v2465, %v2547
        %v2550 = vunpack.c.l.s4 1966171168
        %v2551 = vunpack.c.0.s8 %v2550
        %v2552 = vlaneseq
        %v2553 = vshrl.u32 %v2552, 7
        %v2554 = vsub.s32 %v2551, %v2553
        %v2555 = vrot.slane %v2548, %v2554
        %v2556 = vsel %vm845, %v2483, 0
        %v2558 = vsel %vm845, %v2508, 0
        %v2560 = vsel %vm845, %v2541, 0
        %v2562 = vsel %vm845, %v2555, 0
        %2564 = vmatprep.subr.mxu0 0.0
        %2565 = vmatpush1.msra.mxu0 %v2466
        %2566 = vmatprep.subr.mxu0 0.0
        %2567 = vmatpush1.msra.mxu0 0.0
        %2568 = vmatprep.subr.mxu0 0.0
        %2569 = vmatpush1.msra.mxu0 0.0
        %2570 = vmatprep.subr.mxu0 0.0
        %2571 = vmatpush1.msra.mxu0 0.0
        %2572 = vmatprep.subr.mxu0 0.0
        %2573 = vmatpush1.msra.mxu0 0.0
        %2574 = vmatprep.subr.mxu0 0.0
        %2575 = vmatpush1.msra.mxu0 0.0
        %2576 = vmatprep.subr.mxu0 0.0
        %2577 = vmatpush1.msra.mxu0 0.0
        %2578 = vmatprep.subr.mxu0 0.0
        %2579 = vmatpush1.msra.mxu0 0.0
        %2580 = vmatprep.subr.mxu0 0.0
        %2581 = vmatpush1.msra.mxu0 0.0
        %2582 = vmatprep.subr.mxu0 0.0
        %2583 = vmatpush1.msra.mxu0 0.0
        %2584 = vmatprep.subr.mxu0 0.0
        %2585 = vmatpush1.msra.mxu0 0.0
        %2586 = vmatprep.subr.mxu0 0.0
        %2587 = vmatpush1.msra.mxu0 0.0
        %2588 = vmatprep.subr.mxu0 0.0
        %2589 = vmatpush1.msra.mxu0 0.0
        %2590 = vmatprep.subr.mxu0 0.0
        %2591 = vmatpush1.msra.mxu0 0.0
        %2592 = vmatprep.subr.mxu0 0.0
        %2593 = vmatpush1.msra.mxu0 0.0
        %2594 = vmatprep.subr.mxu0 0.0
        %2595 = vmatpush1.msra.mxu0 0.0
        %2596 = vmatprep.subr.mxu0 0.0
        %2597 = vmatpush1.msra.mxu0 0.0
        %2598 = vmatprep.subr.mxu0 0.0
        %2599 = vmatpush1.msra.mxu0 0.0
        %2600 = vmatprep.subr.mxu0 0.0
        %2601 = vmatpush1.msra.mxu0 0.0
        %2602 = vmatprep.subr.mxu0 0.0
        %2603 = vmatpush1.msra.mxu0 0.0
        %2604 = vmatprep.subr.mxu0 0.0
        %2605 = vmatpush1.msra.mxu0 0.0
        %2606 = vmatprep.subr.mxu0 0.0
        %2607 = vmatpush1.msra.mxu0 0.0
        %2608 = vmatprep.subr.mxu0 0.0
        %2609 = vmatpush1.msra.mxu0 0.0
        %2610 = vmatprep.subr.mxu0 0.0
        %2611 = vmatpush1.msra.mxu0 0.0
        %2612 = vmatprep.subr.mxu0 0.0
        %2613 = vmatpush1.msra.mxu0 0.0
        %2614 = vmatprep.subr.mxu0 0.0
        %2615 = vmatpush1.msra.mxu0 0.0
        %2616 = vmatprep.subr.mxu0 0.0
        %2617 = vmatpush1.msra.mxu0 0.0
        %2618 = vmatprep.subr.mxu0 0.0
        %2619 = vmatpush1.msra.mxu0 0.0
        %2620 = vmatprep.subr.mxu0 0.0
        %2621 = vmatpush1.msra.mxu0 0.0
        %2622 = vmatprep.subr.mxu0 0.0
        %2623 = vmatpush1.msra.mxu0 0.0
        %2624 = vmatprep.subr.mxu0 0.0
        %2625 = vmatpush1.msra.mxu0 0.0
        %2626 = vmatprep.subr.mxu0 0.0
        %2627 = vmatpush1.msra.mxu0 0.0
        %2628 = vmatprep.mubr.f32.mxu0 0.0
        %2629 = vmatmul.mubr.f32.gmra.mrb[0].mxu0 %v2556
        %v2630 = vpop.f32.mrb[0].mxu0
        %v2631 = vadd.f32 0.0, %v2630
        %v2632 = vpop.f32.mrb[0].mxu0
        %2633 = vmatprep.mubr.f32.mxu0 0.0
        %2634 = vmatmul.mubr.f32.gmra.mrb[0].mxu0 %v2558
        %v2635 = vpop.f32.mrb[0].mxu0
        %v2636 = vadd.f32 0.0, %v2635
        %v2637 = vpop.f32.mrb[0].mxu0
        %2638 = vmatprep.mubr.f32.mxu0 0.0
        %2639 = vmatmul.mubr.f32.gmra.mrb[0].mxu0 %v2560
        %v2640 = vpop.f32.mrb[0].mxu0
        %v2641 = vadd.f32 0.0, %v2640
        %v2642 = vpop.f32.mrb[0].mxu0
        %2643 = vmatprep.mubr.f32.mxu0 0.0
        %2644 = vmatmul.mubr.f32.gmra.mrb[0].mxu0 %v2562
        %v2645 = vpop.f32.mrb[0].mxu0
        %v2646 = vadd.f32 0.0, %v2645
        %v2647 = vpop.f32.mrb[0].mxu0
        %2648 = vdwg.mxu0
        %v2649 = vadd.f32 %v2461, %v2631
        %v2650 = vadd.f32 %v2462, %v2636
        %v2651 = vadd.f32 %v2463, %v2641
        %v2652 = vadd.f32 %v2464, %v2646
        %v2653 = vld [vmem:[%s4] sm:$0x1]
        %v2655 = vlaneseq
        %v2656 = vshrl.u32 %v2655, 7
        %v2657 = vsub.s32 0, %v2656
        %v2658 = vrot.slane %v2653, %v2657
        %v2660 = vadd.f32 %v2649, %v2658
        %v2661 = vadd.f32 %v2650, %v2658
        %v2662 = vadd.f32 %v2651, %v2658
        %v2663 = vadd.f32 %v2652, %v2658
        %v2664 = vmax.f32 %v2660, 0.0
        %v2665 = vmax.f32 %v2661, 0.0
        %v2666 = vmax.f32 %v2662, 0.0
        %v2667 = vmax.f32 %v2663, 0.0
        %v2668 = vld [vmem:[%s5] sm:$0xff]
        %v2670 = vsel %vm845, %v2664, 0
        %v2673 = vsel %vm845, %v2665, 0
        %v2676 = vsel %vm845, %v2666, 0
        %v2679 = vsel %vm845, %v2667, 0
        %2681 = vmatprep.subr.mxu0 0.0
        %2682 = vmatpush1.msra.mxu0 %v2668
        %2683 = vmatprep.subr.mxu0 0.0
        %2684 = vmatpush1.msra.mxu0 0.0
        %2685 = vmatprep.subr.mxu0 0.0
        %2686 = vmatpush1.msra.mxu0 0.0
        %2687 = vmatprep.subr.mxu0 0.0
        %2688 = vmatpush1.msra.mxu0 0.0
        %2689 = vmatprep.subr.mxu0 0.0
        %2690 = vmatpush1.msra.mxu0 0.0
        %2691 = vmatprep.subr.mxu0 0.0
        %2692 = vmatpush1.msra.mxu0 0.0
        %2693 = vmatprep.subr.mxu0 0.0
        %2694 = vmatpush1.msra.mxu0 0.0
        %2695 = vmatprep.subr.mxu0 0.0
        %2696 = vmatpush1.msra.mxu0 0.0
        %2697 = vmatprep.subr.mxu0 0.0
        %2698 = vmatpush1.msra.mxu0 0.0
        %2699 = vmatprep.subr.mxu0 0.0
        %2700 = vmatpush1.msra.mxu0 0.0
        %2701 = vmatprep.subr.mxu0 0.0
        %2702 = vmatpush1.msra.mxu0 0.0
        %2703 = vmatprep.subr.mxu0 0.0
        %2704 = vmatpush1.msra.mxu0 0.0
        %2705 = vmatprep.subr.mxu0 0.0
        %2706 = vmatpush1.msra.mxu0 0.0
        %2707 = vmatprep.subr.mxu0 0.0
        %2708 = vmatpush1.msra.mxu0 0.0
        %2709 = vmatprep.subr.mxu0 0.0
        %2710 = vmatpush1.msra.mxu0 0.0
        %2711 = vmatprep.subr.mxu0 0.0
        %2712 = vmatpush1.msra.mxu0 0.0
        %2713 = vmatprep.subr.mxu0 0.0
        %2714 = vmatpush1.msra.mxu0 0.0
        %2715 = vmatprep.subr.mxu0 0.0
        %2716 = vmatpush1.msra.mxu0 0.0
        %2717 = vmatprep.subr.mxu0 0.0
        %2718 = vmatpush1.msra.mxu0 0.0
        %2719 = vmatprep.subr.mxu0 0.0
        %2720 = vmatpush1.msra.mxu0 0.0
        %2721 = vmatprep.subr.mxu0 0.0
        %2722 = vmatpush1.msra.mxu0 0.0
        %2723 = vmatprep.subr.mxu0 0.0
        %2724 = vmatpush1.msra.mxu0 0.0
        %2725 = vmatprep.subr.mxu0 0.0
        %2726 = vmatpush1.msra.mxu0 0.0
        %2727 = vmatprep.subr.mxu0 0.0
        %2728 = vmatpush1.msra.mxu0 0.0
        %2729 = vmatprep.subr.mxu0 0.0
        %2730 = vmatpush1.msra.mxu0 0.0
        %2731 = vmatprep.subr.mxu0 0.0
        %2732 = vmatpush1.msra.mxu0 0.0
        %2733 = vmatprep.subr.mxu0 0.0
        %2734 = vmatpush1.msra.mxu0 0.0
        %2735 = vmatprep.subr.mxu0 0.0
        %2736 = vmatpush1.msra.mxu0 0.0
        %2737 = vmatprep.subr.mxu0 0.0
        %2738 = vmatpush1.msra.mxu0 0.0
        %2739 = vmatprep.subr.mxu0 0.0
        %2740 = vmatpush1.msra.mxu0 0.0
        %2741 = vmatprep.subr.mxu0 0.0
        %2742 = vmatpush1.msra.mxu0 0.0
        %2743 = vmatprep.subr.mxu0 0.0
        %2744 = vmatpush1.msra.mxu0 0.0
        %2745 = vmatprep.mubr.f32.mxu0 0.0
        %2746 = vmatmul.mubr.f32.gmra.mrb[0].mxu0 %v2670
        %v2747 = vpop.f32.mrb[0].mxu0
        %v2748 = vadd.f32 0.0, %v2747
        %v2749 = vpop.f32.mrb[0].mxu0
        %2750 = vmatprep.mubr.f32.mxu0 0.0
        %2751 = vmatmul.mubr.f32.gmra.mrb[0].mxu0 %v2673
        %v2752 = vpop.f32.mrb[0].mxu0
        %v2753 = vadd.f32 0.0, %v2752
        %v2754 = vpop.f32.mrb[0].mxu0
        %2755 = vmatprep.mubr.f32.mxu0 0.0
        %2756 = vmatmul.mubr.f32.gmra.mrb[0].mxu0 %v2676
        %v2757 = vpop.f32.mrb[0].mxu0
        %v2758 = vadd.f32 0.0, %v2757
        %v2759 = vpop.f32.mrb[0].mxu0
        %2760 = vmatprep.mubr.f32.mxu0 0.0
        %2761 = vmatmul.mubr.f32.gmra.mrb[0].mxu0 %v2679
        %v2762 = vpop.f32.mrb[0].mxu0
        %v2763 = vadd.f32 0.0, %v2762
        %v2764 = vpop.f32.mrb[0].mxu0
        %2765 = vdwg.mxu0
        %v2770 = vcombine.high %v2748, %v2748
        %v2772 = vunpack.c.l.s4 1966171168
        %v2773 = vunpack.c.0.s8 %v2772
        %v2774 = vlaneseq
        %v2775 = vshrl.u32 %v2774, 7
        %v2776 = vsub.s32 %v2773, %v2775
        %v2777 = vrot.slane %v2748, %v2776
        %v2779 = vunpack.c.l.s4 1966171168
        %v2780 = vunpack.c.0.s8 %v2779
        %v2781 = vlaneseq
        %v2782 = vshrl.u32 %v2781, 7
        %v2783 = vsub.s32 %v2780, %v2782
        %v2784 = vrot.slane %v2770, %v2783
        %v2785 = vcombine.high %v2777, %v2777
        %v2786 = vcombine.high %v2784, %v2784
        %v2788 = vunpack.c.l.s4 1966171168
        %v2789 = vunpack.c.0.s8 %v2788
        %v2790 = vlaneseq
        %v2791 = vshrl.u32 %v2790, 7
        %v2792 = vsub.s32 %v2789, %v2791
        %v2793 = vrot.slane %v2777, %v2792
        %v2795 = vunpack.c.l.s4 1966171168
        %v2796 = vunpack.c.0.s8 %v2795
        %v2797 = vlaneseq
        %v2798 = vshrl.u32 %v2797, 7
        %v2799 = vsub.s32 %v2796, %v2798
        %v2800 = vrot.slane %v2784, %v2799
        %v2802 = vunpack.c.l.s4 1966171168
        %v2803 = vunpack.c.0.s8 %v2802
        %v2804 = vlaneseq
        %v2805 = vshrl.u32 %v2804, 7
        %v2806 = vsub.s32 %v2803, %v2805
        %v2807 = vrot.slane %v2785, %v2806
        %v2809 = vunpack.c.l.s4 1966171168
        %v2810 = vunpack.c.0.s8 %v2809
        %v2811 = vlaneseq
        %v2812 = vshrl.u32 %v2811, 7
        %v2813 = vsub.s32 %v2810, %v2812
        %v2814 = vrot.slane %v2786, %v2813
        %v2815 = vcombine.high %v2793, %v2793
        %v2816 = vcombine.high %v2800, %v2800
        %v2817 = vcombine.high %v2807, %v2807
        %v2818 = vcombine.high %v2814, %v2814
        %v2819 = vcombine.high %v2753, %v2753
        %v2821 = vunpack.c.l.s4 1966171168
        %v2822 = vunpack.c.0.s8 %v2821
        %v2823 = vlaneseq
        %v2824 = vshrl.u32 %v2823, 7
        %v2825 = vsub.s32 %v2822, %v2824
        %v2826 = vrot.slane %v2753, %v2825
        %v2828 = vunpack.c.l.s4 1966171168
        %v2829 = vunpack.c.0.s8 %v2828
        %v2830 = vlaneseq
        %v2831 = vshrl.u32 %v2830, 7
        %v2832 = vsub.s32 %v2829, %v2831
        %v2833 = vrot.slane %v2819, %v2832
        %v2834 = vcombine.high %v2826, %v2826
        %v2835 = vcombine.high %v2833, %v2833
        %v2837 = vunpack.c.l.s4 1966171168
        %v2838 = vunpack.c.0.s8 %v2837
        %v2839 = vlaneseq
        %v2840 = vshrl.u32 %v2839, 7
        %v2841 = vsub.s32 %v2838, %v2840
        %v2842 = vrot.slane %v2826, %v2841
        %v2844 = vunpack.c.l.s4 1966171168
        %v2845 = vunpack.c.0.s8 %v2844
        %v2846 = vlaneseq
        %v2847 = vshrl.u32 %v2846, 7
        %v2848 = vsub.s32 %v2845, %v2847
        %v2849 = vrot.slane %v2833, %v2848
        %v2851 = vunpack.c.l.s4 1966171168
        %v2852 = vunpack.c.0.s8 %v2851
        %v2853 = vlaneseq
        %v2854 = vshrl.u32 %v2853, 7
        %v2855 = vsub.s32 %v2852, %v2854
        %v2856 = vrot.slane %v2834, %v2855
        %v2858 = vunpack.c.l.s4 1966171168
        %v2859 = vunpack.c.0.s8 %v2858
        %v2860 = vlaneseq
        %v2861 = vshrl.u32 %v2860, 7
        %v2862 = vsub.s32 %v2859, %v2861
        %v2863 = vrot.slane %v2835, %v2862
        %v2864 = vcombine.high %v2842, %v2842
        %v2865 = vcombine.high %v2849, %v2849
        %v2866 = vcombine.high %v2856, %v2856
        %v2867 = vcombine.high %v2863, %v2863
        %v2868 = vcombine.high %v2758, %v2758
        %v2870 = vunpack.c.l.s4 1966171168
        %v2871 = vunpack.c.0.s8 %v2870
        %v2872 = vlaneseq
        %v2873 = vshrl.u32 %v2872, 7
        %v2874 = vsub.s32 %v2871, %v2873
        %v2875 = vrot.slane %v2758, %v2874
        %v2877 = vunpack.c.l.s4 1966171168
        %v2878 = vunpack.c.0.s8 %v2877
        %v2879 = vlaneseq
        %v2880 = vshrl.u32 %v2879, 7
        %v2881 = vsub.s32 %v2878, %v2880
        %v2882 = vrot.slane %v2868, %v2881
        %v2883 = vcombine.high %v2875, %v2875
        %v2884 = vcombine.high %v2882, %v2882
        %v2886 = vunpack.c.l.s4 1966171168
        %v2887 = vunpack.c.0.s8 %v2886
        %v2888 = vlaneseq
        %v2889 = vshrl.u32 %v2888, 7
        %v2890 = vsub.s32 %v2887, %v2889
        %v2891 = vrot.slane %v2875, %v2890
        %v2893 = vunpack.c.l.s4 1966171168
        %v2894 = vunpack.c.0.s8 %v2893
        %v2895 = vlaneseq
        %v2896 = vshrl.u32 %v2895, 7
        %v2897 = vsub.s32 %v2894, %v2896
        %v2898 = vrot.slane %v2882, %v2897
        %v2900 = vunpack.c.l.s4 1966171168
        %v2901 = vunpack.c.0.s8 %v2900
        %v2902 = vlaneseq
        %v2903 = vshrl.u32 %v2902, 7
        %v2904 = vsub.s32 %v2901, %v2903
        %v2905 = vrot.slane %v2883, %v2904
        %v2907 = vunpack.c.l.s4 1966171168
        %v2908 = vunpack.c.0.s8 %v2907
        %v2909 = vlaneseq
        %v2910 = vshrl.u32 %v2909, 7
        %v2911 = vsub.s32 %v2908, %v2910
        %v2912 = vrot.slane %v2884, %v2911
        %v2913 = vcombine.high %v2891, %v2891
        %v2914 = vcombine.high %v2898, %v2898
        %v2915 = vcombine.high %v2905, %v2905
        %v2916 = vcombine.high %v2912, %v2912
        %v2918 = vunpack.c.l.s4 1966171168
        %v2919 = vunpack.c.0.s8 %v2918
        %v2920 = vlaneseq
        %v2921 = vshrl.u32 %v2920, 7
        %v2922 = vsub.s32 %v2919, %v2921
        %v2923 = vrot.slane %v2763, %v2922
        %v2925 = vunpack.c.l.s4 1966171168
        %v2926 = vunpack.c.0.s8 %v2925
        %v2927 = vlaneseq
        %v2928 = vshrl.u32 %v2927, 7
        %v2929 = vsub.s32 %v2926, %v2928
        %v2930 = vrot.slane %v2923, %v2929
        %v2931 = vcombine.low %v2793, %v2793
        %v2932 = vcombine.low %v2807, %v2815
        %v2933 = vcombine.low %v2817, %v2800
        %v2935 = vunpack.c.l.s4 1966171168
        %v2936 = vunpack.c.0.s8 %v2935
        %v2937 = vlaneseq
        %v2938 = vshrl.u32 %v2937, 7
        %v2939 = vsub.s32 %v2936, %v2938
        %v2940 = vrot.slane %v2931, %v2939
        %v2942 = vunpack.c.l.s4 1966171168
        %v2943 = vunpack.c.0.s8 %v2942
        %v2944 = vlaneseq
        %v2945 = vshrl.u32 %v2944, 7
        %v2946 = vsub.s32 %v2943, %v2945
        %v2947 = vrot.slane %v2932, %v2946
        %v2949 = vunpack.c.l.s4 1966171168
        %v2950 = vunpack.c.0.s8 %v2949
        %v2951 = vlaneseq
        %v2952 = vshrl.u32 %v2951, 7
        %v2953 = vsub.s32 %v2950, %v2952
        %v2954 = vrot.slane %v2933, %v2953
        %v2955 = vcombine.low %v2940, %v2947
        %v2957 = vunpack.c.l.s4 1966171168
        %v2958 = vunpack.c.0.s8 %v2957
        %v2959 = vlaneseq
        %v2960 = vshrl.u32 %v2959, 7
        %v2961 = vsub.s32 %v2958, %v2960
        %v2962 = vrot.slane %v2955, %v2961
        %v2964 = vunpack.c.l.s4 1966171168
        %v2965 = vunpack.c.0.s8 %v2964
        %v2966 = vlaneseq
        %v2967 = vshrl.u32 %v2966, 7
        %v2968 = vsub.s32 %v2965, %v2967
        %v2969 = vrot.slane %v2954, %v2968
        %v2970 = vcombine.low %v2962, %v2969
        %v2971 = vcombine.low %v2814, %v2814
        %v2972 = vcombine.low %v2816, %v2818
        %v2973 = vcombine.low %v2842, %v2856
        %v2975 = vunpack.c.l.s4 1966171168
        %v2976 = vunpack.c.0.s8 %v2975
        %v2977 = vlaneseq
        %v2978 = vshrl.u32 %v2977, 7
        %v2979 = vsub.s32 %v2976, %v2978
        %v2980 = vrot.slane %v2971, %v2979
        %v2982 = vunpack.c.l.s4 1966171168
        %v2983 = vunpack.c.0.s8 %v2982
        %v2984 = vlaneseq
        %v2985 = vshrl.u32 %v2984, 7
        %v2986 = vsub.s32 %v2983, %v2985
        %v2987 = vrot.slane %v2972, %v2986
        %v2989 = vunpack.c.l.s4 1966171168
        %v2990 = vunpack.c.0.s8 %v2989
        %v2991 = vlaneseq
        %v2992 = vshrl.u32 %v2991, 7
        %v2993 = vsub.s32 %v2990, %v2992
        %v2994 = vrot.slane %v2973, %v2993
        %v2995 = vcombine.low %v2980, %v2987
        %v2997 = vunpack.c.l.s4 1966171168
        %v2998 = vunpack.c.0.s8 %v2997
        %v2999 = vlaneseq
        %v3000 = vshrl.u32 %v2999, 7
        %v3001 = vsub.s32 %v2998, %v3000
        %v3002 = vrot.slane %v2995, %v3001
        %v3004 = vunpack.c.l.s4 1966171168
        %v3005 = vunpack.c.0.s8 %v3004
        %v3006 = vlaneseq
        %v3007 = vshrl.u32 %v3006, 7
        %v3008 = vsub.s32 %v3005, %v3007
        %v3009 = vrot.slane %v2994, %v3008
        %v3010 = vcombine.low %v3002, %v3009
        %v3011 = vcombine.low %v2864, %v2864
        %v3012 = vcombine.low %v2866, %v2849
        %v3013 = vcombine.low %v2863, %v2865
        %v3015 = vunpack.c.l.s4 1966171168
        %v3016 = vunpack.c.0.s8 %v3015
        %v3017 = vlaneseq
        %v3018 = vshrl.u32 %v3017, 7
        %v3019 = vsub.s32 %v3016, %v3018
        %v3020 = vrot.slane %v3011, %v3019
        %v3022 = vunpack.c.l.s4 1966171168
        %v3023 = vunpack.c.0.s8 %v3022
        %v3024 = vlaneseq
        %v3025 = vshrl.u32 %v3024, 7
        %v3026 = vsub.s32 %v3023, %v3025
        %v3027 = vrot.slane %v3012, %v3026
        %v3029 = vunpack.c.l.s4 1966171168
        %v3030 = vunpack.c.0.s8 %v3029
        %v3031 = vlaneseq
        %v3032 = vshrl.u32 %v3031, 7
        %v3033 = vsub.s32 %v3030, %v3032
        %v3034 = vrot.slane %v3013, %v3033
        %v3035 = vcombine.low %v3020, %v3027
        %v3037 = vunpack.c.l.s4 1966171168
        %v3038 = vunpack.c.0.s8 %v3037
        %v3039 = vlaneseq
        %v3040 = vshrl.u32 %v3039, 7
        %v3041 = vsub.s32 %v3038, %v3040
        %v3042 = vrot.slane %v3035, %v3041
        %v3044 = vunpack.c.l.s4 1966171168
        %v3045 = vunpack.c.0.s8 %v3044
        %v3046 = vlaneseq
        %v3047 = vshrl.u32 %v3046, 7
        %v3048 = vsub.s32 %v3045, %v3047
        %v3049 = vrot.slane %v3034, %v3048
        %v3050 = vcombine.low %v3042, %v3049
        %v3051 = vcombine.low %v2867, %v2867
        %v3052 = vcombine.low %v2891, %v2905
        %v3053 = vcombine.low %v2913, %v2915
        %v3055 = vunpack.c.l.s4 1966171168
        %v3056 = vunpack.c.0.s8 %v3055
        %v3057 = vlaneseq
        %v3058 = vshrl.u32 %v3057, 7
        %v3059 = vsub.s32 %v3056, %v3058
        %v3060 = vrot.slane %v3051, %v3059
        %v3062 = vunpack.c.l.s4 1966171168
        %v3063 = vunpack.c.0.s8 %v3062
        %v3064 = vlaneseq
        %v3065 = vshrl.u32 %v3064, 7
        %v3066 = vsub.s32 %v3063, %v3065
        %v3067 = vrot.slane %v3052, %v3066
        %v3069 = vunpack.c.l.s4 1966171168
        %v3070 = vunpack.c.0.s8 %v3069
        %v3071 = vlaneseq
        %v3072 = vshrl.u32 %v3071, 7
        %v3073 = vsub.s32 %v3070, %v3072
        %v3074 = vrot.slane %v3053, %v3073
        %v3075 = vcombine.low %v3060, %v3067
        %v3077 = vunpack.c.l.s4 1966171168
        %v3078 = vunpack.c.0.s8 %v3077
        %v3079 = vlaneseq
        %v3080 = vshrl.u32 %v3079, 7
        %v3081 = vsub.s32 %v3078, %v3080
        %v3082 = vrot.slane %v3075, %v3081
        %v3084 = vunpack.c.l.s4 1966171168
        %v3085 = vunpack.c.0.s8 %v3084
        %v3086 = vlaneseq
        %v3087 = vshrl.u32 %v3086, 7
        %v3088 = vsub.s32 %v3085, %v3087
        %v3089 = vrot.slane %v3074, %v3088
        %v3090 = vcombine.low %v3082, %v3089
        %v3091 = vcombine.low %v2898, %v2898
        %v3092 = vcombine.low %v2912, %v2914
        %v3093 = vcombine.low %v2916, %v2930
        %v3095 = vunpack.c.l.s4 1966171168
        %v3096 = vunpack.c.0.s8 %v3095
        %v3097 = vlaneseq
        %v3098 = vshrl.u32 %v3097, 7
        %v3099 = vsub.s32 %v3096, %v3098
        %v3100 = vrot.slane %v3091, %v3099
        %v3102 = vunpack.c.l.s4 1966171168
        %v3103 = vunpack.c.0.s8 %v3102
        %v3104 = vlaneseq
        %v3105 = vshrl.u32 %v3104, 7
        %v3106 = vsub.s32 %v3103, %v3105
        %v3107 = vrot.slane %v3092, %v3106
        %v3109 = vunpack.c.l.s4 1966171168
        %v3110 = vunpack.c.0.s8 %v3109
        %v3111 = vlaneseq
        %v3112 = vshrl.u32 %v3111, 7
        %v3113 = vsub.s32 %v3110, %v3112
        %v3114 = vrot.slane %v3093, %v3113
        %v3115 = vcombine.low %v3100, %v3107
        %v3117 = vunpack.c.l.s4 1966171168
        %v3118 = vunpack.c.0.s8 %v3117
        %v3119 = vlaneseq
        %v3120 = vshrl.u32 %v3119, 7
        %v3121 = vsub.s32 %v3118, %v3120
        %v3122 = vrot.slane %v3115, %v3121
        %v3124 = vunpack.c.l.s4 1966171168
        %v3125 = vunpack.c.0.s8 %v3124
        %v3126 = vlaneseq
        %v3127 = vshrl.u32 %v3126, 7
        %v3128 = vsub.s32 %v3125, %v3127
        %v3129 = vrot.slane %v3114, %v3128
        %v3130 = vcombine.low %v3122, %v3129
        %vm3136 = vcmask 1040384
        %v3137 = vsel %vm3136, 0.0, %v2970
        %v3138 = vsel %vm3136, 0.0, %v3010
        %v3139 = vsel %vm3136, 0.0, %v3050
        %v3140 = vsel %vm3136, 0.0, %v3090
        %v3141 = vsel %vm3136, 0.0, %v3130
        %vm3142 = vcmask 1045504
        %v3143 = vsel %vm3142, %v3137, 0.0
        %v3144 = vsel %vm3142, %v3138, 0.0
        %v3145 = vsel %vm3142, %v3139, 0.0
        %v3146 = vsel %vm3142, %v3140, 0.0
        %v3147 = vsel %vm3142, %v3141, 0.0
        %v3148 = vld [vmem:[%s6] sm:$0x1]
        %v3150 = vlaneseq
        %v3151 = vshrl.u32 %v3150, 7
        %v3152 = vsub.s32 0, %v3151
        %v3153 = vrot.slane %v3148, %v3152
        %v3155 = vadd.f32 %v3153, 0.0
        %v3156 = vadd.f32 %v3143, %v3153
        %v3157 = vadd.f32 %v3144, %v3153
        %v3158 = vadd.f32 %v3145, %v3153
        %v3159 = vadd.f32 %v3146, %v3153
        %v3160 = vadd.f32 %v3147, %v3153
        %3168 = vrot.lane.b32.xlu0 %v402, 120
        %v3169 = vpop.permute.xlu0 %3168
        %3170 = vrot.lane.b32.xlu0 %v407, 120
        %v3171 = vpop.permute.xlu0 %3170
        %3172 = vrot.lane.b32.xlu0 %v412, 120
        %v3173 = vpop.permute.xlu0 %3172
        %3174 = vrot.lane.b32.xlu0 %v417, 120
        %v3175 = vpop.permute.xlu0 %3174
        %3176 = vrot.lane.b32.xlu0 %v422, 120
        %v3177 = vpop.permute.xlu0 %3176
        %3178 = vrot.lane.b32.xlu0 %v427, 120
        %v3179 = vpop.permute.xlu0 %3178
        %3180 = vrot.lane.b32.xlu0 %v432, 120
        %v3181 = vpop.permute.xlu0 %3180
        %v3189 = vadd.f32 %v3155, %v3169
        %v3190 = vadd.f32 %v3156, %v3171
        %v3191 = vadd.f32 %v3157, %v3173
        %v3192 = vadd.f32 %v3158, %v3175
        %v3193 = vadd.f32 %v3159, %v3177
        %v3194 = vadd.f32 %v3160, %v3179
        %v3195 = vadd.f32 %v3155, %v3181
        %v3196 = vmax.f32 %v3189, 0.0
        %v3197 = vmax.f32 %v3190, 0.0
        %v3198 = vmax.f32 %v3191, 0.0
        %v3199 = vmax.f32 %v3192, 0.0
        %v3200 = vmax.f32 %v3193, 0.0
        %v3201 = vmax.f32 %v3194, 0.0
        %v3202 = vmax.f32 %v3195, 0.0
        %vm3203 = vcmask 261120
        %3204 = vst.msk [vmem:[%s296] sm:$0xff] %vm3203, %v3196
        %3205 = vst.msk [vmem:[%s296 + $0x8] sm:$0xff] %vm3203, %v3197
        %3206 = vst.msk [vmem:[%s296 + $0x10] sm:$0xff] %vm3203, %v3198
        %3207 = vst.msk [vmem:[%s296 + $0x18] sm:$0xff] %vm3203, %v3199
        %3208 = vst.msk [vmem:[%s296 + $0x20] sm:$0xff] %vm3203, %v3200
        %3209 = vst.msk [vmem:[%s296 + $0x28] sm:$0xff] %vm3203, %v3201
        %3210 = vst.msk [vmem:[%s296 + $0x30] sm:$0xff] %vm3203, %v3202
        %s3211 = sand.u32 %s184, 1
        %s3212 = scalar_lea.sflag [#allocation4], %s3211
        %s3213 = sand.u32 %s184, 1
        %s3214 = smul.addr %s3213, 56
        %s3215 = scalar_lea.vmem [#allocation5], %s3214
        // Predicated region
        $region53: #{tpu_custom_call.1} parent=47 // pred_check
          %p3216 = pneg %p194
        $region54: #{tpu_custom_call.1} parent=47 // pred_check_branch
          %3218 = sbr.rel (%p3216) target = $region56
        $region55: #{tpu_custom_call.1} parent=47 // pred_region
          %s3220 = ssub.s32 896, 896
          %3221 = vsyncadd %s3212, %s3220
          %s3222 = smul.addr %s24, 7
          %s3223 = smul.addr %s3222, 128
          %s3224 = scalar_lea.hbm %s7, %s3223
          %s3225 = sshll.u32 %s3215, 4
          %s3226 = int_to_ptr.vmem [resolvable:$true] %s3225
          %3231 = dma.vmem_to_hbm [thread:$0]  %s3226, 896, %s3224, %s3212, 128, 128, 8
        $region56: #{tpu_custom_call.1} parent=47 // pred_fallthru
          _
      $region48: #{tpu_custom_call.1} parent=5 // pred_fallthru
        _
      %p3232 = scmp.le.s32.totalorder 2, %s19
      // Predicated region
      $region57: #{tpu_custom_call.1} parent=5 // pred_check
        %p3233 = pneg %p3232
      $region58: #{tpu_custom_call.1} parent=5 // pred_check_branch
        %3235 = sbr.rel (%p3233) target = $region60
      $region59: #{tpu_custom_call.1} parent=5 // pred_region
        %s3236 = ssub.s32 %s19, 2
        // Predicated region
        $region61: #{tpu_custom_call.1} parent=59 // pred_check
          %p3237 = pneg %p200
        $region62: #{tpu_custom_call.1} parent=59 // pred_check_branch
          %3239 = sbr.rel (%p3237) target = $region64
        $region63: #{tpu_custom_call.1} parent=59 // pred_region
          %s3240 = sand.u32 %s185, 1
          %s3241 = scalar_lea.sflag [#allocation4], %s3240
          %s3242 = sand.u32 %s185, 1
          %s3243 = smul.addr %s3242, 56
          %s3244 = scalar_lea.vmem [#allocation5], %s3243
          %3245 = dma.done %s3241, 896
        $region64: #{tpu_custom_call.1} parent=59 // pred_fallthru
          _
      $region60: #{tpu_custom_call.1} parent=5 // pred_fallthru
        _
    $region6: #{tpu_custom_call.1} parent=1 // loop_footer
      %s23 = sadd.s32 1, %s19
    $region7: #{tpu_custom_call.1} parent=1 // loop_footer_branch
      %18 = sbr.rel target = $region3
    $region8: #{tpu_custom_call.1} parent=1 // loop_exit
      _
    %3246 = vsyncpa [#allocation3], 1
    %s3247 = scalar_lea.sflag [#allocation3], 1
    %3248 = vsyncpa %s3247, 1
    %3249 = vsyncpa [#allocation4], 1
    %s3250 = scalar_lea.sflag [#allocation4], 1
    %3251 = vsyncpa %s3250, 1

</llo_original>
